<compile_context>
chip_gen: v7x
topology: tpu7x:2x2x1
jax: 0.10.0
libtpu: 0.0.40
codegen_flags: <defaults>
</compile_context>

<pallas_src>
import math
import jax
import jax.numpy as jnp
from jax.experimental import pallas as pl
from jax.experimental.pallas import tpu as pltpu

EMBED_DIM = 48      # module default is 768; scaled down for the small demo
NUM_HEADS = 6       # module default
NUM_LAYERS = 3      # module default
FFN_DIM = 96        # PyTorch default dim_feedforward=2048; scaled down for demo
EPS = 1e-5          # nn.LayerNorm default


def _layer_norm(x, gamma, beta):
    mean = jnp.mean(x, axis=-1, keepdims=True)
    var = jnp.mean(jnp.square(x - mean), axis=-1, keepdims=True)
    return (x - mean) * jax.lax.rsqrt(var + EPS) * gamma + beta


def encoder_kernel(x_ref, wqkv_ref, bqkv_ref, wo_ref, bo_ref,
                   w1_ref, b1_ref, w2_ref, b2_ref,
                   g1_ref, bt1_ref, g2_ref, bt2_ref,
                   out_ref, act_ref):
    l = pl.program_id(1)
    bblk, S, E = x_ref.shape
    N = bblk * S
    H = NUM_HEADS
    D = E // H
    scale = 1.0 / math.sqrt(D)

    # Load the input block into the persistent f32 activation scratch once
    # per batch block (layer axis is the inner, "arbitrary" grid axis).
    @pl.when(l == 0)
    def _init():
        act_ref[...] = x_ref[...].astype(jnp.float32).reshape(N, E)

    x = act_ref[...]                                   # (N, E) f32
    xb = x.astype(jnp.bfloat16)

    # ---------------- multi-head self attention (dropout = identity) ----------------
    # fused QKV projection: (N, E) x (E, 3E)  (weights pre-transposed, bf16)
    qkv = jnp.dot(xb, wqkv_ref[...],
                  preferred_element_type=jnp.float32) + bqkv_ref[...]     # (N, 3E) f32

    ctx_blocks = []
    for b in range(bblk):                              # static, small batch block
        rows = qkv[b * S:(b + 1) * S]                  # (S, 3E)
        qh = pltpu.einshape("shd->hsd", rows[:, :E].reshape(S, H, D))        # (H, S, D)
        kh = pltpu.einshape("shd->hsd", rows[:, E:2 * E].reshape(S, H, D))
        vh = pltpu.einshape("shd->hsd", rows[:, 2 * E:].reshape(S, H, D))

        # batched over heads: one 3-D einsum per contraction instead of H tiny dots
        s = jnp.einsum("hqd,hkd->hqk",
                       qh.astype(jnp.bfloat16), kh.astype(jnp.bfloat16),
                       preferred_element_type=jnp.float32) * scale          # (H, S, S)
        s = s - jnp.max(s, axis=-1, keepdims=True)
        p = jnp.exp(s)
        p = p * pl.reciprocal(jnp.sum(p, axis=-1, keepdims=True), approx=True)
        ctx = jnp.einsum("hqk,hkd->hqd",
                         p.astype(jnp.bfloat16), vh.astype(jnp.bfloat16),
                         preferred_element_type=jnp.float32)                # (H, S, D)
        ctx_blocks.append(pltpu.einshape("hsd->shd", ctx).reshape(S, E))
    attn = ctx_blocks[0] if bblk == 1 else jnp.concatenate(ctx_blocks, axis=0)  # (N, E)

    attn = jnp.dot(attn.astype(jnp.bfloat16), wo_ref[...],
                   preferred_element_type=jnp.float32) + bo_ref[...]
    x = _layer_norm(x + attn, g1_ref[...], bt1_ref[...])

    # ---------------- feed-forward (Linear -> ReLU -> Linear), post-norm ------------
    h1 = jnp.dot(x.astype(jnp.bfloat16), w1_ref[...],
                 preferred_element_type=jnp.float32) + b1_ref[...]
    h1 = jnp.maximum(h1, 0.0)
    h2 = jnp.dot(h1.astype(jnp.bfloat16), w2_ref[...],
                 preferred_element_type=jnp.float32) + b2_ref[...]
    x = _layer_norm(x + h2, g2_ref[...], bt2_ref[...])

    act_ref[...] = x

    @pl.when(l == pl.num_programs(1) - 1)
    def _store():
        out_ref[...] = x.reshape(bblk, S, E).astype(out_ref.dtype)


def _pick_batch_block(B):
    """Largest batch block that still leaves >=2 parallel grid blocks (megacore)."""
    if B < 2:
        return 1
    for cand in range(B // 2, 0, -1):
        if B % cand == 0:
            return cand
    return 1


def transformer_encoder(x, kernel_params):
    B, S, E = x.shape
    bblk = _pick_batch_block(B)
    nb = B // bblk

    x_spec = pl.BlockSpec((bblk, S, E), lambda b, l: (b, 0, 0))

    def wspec(p):
        # one layer's weights resident per grid step; layer dim squeezed away
        return pl.BlockSpec((pl.Squeezed(),) + tuple(p.shape[1:]),
                            lambda b, l: (l, 0, 0))

    weight_specs = [wspec(p) for p in kernel_params]

    return pl.pallas_call(
        encoder_kernel,
        out_shape=jax.ShapeDtypeStruct((B, S, E), x.dtype),
        grid=(nb, NUM_LAYERS),
        in_specs=[x_spec] + weight_specs,
        out_specs=x_spec,
        scratch_shapes=[pltpu.VMEM((bblk * S, E), jnp.float32)],
        compiler_params=pltpu.CompilerParams(
            dimension_semantics=("parallel", "arbitrary"),
            vmem_limit_bytes=64 * 1024 * 1024),
    )(x, *kernel_params)


def init_params(key):
    """Deterministic synthetic init, PyTorch weight layout (out_features, in_features)."""
    L, E, F = NUM_LAYERS, EMBED_DIM, FFN_DIM
    ks = jax.random.split(key, 8)

    def u(k, shape, fan_in):
        b = 1.0 / math.sqrt(fan_in)
        return jax.random.uniform(k, shape, jnp.float32, -b, b)

    return dict(
        wqkv=u(ks[0], (L, 3 * E, E), E),   # in_proj_weight
        bqkv=u(ks[1], (L, 3 * E), E),      # in_proj_bias
        wo=u(ks[2], (L, E, E), E),         # out_proj.weight
        bo=u(ks[3], (L, E), E),            # out_proj.bias
        w1=u(ks[4], (L, F, E), E),         # linear1.weight
        b1=u(ks[5], (L, F), E),            # linear1.bias
        w2=u(ks[6], (L, E, F), F),         # linear2.weight
        b2=u(ks[7], (L, E), F),            # linear2.bias
        g1=jnp.ones((L, E), jnp.float32),  # norm1.weight
        bt1=jnp.zeros((L, E), jnp.float32),
        g2=jnp.ones((L, E), jnp.float32),  # norm2.weight
        bt2=jnp.zeros((L, E), jnp.float32),
    )


def pack_params(p):
    """Kernel layout: matmul weights pre-transposed to (L, K, N) in bf16;
    biases / LayerNorm params as (L, 1, n) rows in f32."""
    def t(w):
        return jnp.transpose(w, (0, 2, 1)).astype(jnp.bfloat16)

    def row(v):
        return v[:, None, :].astype(jnp.float32)

    return (t(p["wqkv"]), row(p["bqkv"]), t(p["wo"]), row(p["bo"]),
            t(p["w1"]), row(p["b1"]), t(p["w2"]), row(p["b2"]),
            row(p["g1"]), row(p["bt1"]), row(p["g2"]), row(p["bt2"]))


def reference_encoder(x, p):
    """Pure-JAX (f32) mirror of torch's post-norm TransformerEncoder (eval mode)."""
    E = x.shape[-1]
    H = NUM_HEADS
    D = E // H
    scale = 1.0 / math.sqrt(D)
    out = x
    for l in range(NUM_LAYERS):
        qkv = out @ p["wqkv"][l].T + p["bqkv"][l]
        q, k, v = qkv[..., :E], qkv[..., E:2 * E], qkv[..., 2 * E:]
        heads = []
        for h in range(H):
            qh, kh, vh = (t[..., h * D:(h + 1) * D] for t in (q, k, v))
            s = jnp.einsum("bqd,bkd->bqk", qh, kh) * scale
            pw = jax.nn.softmax(s, axis=-1)
            heads.append(jnp.einsum("bqk,bkd->bqd", pw, vh))
        attn = jnp.concatenate(heads, axis=-1) @ p["wo"][l].T + p["bo"][l]
        out = _layer_norm(out + attn, p["g1"][l], p["bt1"][l])
        h1 = jnp.maximum(out @ p["w1"][l].T + p["b1"][l], 0.0)
        out = _layer_norm(out + h1 @ p["w2"][l].T + p["b2"][l], p["g2"][l], p["bt2"][l])
    return out


if __name__ == "__main__":
    key = jax.random.PRNGKey(0)
    kx, kp = jax.random.split(key)
    B, S = 2, 8
    x = jax.random.normal(kx, (B, S, EMBED_DIM), jnp.float32)

    torch_layout_params = init_params(kp)
    kparams = pack_params(torch_layout_params)

    y = transformer_encoder(x, kparams)
    y = jax.block_until_ready(y)

    y_ref = reference_encoder(x, torch_layout_params)
    assert y.shape == (B, S, EMBED_DIM)
    # MXU operands are bf16 (f32 accumulation), so compare with a bf16-level tolerance.
    max_err = float(jnp.max(jnp.abs(y - y_ref)))
    assert jnp.allclose(y, y_ref, rtol=2e-2, atol=2e-2), (
        f"mismatch vs pure-JAX reference, max |err|={max_err}")
    print("KERNEL_OK")
</pallas_src>

<mosaic_0001>
module attributes {stable_mosaic.version = 11 : i64} {
  func.func @encoder_kernel(%arg0: i32, %arg1: i32, %arg2: memref<1x8x48xf32, #tpu.memory_space<vmem>>, %arg3: memref<1x48x144xbf16, #tpu.memory_space<vmem>>, %arg4: memref<1x1x144xf32, #tpu.memory_space<vmem>>, %arg5: memref<1x48x48xbf16, #tpu.memory_space<vmem>>, %arg6: memref<1x1x48xf32, #tpu.memory_space<vmem>>, %arg7: memref<1x48x96xbf16, #tpu.memory_space<vmem>>, %arg8: memref<1x1x96xf32, #tpu.memory_space<vmem>>, %arg9: memref<1x96x48xbf16, #tpu.memory_space<vmem>>, %arg10: memref<1x1x48xf32, #tpu.memory_space<vmem>>, %arg11: memref<1x1x48xf32, #tpu.memory_space<vmem>>, %arg12: memref<1x1x48xf32, #tpu.memory_space<vmem>>, %arg13: memref<1x1x48xf32, #tpu.memory_space<vmem>>, %arg14: memref<1x1x48xf32, #tpu.memory_space<vmem>>, %arg15: memref<1x8x48xf32, #tpu.memory_space<vmem>>, %arg16: memref<8x48xf32, #tpu.memory_space<vmem>>) attributes {dimension_semantics = [#tpu.dimension_semantics<parallel>, #tpu.dimension_semantics<arbitrary>], iteration_bounds = array<i64: 2, 3>, scalar_prefetch = 0 : i64, scratch_operands = 1 : i64, tpu.core_type = #tpu.core_type<tc>, window_params = [{transform_indices = @transform_0, window_bounds = array<i64: 1, 8, 48>}, {transform_indices = @transform_1, window_bounds = array<i64: 1, 48, 144>}, {transform_indices = @transform_2, window_bounds = array<i64: 1, 1, 144>}, {transform_indices = @transform_3, window_bounds = array<i64: 1, 48, 48>}, {transform_indices = @transform_4, window_bounds = array<i64: 1, 1, 48>}, {transform_indices = @transform_5, window_bounds = array<i64: 1, 48, 96>}, {transform_indices = @transform_6, window_bounds = array<i64: 1, 1, 96>}, {transform_indices = @transform_7, window_bounds = array<i64: 1, 96, 48>}, {transform_indices = @transform_8, window_bounds = array<i64: 1, 1, 48>}, {transform_indices = @transform_9, window_bounds = array<i64: 1, 1, 48>}, {transform_indices = @transform_10, window_bounds = array<i64: 1, 1, 48>}, {transform_indices = @transform_11, window_bounds = array<i64: 1, 1, 48>}, {transform_indices = @transform_12, window_bounds = array<i64: 1, 1, 48>}, {transform_indices = @transform_13, window_bounds = array<i64: 1, 8, 48>}]} {
    %c0_i32 = arith.constant 0 : i32
    %0 = arith.cmpi eq, %arg1, %c0_i32 : i32
    %1 = arith.extui %0 : i1 to i32
    %c0_i32_0 = arith.constant 0 : i32
    %2 = arith.cmpi ne, %1, %c0_i32_0 : i32
    scf.if %2 {
      %c0_60 = arith.constant 0 : index
      %c0_61 = arith.constant 0 : index
      %c0_62 = arith.constant 0 : index
      %125 = vector.load %arg2[%c0_60, %c0_61, %c0_62] : memref<1x8x48xf32, #tpu.memory_space<vmem>>, vector<1x8x48xf32>
      %126 = vector.shape_cast %125 : vector<1x8x48xf32> to vector<8x48xf32>
      %c0_63 = arith.constant 0 : index
      %c0_64 = arith.constant 0 : index
      %127 = vector.load %arg16[%c0_63, %c0_64] : memref<8x48xf32, #tpu.memory_space<vmem>>, vector<8x48xf32>
      tpu.vector_store %arg16[%c0_63, %c0_64], %126 {strides = array<i32>} : memref<8x48xf32, #tpu.memory_space<vmem>>, vector<8x48xf32>,
    } else {
    }
    %c0 = arith.constant 0 : index
    %c0_1 = arith.constant 0 : index
    %3 = vector.load %arg16[%c0, %c0_1] : memref<8x48xf32, #tpu.memory_space<vmem>>, vector<8x48xf32>
    %4 = arith.truncf %3 : vector<8x48xf32> to vector<8x48xbf16>
    %c0_2 = arith.constant 0 : index
    %c0_3 = arith.constant 0 : index
    %c0_4 = arith.constant 0 : index
    %5 = vector.load %arg3[%c0_2, %c0_3, %c0_4] : memref<1x48x144xbf16, #tpu.memory_space<vmem>>, vector<1x48x144xbf16>
    %6 = vector.shape_cast %5 : vector<1x48x144xbf16> to vector<48x144xbf16>
    %cst = arith.constant dense<0.000000e+00> : vector<8x144xf32>
    %7 = tpu.matmul %4, %6, %cst {dimension_numbers = #tpu.dot_dimension_numbers<[1], [0], [0], [1], [0, 0, 1, 1], [], []>} : vector<8x48xbf16>, vector<48x144xbf16>, vector<8x144xf32> -> vector<8x144xf32>
    %c0_5 = arith.constant 0 : index
    %c0_6 = arith.constant 0 : index
    %c0_7 = arith.constant 0 : index
    %8 = vector.load %arg4[%c0_5, %c0_6, %c0_7] : memref<1x1x144xf32, #tpu.memory_space<vmem>>, vector<1x1x144xf32>
    %9 = vector.shape_cast %8 : vector<1x1x144xf32> to vector<1x144xf32>
    %10 = vector.broadcast %9 : vector<1x144xf32> to vector<8x144xf32>
    %11 = arith.addf %7, %10 : vector<8x144xf32>
    %12 = vector.extract_strided_slice %11 {offsets = [0, 0], sizes = [8, 48], strides = [1, 1]} : vector<8x144xf32> to vector<8x48xf32>
    %13 = vector.shape_cast %12 : vector<8x48xf32> to vector<8x6x8xf32>
    %14 = tpu.transpose %13, [1, 0, 2] : vector<8x6x8xf32> -> vector<6x8x8xf32>
    %15 = vector.extract_strided_slice %11 {offsets = [0, 48], sizes = [8, 48], strides = [1, 1]} : vector<8x144xf32> to vector<8x48xf32>
    %16 = vector.shape_cast %15 : vector<8x48xf32> to vector<8x6x8xf32>
    %17 = tpu.transpose %16, [1, 0, 2] : vector<8x6x8xf32> -> vector<6x8x8xf32>
    %18 = vector.extract_strided_slice %11 {offsets = [0, 96], sizes = [8, 48], strides = [1, 1]} : vector<8x144xf32> to vector<8x48xf32>
    %19 = vector.shape_cast %18 : vector<8x48xf32> to vector<8x6x8xf32>
    %20 = tpu.transpose %19, [1, 0, 2] : vector<8x6x8xf32> -> vector<6x8x8xf32>
    %21 = arith.truncf %14 : vector<6x8x8xf32> to vector<6x8x8xbf16>
    %22 = arith.truncf %17 : vector<6x8x8xf32> to vector<6x8x8xbf16>
    "tpu.trace_start"() <{level = 10 : i32, message = "hqd,hkd->hqk"}> : () -> ()
    %cst_8 = arith.constant dense<0.000000e+00> : vector<6x8x8xf32>
    %23 = tpu.matmul %21, %22, %cst_8 {dimension_numbers = #tpu.dot_dimension_numbers<[2], [2], [1], [1], [0, 0, 0, 1, 1, 1], [0], [0]>} : vector<6x8x8xbf16>, vector<6x8x8xbf16>, vector<6x8x8xf32> -> vector<6x8x8xf32>
    "tpu.trace_stop"() : () -> ()
    %cst_9 = arith.constant 0.353553385 : f32
    %24 = vector.broadcast %cst_9 : f32 to vector<6x8x8xf32>
    %25 = arith.mulf %23, %24 : vector<6x8x8xf32>
    %cst_10 = arith.constant dense<0xFF800000> : vector<6x8xf32>
    %26 = vector.multi_reduction <maximumf>, %25, %cst_10 [2] : vector<6x8x8xf32> to vector<6x8xf32>
    %27 = vector.shape_cast %26 : vector<6x8xf32> to vector<6x8x1xf32>
    %28 = vector.broadcast %27 : vector<6x8x1xf32> to vector<6x8x8xf32>
    %29 = arith.subf %25, %28 : vector<6x8x8xf32>
    %30 = math.exp %29 : vector<6x8x8xf32>
    %cst_11 = arith.constant dense<0.000000e+00> : vector<6x8xf32>
    %31 = vector.multi_reduction <add>, %30, %cst_11 [2] : vector<6x8x8xf32> to vector<6x8xf32>
    %32 = vector.shape_cast %31 : vector<6x8xf32> to vector<6x8x1xf32>
    %33 = tpu.reciprocal %32 {approx = true} : vector<6x8x1xf32> -> vector<6x8x1xf32>
    %34 = vector.broadcast %33 : vector<6x8x1xf32> to vector<6x8x8xf32>
    %35 = arith.mulf %30, %34 : vector<6x8x8xf32>
    %36 = arith.truncf %35 : vector<6x8x8xf32> to vector<6x8x8xbf16>
    %37 = arith.truncf %20 : vector<6x8x8xf32> to vector<6x8x8xbf16>
    "tpu.trace_start"() <{level = 10 : i32, message = "hqk,hkd->hqd"}> : () -> ()
    %cst_12 = arith.constant dense<0.000000e+00> : vector<6x8x8xf32>
    %38 = tpu.matmul %36, %37, %cst_12 {dimension_numbers = #tpu.dot_dimension_numbers<[2], [1], [1], [2], [0, 0, 0, 1, 1, 2], [0], [0]>} : vector<6x8x8xbf16>, vector<6x8x8xbf16>, vector<6x8x8xf32> -> vector<6x8x8xf32>
    "tpu.trace_stop"() : () -> ()
    %39 = tpu.transpose %38, [1, 0, 2] : vector<6x8x8xf32> -> vector<8x6x8xf32>
    %40 = vector.shape_cast %39 : vector<8x6x8xf32> to vector<8x48xf32>
    %41 = arith.truncf %40 : vector<8x48xf32> to vector<8x48xbf16>
    %c0_13 = arith.constant 0 : index
    %c0_14 = arith.constant 0 : index
    %c0_15 = arith.constant 0 : index
    %42 = vector.load %arg5[%c0_13, %c0_14, %c0_15] : memref<1x48x48xbf16, #tpu.memory_space<vmem>>, vector<1x48x48xbf16>
    %43 = vector.shape_cast %42 : vector<1x48x48xbf16> to vector<48x48xbf16>
    %cst_16 = arith.constant dense<0.000000e+00> : vector<8x48xf32>
    %44 = tpu.matmul %41, %43, %cst_16 {dimension_numbers = #tpu.dot_dimension_numbers<[1], [0], [0], [1], [0, 0, 1, 1], [], []>} : vector<8x48xbf16>, vector<48x48xbf16>, vector<8x48xf32> -> vector<8x48xf32>
    %c0_17 = arith.constant 0 : index
    %c0_18 = arith.constant 0 : index
    %c0_19 = arith.constant 0 : index
    %45 = vector.load %arg6[%c0_17, %c0_18, %c0_19] : memref<1x1x48xf32, #tpu.memory_space<vmem>>, vector<1x1x48xf32>
    %46 = vector.shape_cast %45 : vector<1x1x48xf32> to vector<1x48xf32>
    %47 = vector.broadcast %46 : vector<1x48xf32> to vector<8x48xf32>
    %48 = arith.addf %44, %47 : vector<8x48xf32>
    %49 = arith.addf %3, %48 : vector<8x48xf32>
    %c0_20 = arith.constant 0 : index
    %c0_21 = arith.constant 0 : index
    %c0_22 = arith.constant 0 : index
    %50 = vector.load %arg11[%c0_20, %c0_21, %c0_22] : memref<1x1x48xf32, #tpu.memory_space<vmem>>, vector<1x1x48xf32>
    %51 = vector.shape_cast %50 : vector<1x1x48xf32> to vector<1x48xf32>
    %c0_23 = arith.constant 0 : index
    %c0_24 = arith.constant 0 : index
    %c0_25 = arith.constant 0 : index
    %52 = vector.load %arg12[%c0_23, %c0_24, %c0_25] : memref<1x1x48xf32, #tpu.memory_space<vmem>>, vector<1x1x48xf32>
    %53 = vector.shape_cast %52 : vector<1x1x48xf32> to vector<1x48xf32>
    %cst_26 = arith.constant dense<0.000000e+00> : vector<8xf32>
    %54 = vector.multi_reduction <add>, %49, %cst_26 [1] : vector<8x48xf32> to vector<8xf32>
    %55 = vector.shape_cast %54 : vector<8xf32> to vector<8x1xf32>
    %cst_27 = arith.constant 4.800000e+01 : f32
    %56 = vector.broadcast %cst_27 : f32 to vector<8x1xf32>
    %57 = arith.divf %55, %56 : vector<8x1xf32>
    %58 = vector.broadcast %57 : vector<8x1xf32> to vector<8x48xf32>
    %59 = arith.subf %49, %58 : vector<8x48xf32>
    %60 = arith.mulf %59, %59 : vector<8x48xf32>
    %cst_28 = arith.constant dense<0.000000e+00> : vector<8xf32>
    %61 = vector.multi_reduction <add>, %60, %cst_28 [1] : vector<8x48xf32> to vector<8xf32>
    %62 = vector.shape_cast %61 : vector<8xf32> to vector<8x1xf32>
    %cst_29 = arith.constant 4.800000e+01 : f32
    %63 = vector.broadcast %cst_29 : f32 to vector<8x1xf32>
    %64 = arith.divf %62, %63 : vector<8x1xf32>
    %65 = vector.broadcast %57 : vector<8x1xf32> to vector<8x48xf32>
    %66 = arith.subf %49, %65 : vector<8x48xf32>
    %cst_30 = arith.constant 9.99999974E-6 : f32
    %67 = vector.broadcast %cst_30 : f32 to vector<8x1xf32>
    %68 = arith.addf %64, %67 : vector<8x1xf32>
    %69 = math.rsqrt %68 : vector<8x1xf32>
    %70 = vector.broadcast %69 : vector<8x1xf32> to vector<8x48xf32>
    %71 = arith.mulf %66, %70 : vector<8x48xf32>
    %72 = vector.broadcast %51 : vector<1x48xf32> to vector<8x48xf32>
    %73 = arith.mulf %71, %72 : vector<8x48xf32>
    %74 = vector.broadcast %53 : vector<1x48xf32> to vector<8x48xf32>
    %75 = arith.addf %73, %74 : vector<8x48xf32>
    %76 = arith.truncf %75 : vector<8x48xf32> to vector<8x48xbf16>
    %c0_31 = arith.constant 0 : index
    %c0_32 = arith.constant 0 : index
    %c0_33 = arith.constant 0 : index
    %77 = vector.load %arg7[%c0_31, %c0_32, %c0_33] : memref<1x48x96xbf16, #tpu.memory_space<vmem>>, vector<1x48x96xbf16>
    %78 = vector.shape_cast %77 : vector<1x48x96xbf16> to vector<48x96xbf16>
    %cst_34 = arith.constant dense<0.000000e+00> : vector<8x96xf32>
    %79 = tpu.matmul %76, %78, %cst_34 {dimension_numbers = #tpu.dot_dimension_numbers<[1], [0], [0], [1], [0, 0, 1, 1], [], []>} : vector<8x48xbf16>, vector<48x96xbf16>, vector<8x96xf32> -> vector<8x96xf32>
    %c0_35 = arith.constant 0 : index
    %c0_36 = arith.constant 0 : index
    %c0_37 = arith.constant 0 : index
    %80 = vector.load %arg8[%c0_35, %c0_36, %c0_37] : memref<1x1x96xf32, #tpu.memory_space<vmem>>, vector<1x1x96xf32>
    %81 = vector.shape_cast %80 : vector<1x1x96xf32> to vector<1x96xf32>
    %82 = vector.broadcast %81 : vector<1x96xf32> to vector<8x96xf32>
    %83 = arith.addf %79, %82 : vector<8x96xf32>
    %cst_38 = arith.constant 0.000000e+00 : f32
    %84 = vector.broadcast %cst_38 : f32 to vector<8x96xf32>
    %85 = arith.maximumf %83, %84 : vector<8x96xf32>
    %86 = arith.truncf %85 : vector<8x96xf32> to vector<8x96xbf16>
    %c0_39 = arith.constant 0 : index
    %c0_40 = arith.constant 0 : index
    %c0_41 = arith.constant 0 : index
    %87 = vector.load %arg9[%c0_39, %c0_40, %c0_41] : memref<1x96x48xbf16, #tpu.memory_space<vmem>>, vector<1x96x48xbf16>
    %88 = vector.shape_cast %87 : vector<1x96x48xbf16> to vector<96x48xbf16>
    %cst_42 = arith.constant dense<0.000000e+00> : vector<8x48xf32>
    %89 = tpu.matmul %86, %88, %cst_42 {dimension_numbers = #tpu.dot_dimension_numbers<[1], [0], [0], [1], [0, 0, 1, 1], [], []>} : vector<8x96xbf16>, vector<96x48xbf16>, vector<8x48xf32> -> vector<8x48xf32>
    %c0_43 = arith.constant 0 : index
    %c0_44 = arith.constant 0 : index
    %c0_45 = arith.constant 0 : index
    %90 = vector.load %arg10[%c0_43, %c0_44, %c0_45] : memref<1x1x48xf32, #tpu.memory_space<vmem>>, vector<1x1x48xf32>
    %91 = vector.shape_cast %90 : vector<1x1x48xf32> to vector<1x48xf32>
    %92 = vector.broadcast %91 : vector<1x48xf32> to vector<8x48xf32>
    %93 = arith.addf %89, %92 : vector<8x48xf32>
    %94 = arith.addf %75, %93 : vector<8x48xf32>
    %c0_46 = arith.constant 0 : index
    %c0_47 = arith.constant 0 : index
    %c0_48 = arith.constant 0 : index
    %95 = vector.load %arg13[%c0_46, %c0_47, %c0_48] : memref<1x1x48xf32, #tpu.memory_space<vmem>>, vector<1x1x48xf32>
    %96 = vector.shape_cast %95 : vector<1x1x48xf32> to vector<1x48xf32>
    %c0_49 = arith.constant 0 : index
    %c0_50 = arith.constant 0 : index
    %c0_51 = arith.constant 0 : index
    %97 = vector.load %arg14[%c0_49, %c0_50, %c0_51] : memref<1x1x48xf32, #tpu.memory_space<vmem>>, vector<1x1x48xf32>
    %98 = vector.shape_cast %97 : vector<1x1x48xf32> to vector<1x48xf32>
    %cst_52 = arith.constant dense<0.000000e+00> : vector<8xf32>
    %99 = vector.multi_reduction <add>, %94, %cst_52 [1] : vector<8x48xf32> to vector<8xf32>
    %100 = vector.shape_cast %99 : vector<8xf32> to vector<8x1xf32>
    %cst_53 = arith.constant 4.800000e+01 : f32
    %101 = vector.broadcast %cst_53 : f32 to vector<8x1xf32>
    %102 = arith.divf %100, %101 : vector<8x1xf32>
    %103 = vector.broadcast %102 : vector<8x1xf32> to vector<8x48xf32>
    %104 = arith.subf %94, %103 : vector<8x48xf32>
    %105 = arith.mulf %104, %104 : vector<8x48xf32>
    %cst_54 = arith.constant dense<0.000000e+00> : vector<8xf32>
    %106 = vector.multi_reduction <add>, %105, %cst_54 [1] : vector<8x48xf32> to vector<8xf32>
    %107 = vector.shape_cast %106 : vector<8xf32> to vector<8x1xf32>
    %cst_55 = arith.constant 4.800000e+01 : f32
    %108 = vector.broadcast %cst_55 : f32 to vector<8x1xf32>
    %109 = arith.divf %107, %108 : vector<8x1xf32>
    %110 = vector.broadcast %102 : vector<8x1xf32> to vector<8x48xf32>
    %111 = arith.subf %94, %110 : vector<8x48xf32>
    %cst_56 = arith.constant 9.99999974E-6 : f32
    %112 = vector.broadcast %cst_56 : f32 to vector<8x1xf32>
    %113 = arith.addf %109, %112 : vector<8x1xf32>
    %114 = math.rsqrt %113 : vector<8x1xf32>
    %115 = vector.broadcast %114 : vector<8x1xf32> to vector<8x48xf32>
    %116 = arith.mulf %111, %115 : vector<8x48xf32>
    %117 = vector.broadcast %96 : vector<1x48xf32> to vector<8x48xf32>
    %118 = arith.mulf %116, %117 : vector<8x48xf32>
    %119 = vector.broadcast %98 : vector<1x48xf32> to vector<8x48xf32>
    %120 = arith.addf %118, %119 : vector<8x48xf32>
    %c0_57 = arith.constant 0 : index
    %c0_58 = arith.constant 0 : index
    %121 = vector.load %arg16[%c0_57, %c0_58] : memref<8x48xf32, #tpu.memory_space<vmem>>, vector<8x48xf32>
    tpu.vector_store %arg16[%c0_57, %c0_58], %120 {strides = array<i32>} : memref<8x48xf32, #tpu.memory_space<vmem>>, vector<8x48xf32>,
    %c2_i32 = arith.constant 2 : i32
    %122 = arith.cmpi eq, %arg1, %c2_i32 : i32
    %123 = arith.extui %122 : i1 to i32
    %c0_i32_59 = arith.constant 0 : i32
    %124 = arith.cmpi ne, %123, %c0_i32_59 : i32
    scf.if %124 {
      %125 = vector.shape_cast %120 : vector<8x48xf32> to vector<1x8x48xf32>
      %c0_60 = arith.constant 0 : index
      %c0_61 = arith.constant 0 : index
      %c0_62 = arith.constant 0 : index
      %126 = vector.load %arg15[%c0_60, %c0_61, %c0_62] : memref<1x8x48xf32, #tpu.memory_space<vmem>>, vector<1x8x48xf32>
      tpu.vector_store %arg15[%c0_60, %c0_61, %c0_62], %125 {strides = array<i32>} : memref<1x8x48xf32, #tpu.memory_space<vmem>>, vector<1x8x48xf32>,
    } else {
    }
    return
  }
  func.func @transform_0(%arg0: i32, %arg1: i32) -> (i32, i32, i32) {
    %c0_i32 = arith.constant 0 : i32
    %c0_i32_0 = arith.constant 0 : i32
    %c0_i32_1 = arith.constant 0 : i32
    return %arg0, %c0_i32, %c0_i32_0 : i32, i32, i32
  }
  func.func @transform_1(%arg0: i32, %arg1: i32) -> (i32, i32, i32) {
    %c0_i32 = arith.constant 0 : i32
    %c0_i32_0 = arith.constant 0 : i32
    %c0_i32_1 = arith.constant 0 : i32
    return %arg1, %c0_i32, %c0_i32_0 : i32, i32, i32
  }
  func.func @transform_2(%arg0: i32, %arg1: i32) -> (i32, i32, i32) {
    %c0_i32 = arith.constant 0 : i32
    %c0_i32_0 = arith.constant 0 : i32
    %c0_i32_1 = arith.constant 0 : i32
    return %arg1, %c0_i32, %c0_i32_0 : i32, i32, i32
  }
  func.func @transform_3(%arg0: i32, %arg1: i32) -> (i32, i32, i32) {
    %c0_i32 = arith.constant 0 : i32
    %c0_i32_0 = arith.constant 0 : i32
    %c0_i32_1 = arith.constant 0 : i32
    return %arg1, %c0_i32, %c0_i32_0 : i32, i32, i32
  }
  func.func @transform_4(%arg0: i32, %arg1: i32) -> (i32, i32, i32) {
    %c0_i32 = arith.constant 0 : i32
    %c0_i32_0 = arith.constant 0 : i32
    %c0_i32_1 = arith.constant 0 : i32
    return %arg1, %c0_i32, %c0_i32_0 : i32, i32, i32
  }
  func.func @transform_5(%arg0: i32, %arg1: i32) -> (i32, i32, i32) {
    %c0_i32 = arith.constant 0 : i32
    %c0_i32_0 = arith.constant 0 : i32
    %c0_i32_1 = arith.constant 0 : i32
    return %arg1, %c0_i32, %c0_i32_0 : i32, i32, i32
  }
  func.func @transform_6(%arg0: i32, %arg1: i32) -> (i32, i32, i32) {
    %c0_i32 = arith.constant 0 : i32
    %c0_i32_0 = arith.constant 0 : i32
    %c0_i32_1 = arith.constant 0 : i32
    return %arg1, %c0_i32, %c0_i32_0 : i32, i32, i32
  }
  func.func @transform_7(%arg0: i32, %arg1: i32) -> (i32, i32, i32) {
    %c0_i32 = arith.constant 0 : i32
    %c0_i32_0 = arith.constant 0 : i32
    %c0_i32_1 = arith.constant 0 : i32
    return %arg1, %c0_i32, %c0_i32_0 : i32, i32, i32
  }
  func.func @transform_8(%arg0: i32, %arg1: i32) -> (i32, i32, i32) {
    %c0_i32 = arith.constant 0 : i32
    %c0_i32_0 = arith.constant 0 : i32
    %c0_i32_1 = arith.constant 0 : i32
    return %arg1, %c0_i32, %c0_i32_0 : i32, i32, i32
  }
  func.func @transform_9(%arg0: i32, %arg1: i32) -> (i32, i32, i32) {
    %c0_i32 = arith.constant 0 : i32
    %c0_i32_0 = arith.constant 0 : i32
    %c0_i32_1 = arith.constant 0 : i32
    return %arg1, %c0_i32, %c0_i32_0 : i32, i32, i32
  }
  func.func @transform_10(%arg0: i32, %arg1: i32) -> (i32, i32, i32) {
    %c0_i32 = arith.constant 0 : i32
    %c0_i32_0 = arith.constant 0 : i32
    %c0_i32_1 = arith.constant 0 : i32
    return %arg1, %c0_i32, %c0_i32_0 : i32, i32, i32
  }
  func.func @transform_11(%arg0: i32, %arg1: i32) -> (i32, i32, i32) {
    %c0_i32 = arith.constant 0 : i32
    %c0_i32_0 = arith.constant 0 : i32
    %c0_i32_1 = arith.constant 0 : i32
    return %arg1, %c0_i32, %c0_i32_0 : i32, i32, i32
  }
  func.func @transform_12(%arg0: i32, %arg1: i32) -> (i32, i32, i32) {
    %c0_i32 = arith.constant 0 : i32
    %c0_i32_0 = arith.constant 0 : i32
    %c0_i32_1 = arith.constant 0 : i32
    return %arg1, %c0_i32, %c0_i32_0 : i32, i32, i32
  }
  func.func @transform_13(%arg0: i32, %arg1: i32) -> (i32, i32, i32) {
    %c0_i32 = arith.constant 0 : i32
    %c0_i32_0 = arith.constant 0 : i32
    %c0_i32_1 = arith.constant 0 : i32
    return %arg0, %c0_i32, %c0_i32_0 : i32, i32, i32
  }
}

</mosaic_0001>

<llo_original>
// kernel: tpu_custom_call.1
$region0: #{tpu_custom_call.1}
  #allocation0 [shape = 'u32[]', space=smem, size = 0x4, offset = 0x4, fixed_abs, tag = 'smem constant byte address 0x4 - core index']
  #allocation1 [shape = 'u32[144,128]{1,0:T(1,128)}', space=vmem, size = 0x12000, scoped, tag = 'internal scratch']
  #allocation2 [shape = 'f32[8,48]{1,0:T(8,128)}', space=vmem, size = 0x1000, scoped, tag = 'scratch operand']
  %s0 = inlined_call_operand.hbm [shape: f32[2,8,48], index: 0, kind: input, shape index: {}]
  %s1 = inlined_call_operand.hbm [shape: bf16[3,48,144], index: 1, kind: input, shape index: {}]
  %s2 = inlined_call_operand.hbm [shape: f32[3,1,144], index: 2, kind: input, shape index: {}]
  %s3 = inlined_call_operand.hbm [shape: bf16[3,48,48], index: 3, kind: input, shape index: {}]
  %s4 = inlined_call_operand.hbm [shape: f32[3,1,48], index: 4, kind: input, shape index: {}]
  %s5 = inlined_call_operand.hbm [shape: bf16[3,48,96], index: 5, kind: input, shape index: {}]
  %s6 = inlined_call_operand.hbm [shape: f32[3,1,96], index: 6, kind: input, shape index: {}]
  %s7 = inlined_call_operand.hbm [shape: bf16[3,96,48], index: 7, kind: input, shape index: {}]
  %s8 = inlined_call_operand.hbm [shape: f32[3,1,48], index: 8, kind: input, shape index: {}]
  %s9 = inlined_call_operand.hbm [shape: f32[3,1,48], index: 9, kind: input, shape index: {}]
  %s10 = inlined_call_operand.hbm [shape: f32[3,1,48], index: 10, kind: input, shape index: {}]
  %s11 = inlined_call_operand.hbm [shape: f32[3,1,48], index: 11, kind: input, shape index: {}]
  %s12 = inlined_call_operand.hbm [shape: f32[3,1,48], index: 12, kind: input, shape index: {}]
  %s13 = inlined_call_operand.hbm [shape: f32[2,8,48], index: 13, kind: output, shape index: {}]
  %s14 = sld [smem:[#allocation0]]
  $region145: #{tpu_custom_call.1} parent=0
    _
  %s16 = ssub.s32 1, %s14
  %s17 = scalar_select 0, %s16, %s14
  $region1: #{tpu_custom_call.1} parent=0
    #allocation3 [shape = 'u8[8192]{0}', space=vmem, size = 0x2000, scoped, tag = 'input window, operand 0']
    #allocation4 [shape = 's32[2]{0}', space=sflag, size = 0x8, scoped, tag = 'scoped memory for tpu_custom_call.1']
    #allocation5 [shape = 's32[2]{0}', space=sflag, size = 0x8, scoped, tag = 'scoped memory for tpu_custom_call.1']
    #allocation6 [shape = 'u8[49152]{0}', space=vmem, size = 0xc000, scoped, tag = 'input window, operand 1']
    #allocation7 [shape = 's32[2]{0}', space=sflag, size = 0x8, scoped, tag = 'scoped memory for tpu_custom_call.1']
    #allocation8 [shape = 'u8[2048]{0}', space=vmem, size = 0x800, scoped, tag = 'input window, operand 2']
    #allocation9 [shape = 'u8[24576]{0}', space=vmem, size = 0x6000, scoped, tag = 'input window, operand 3']
    #allocation10 [shape = 's32[2]{0}', space=sflag, size = 0x8, scoped, tag = 'scoped memory for tpu_custom_call.1']
    #allocation11 [shape = 'u8[1024]{0}', space=vmem, size = 0x400, scoped, tag = 'input window, operand 4']
    #allocation12 [shape = 'u8[24576]{0}', space=vmem, size = 0x6000, scoped, tag = 'input window, operand 5']
    #allocation13 [shape = 's32[2]{0}', space=sflag, size = 0x8, scoped, tag = 'scoped memory for tpu_custom_call.1']
    #allocation14 [shape = 'u8[1024]{0}', space=vmem, size = 0x400, scoped, tag = 'input window, operand 6']
    #allocation15 [shape = 'u8[49152]{0}', space=vmem, size = 0xc000, scoped, tag = 'input window, operand 7']
    #allocation16 [shape = 's32[2]{0}', space=sflag, size = 0x8, scoped, tag = 'scoped memory for tpu_custom_call.1']
    #allocation17 [shape = 'u8[1024]{0}', space=vmem, size = 0x400, scoped, tag = 'input window, operand 8']
    #allocation18 [shape = 'u8[1024]{0}', space=vmem, size = 0x400, scoped, tag = 'input window, operand 9']
    #allocation19 [shape = 's32[2]{0}', space=sflag, size = 0x8, scoped, tag = 'scoped memory for tpu_custom_call.1']
    #allocation20 [shape = 'u8[1024]{0}', space=vmem, size = 0x400, scoped, tag = 'input window, operand 10']
    #allocation21 [shape = 'u8[1024]{0}', space=vmem, size = 0x400, scoped, tag = 'input window, operand 11']
    #allocation22 [shape = 's32[2]{0}', space=sflag, size = 0x8, scoped, tag = 'scoped memory for tpu_custom_call.1']
    #allocation23 [shape = 'u8[1024]{0}', space=vmem, size = 0x400, scoped, tag = 'input window, operand 12']
    #allocation24 [shape = 'u8[8192]{0}', space=vmem, size = 0x2000, scoped, tag = 'output window, operand 0']
    %18 = vsyncpa [#allocation4], 0
    %s19 = scalar_lea.sflag [#allocation4], 1
    %20 = vsyncpa %s19, 0
    %21 = vsyncpa [#allocation7], 0
    %s22 = scalar_lea.sflag [#allocation7], 1
    %23 = vsyncpa %s22, 0
    %24 = vsyncpa [#allocation10], 0
    %s25 = scalar_lea.sflag [#allocation10], 1
    %26 = vsyncpa %s25, 0
    %27 = vsyncpa [#allocation13], 0
    %s28 = scalar_lea.sflag [#allocation13], 1
    %29 = vsyncpa %s28, 0
    %30 = vsyncpa [#allocation16], 0
    %s31 = scalar_lea.sflag [#allocation16], 1
    %32 = vsyncpa %s31, 0
    %33 = vsyncpa [#allocation19], 0
    %s34 = scalar_lea.sflag [#allocation19], 1
    %35 = vsyncpa %s34, 0
    %36 = vsyncpa [#allocation22], 0
    %s37 = scalar_lea.sflag [#allocation22], 1
    %38 = vsyncpa %s37, 0
    %39 = vsyncpa [#allocation5], 0
    %s40 = scalar_lea.sflag [#allocation5], 1
    %41 = vsyncpa %s40, 0
    loop: start=0, step=1, limit=8
    $region2: #{tpu_custom_call.1} parent=1 // loop_pre_header
      _
    $region3: #{tpu_custom_call.1} parent=1 // loop_header
      %s43 = sphi 0, %s47
      %p44 = scmp.ge.s32.totalorder %s43, 8
      %s50 = sphi 0, %s62
      %s51 = sphi 0, %s58
      %s52 = sphi 0, %s50
      %s53 = sphi 0, %s51
      %s54 = sphi 0, %s52
      %s55 = sphi 0, %s53
      %s65 = sphi 0, %s67
      %s68 = sphi 0, %s65
      %s69 = sphi 0, %s68
      %s85 = sphi 0, %s69
      %s91 = sphi 0, %s93
      %s94 = sphi 0, %s91
      %s95 = sphi 0, %s94
      %s111 = sphi 0, %s95
      %s117 = sphi 0, %s119
      %s120 = sphi 0, %s117
      %s121 = sphi 0, %s120
      %s137 = sphi 0, %s121
      %s143 = sphi 0, %s145
      %s146 = sphi 0, %s143
      %s147 = sphi 0, %s146
      %s163 = sphi 0, %s147
      %s169 = sphi 0, %s171
      %s172 = sphi 0, %s169
      %s173 = sphi 0, %s172
      %s189 = sphi 0, %s173
      %s195 = sphi 0, %s197
      %s198 = sphi 0, %s195
      %s199 = sphi 0, %s198
      %s215 = sphi 0, %s199
      %s221 = sphi 0, %s223
      %s224 = sphi 0, %s221
      %s225 = sphi 0, %s224
      %s241 = sphi 0, %s225
      %s247 = sphi 0, %s249
      %s250 = sphi 0, %s247
      %s251 = sphi 0, %s250
      %s267 = sphi 0, %s251
      %s273 = sphi 0, %s275
      %s276 = sphi 0, %s273
      %s277 = sphi 0, %s276
      %s293 = sphi 0, %s277
      %s299 = sphi 0, %s301
      %s302 = sphi 0, %s299
      %s303 = sphi 0, %s302
      %s319 = sphi 0, %s303
      %s325 = sphi 0, %s327
      %s328 = sphi 0, %s325
      %s329 = sphi 0, %s328
      %s345 = sphi 0, %s329
      %s351 = sphi 0, %s353
      %s354 = sphi 0, %s351
      %s355 = sphi 0, %s354
      %s371 = sphi 0, %s355
      %s377 = sphi 0, %s379
      %s380 = sphi 0, %s377
      %s381 = sphi 0, %s380
      %s397 = sphi 0, %s381
      %s403 = sphi 0, %s405
      %s406 = sphi 0, %s403
      %s407 = sphi 0, %s406
      %s423 = sphi 0, %s407
    $region4: #{tpu_custom_call.1} parent=1 // loop_header_branch
      %46 = sbr.rel (%p44) target = $region8
    $region5: #{tpu_custom_call.1} parent=1 // loop_body
      %s48 = ssub.s32 %s43, 1
      %s49 = ssub.s32 %s43, 2
      %s56 = sadd.s32 1, %s51
      %p57 = scmp.ge.s32.totalorder %s56, 3
      %s58 = scalar_select %p57, 0, %s56
      %s59 = sadd.s32 1, %s50
      %s60 = scalar_select %p57, %s59, %s50
      %p61 = scmp.ge.s32.totalorder %s60, 2
      %s62 = scalar_select %p61, 0, %s60
      %s63 = ssub.s32 %s50, %s62
      %p64 = scmp.eq.s32.totalorder %s63, 0
      %s66 = sadd.s32 %s65, 1
      %s67 = scalar_select %p64, %s65, %s66
      %p70 = pneg %p64
      %p71 = scmp.eq.s32.totalorder %s43, 5
      %p72 = por %p70, %p71
      %p73 = scmp.ne.s32.totalorder %s65, %s68
      %p74 = scmp.eq.s32.totalorder %s43, 0
      %p75 = por %p73, %p74
      %p76 = scmp.ne.s32.totalorder %s65, %s68
      %p77 = scmp.eq.s32.totalorder %s48, 5
      %p78 = por %p76, %p77
      %p79 = scmp.ne.s32.totalorder %s68, %s69
      %p80 = scmp.eq.s32.totalorder %s48, 0
      %p81 = por %p79, %p80
      %p82 = scmp.ne.s32.totalorder %s68, %s69
      %p83 = scmp.eq.s32.totalorder %s49, 5
      %p84 = por %p82, %p83
      %p86 = scmp.ne.s32.totalorder %s69, %s85
      %p87 = scmp.eq.s32.totalorder %s49, 0
      %p88 = por %p86, %p87
      %s89 = ssub.s32 %s51, %s58
      %p90 = scmp.eq.s32.totalorder %s89, 0
      %s92 = sadd.s32 %s91, 1
      %s93 = scalar_select %p90, %s91, %s92
      %p96 = pneg %p90
      %p97 = scmp.eq.s32.totalorder %s43, 5
      %p98 = por %p96, %p97
      %p99 = scmp.ne.s32.totalorder %s91, %s94
      %p100 = scmp.eq.s32.totalorder %s43, 0
      %p101 = por %p99, %p100
      %p102 = scmp.ne.s32.totalorder %s91, %s94
      %p103 = scmp.eq.s32.totalorder %s48, 5
      %p104 = por %p102, %p103
      %p105 = scmp.ne.s32.totalorder %s94, %s95
      %p106 = scmp.eq.s32.totalorder %s48, 0
      %p107 = por %p105, %p106
      %p108 = scmp.ne.s32.totalorder %s94, %s95
      %p109 = scmp.eq.s32.totalorder %s49, 5
      %p110 = por %p108, %p109
      %p112 = scmp.ne.s32.totalorder %s95, %s111
      %p113 = scmp.eq.s32.totalorder %s49, 0
      %p114 = por %p112, %p113
      %s115 = ssub.s32 %s51, %s58
      %p116 = scmp.eq.s32.totalorder %s115, 0
      %s118 = sadd.s32 %s117, 1
      %s119 = scalar_select %p116, %s117, %s118
      %p122 = pneg %p116
      %p123 = scmp.eq.s32.totalorder %s43, 5
      %p124 = por %p122, %p123
      %p125 = scmp.ne.s32.totalorder %s117, %s120
      %p126 = scmp.eq.s32.totalorder %s43, 0
      %p127 = por %p125, %p126
      %p128 = scmp.ne.s32.totalorder %s117, %s120
      %p129 = scmp.eq.s32.totalorder %s48, 5
      %p130 = por %p128, %p129
      %p131 = scmp.ne.s32.totalorder %s120, %s121
      %p132 = scmp.eq.s32.totalorder %s48, 0
      %p133 = por %p131, %p132
      %p134 = scmp.ne.s32.totalorder %s120, %s121
      %p135 = scmp.eq.s32.totalorder %s49, 5
      %p136 = por %p134, %p135
      %p138 = scmp.ne.s32.totalorder %s121, %s137
      %p139 = scmp.eq.s32.totalorder %s49, 0
      %p140 = por %p138, %p139
      %s141 = ssub.s32 %s51, %s58
      %p142 = scmp.eq.s32.totalorder %s141, 0
      %s144 = sadd.s32 %s143, 1
      %s145 = scalar_select %p142, %s143, %s144
      %p148 = pneg %p142
      %p149 = scmp.eq.s32.totalorder %s43, 5
      %p150 = por %p148, %p149
      %p151 = scmp.ne.s32.totalorder %s143, %s146
      %p152 = scmp.eq.s32.totalorder %s43, 0
      %p153 = por %p151, %p152
      %p154 = scmp.ne.s32.totalorder %s143, %s146
      %p155 = scmp.eq.s32.totalorder %s48, 5
      %p156 = por %p154, %p155
      %p157 = scmp.ne.s32.totalorder %s146, %s147
      %p158 = scmp.eq.s32.totalorder %s48, 0
      %p159 = por %p157, %p158
      %p160 = scmp.ne.s32.totalorder %s146, %s147
      %p161 = scmp.eq.s32.totalorder %s49, 5
      %p162 = por %p160, %p161
      %p164 = scmp.ne.s32.totalorder %s147, %s163
      %p165 = scmp.eq.s32.totalorder %s49, 0
      %p166 = por %p164, %p165
      %s167 = ssub.s32 %s51, %s58
      %p168 = scmp.eq.s32.totalorder %s167, 0
      %s170 = sadd.s32 %s169, 1
      %s171 = scalar_select %p168, %s169, %s170
      %p174 = pneg %p168
      %p175 = scmp.eq.s32.totalorder %s43, 5
      %p176 = por %p174, %p175
      %p177 = scmp.ne.s32.totalorder %s169, %s172
      %p178 = scmp.eq.s32.totalorder %s43, 0
      %p179 = por %p177, %p178
      %p180 = scmp.ne.s32.totalorder %s169, %s172
      %p181 = scmp.eq.s32.totalorder %s48, 5
      %p182 = por %p180, %p181
      %p183 = scmp.ne.s32.totalorder %s172, %s173
      %p184 = scmp.eq.s32.totalorder %s48, 0
      %p185 = por %p183, %p184
      %p186 = scmp.ne.s32.totalorder %s172, %s173
      %p187 = scmp.eq.s32.totalorder %s49, 5
      %p188 = por %p186, %p187
      %p190 = scmp.ne.s32.totalorder %s173, %s189
      %p191 = scmp.eq.s32.totalorder %s49, 0
      %p192 = por %p190, %p191
      %s193 = ssub.s32 %s51, %s58
      %p194 = scmp.eq.s32.totalorder %s193, 0
      %s196 = sadd.s32 %s195, 1
      %s197 = scalar_select %p194, %s195, %s196
      %p200 = pneg %p194
      %p201 = scmp.eq.s32.totalorder %s43, 5
      %p202 = por %p200, %p201
      %p203 = scmp.ne.s32.totalorder %s195, %s198
      %p204 = scmp.eq.s32.totalorder %s43, 0
      %p205 = por %p203, %p204
      %p206 = scmp.ne.s32.totalorder %s195, %s198
      %p207 = scmp.eq.s32.totalorder %s48, 5
      %p208 = por %p206, %p207
      %p209 = scmp.ne.s32.totalorder %s198, %s199
      %p210 = scmp.eq.s32.totalorder %s48, 0
      %p211 = por %p209, %p210
      %p212 = scmp.ne.s32.totalorder %s198, %s199
      %p213 = scmp.eq.s32.totalorder %s49, 5
      %p214 = por %p212, %p213
      %p216 = scmp.ne.s32.totalorder %s199, %s215
      %p217 = scmp.eq.s32.totalorder %s49, 0
      %p218 = por %p216, %p217
      %s219 = ssub.s32 %s51, %s58
      %p220 = scmp.eq.s32.totalorder %s219, 0
      %s222 = sadd.s32 %s221, 1
      %s223 = scalar_select %p220, %s221, %s222
      %p226 = pneg %p220
      %p227 = scmp.eq.s32.totalorder %s43, 5
      %p228 = por %p226, %p227
      %p229 = scmp.ne.s32.totalorder %s221, %s224
      %p230 = scmp.eq.s32.totalorder %s43, 0
      %p231 = por %p229, %p230
      %p232 = scmp.ne.s32.totalorder %s221, %s224
      %p233 = scmp.eq.s32.totalorder %s48, 5
      %p234 = por %p232, %p233
      %p235 = scmp.ne.s32.totalorder %s224, %s225
      %p236 = scmp.eq.s32.totalorder %s48, 0
      %p237 = por %p235, %p236
      %p238 = scmp.ne.s32.totalorder %s224, %s225
      %p239 = scmp.eq.s32.totalorder %s49, 5
      %p240 = por %p238, %p239
      %p242 = scmp.ne.s32.totalorder %s225, %s241
      %p243 = scmp.eq.s32.totalorder %s49, 0
      %p244 = por %p242, %p243
      %s245 = ssub.s32 %s51, %s58
      %p246 = scmp.eq.s32.totalorder %s245, 0
      %s248 = sadd.s32 %s247, 1
      %s249 = scalar_select %p246, %s247, %s248
      %p252 = pneg %p246
      %p253 = scmp.eq.s32.totalorder %s43, 5
      %p254 = por %p252, %p253
      %p255 = scmp.ne.s32.totalorder %s247, %s250
      %p256 = scmp.eq.s32.totalorder %s43, 0
      %p257 = por %p255, %p256
      %p258 = scmp.ne.s32.totalorder %s247, %s250
      %p259 = scmp.eq.s32.totalorder %s48, 5
      %p260 = por %p258, %p259
      %p261 = scmp.ne.s32.totalorder %s250, %s251
      %p262 = scmp.eq.s32.totalorder %s48, 0
      %p263 = por %p261, %p262
      %p264 = scmp.ne.s32.totalorder %s250, %s251
      %p265 = scmp.eq.s32.totalorder %s49, 5
      %p266 = por %p264, %p265
      %p268 = scmp.ne.s32.totalorder %s251, %s267
      %p269 = scmp.eq.s32.totalorder %s49, 0
      %p270 = por %p268, %p269
      %s271 = ssub.s32 %s51, %s58
      %p272 = scmp.eq.s32.totalorder %s271, 0
      %s274 = sadd.s32 %s273, 1
      %s275 = scalar_select %p272, %s273, %s274
      %p278 = pneg %p272
      %p279 = scmp.eq.s32.totalorder %s43, 5
      %p280 = por %p278, %p279
      %p281 = scmp.ne.s32.totalorder %s273, %s276
      %p282 = scmp.eq.s32.totalorder %s43, 0
      %p283 = por %p281, %p282
      %p284 = scmp.ne.s32.totalorder %s273, %s276
      %p285 = scmp.eq.s32.totalorder %s48, 5
      %p286 = por %p284, %p285
      %p287 = scmp.ne.s32.totalorder %s276, %s277
      %p288 = scmp.eq.s32.totalorder %s48, 0
      %p289 = por %p287, %p288
      %p290 = scmp.ne.s32.totalorder %s276, %s277
      %p291 = scmp.eq.s32.totalorder %s49, 5
      %p292 = por %p290, %p291
      %p294 = scmp.ne.s32.totalorder %s277, %s293
      %p295 = scmp.eq.s32.totalorder %s49, 0
      %p296 = por %p294, %p295
      %s297 = ssub.s32 %s51, %s58
      %p298 = scmp.eq.s32.totalorder %s297, 0
      %s300 = sadd.s32 %s299, 1
      %s301 = scalar_select %p298, %s299, %s300
      %p304 = pneg %p298
      %p305 = scmp.eq.s32.totalorder %s43, 5
      %p306 = por %p304, %p305
      %p307 = scmp.ne.s32.totalorder %s299, %s302
      %p308 = scmp.eq.s32.totalorder %s43, 0
      %p309 = por %p307, %p308
      %p310 = scmp.ne.s32.totalorder %s299, %s302
      %p311 = scmp.eq.s32.totalorder %s48, 5
      %p312 = por %p310, %p311
      %p313 = scmp.ne.s32.totalorder %s302, %s303
      %p314 = scmp.eq.s32.totalorder %s48, 0
      %p315 = por %p313, %p314
      %p316 = scmp.ne.s32.totalorder %s302, %s303
      %p317 = scmp.eq.s32.totalorder %s49, 5
      %p318 = por %p316, %p317
      %p320 = scmp.ne.s32.totalorder %s303, %s319
      %p321 = scmp.eq.s32.totalorder %s49, 0
      %p322 = por %p320, %p321
      %s323 = ssub.s32 %s51, %s58
      %p324 = scmp.eq.s32.totalorder %s323, 0
      %s326 = sadd.s32 %s325, 1
      %s327 = scalar_select %p324, %s325, %s326
      %p330 = pneg %p324
      %p331 = scmp.eq.s32.totalorder %s43, 5
      %p332 = por %p330, %p331
      %p333 = scmp.ne.s32.totalorder %s325, %s328
      %p334 = scmp.eq.s32.totalorder %s43, 0
      %p335 = por %p333, %p334
      %p336 = scmp.ne.s32.totalorder %s325, %s328
      %p337 = scmp.eq.s32.totalorder %s48, 5
      %p338 = por %p336, %p337
      %p339 = scmp.ne.s32.totalorder %s328, %s329
      %p340 = scmp.eq.s32.totalorder %s48, 0
      %p341 = por %p339, %p340
      %p342 = scmp.ne.s32.totalorder %s328, %s329
      %p343 = scmp.eq.s32.totalorder %s49, 5
      %p344 = por %p342, %p343
      %p346 = scmp.ne.s32.totalorder %s329, %s345
      %p347 = scmp.eq.s32.totalorder %s49, 0
      %p348 = por %p346, %p347
      %s349 = ssub.s32 %s51, %s58
      %p350 = scmp.eq.s32.totalorder %s349, 0
      %s352 = sadd.s32 %s351, 1
      %s353 = scalar_select %p350, %s351, %s352
      %p356 = pneg %p350
      %p357 = scmp.eq.s32.totalorder %s43, 5
      %p358 = por %p356, %p357
      %p359 = scmp.ne.s32.totalorder %s351, %s354
      %p360 = scmp.eq.s32.totalorder %s43, 0
      %p361 = por %p359, %p360
      %p362 = scmp.ne.s32.totalorder %s351, %s354
      %p363 = scmp.eq.s32.totalorder %s48, 5
      %p364 = por %p362, %p363
      %p365 = scmp.ne.s32.totalorder %s354, %s355
      %p366 = scmp.eq.s32.totalorder %s48, 0
      %p367 = por %p365, %p366
      %p368 = scmp.ne.s32.totalorder %s354, %s355
      %p369 = scmp.eq.s32.totalorder %s49, 5
      %p370 = por %p368, %p369
      %p372 = scmp.ne.s32.totalorder %s355, %s371
      %p373 = scmp.eq.s32.totalorder %s49, 0
      %p374 = por %p372, %p373
      %s375 = ssub.s32 %s51, %s58
      %p376 = scmp.eq.s32.totalorder %s375, 0
      %s378 = sadd.s32 %s377, 1
      %s379 = scalar_select %p376, %s377, %s378
      %p382 = pneg %p376
      %p383 = scmp.eq.s32.totalorder %s43, 5
      %p384 = por %p382, %p383
      %p385 = scmp.ne.s32.totalorder %s377, %s380
      %p386 = scmp.eq.s32.totalorder %s43, 0
      %p387 = por %p385, %p386
      %p388 = scmp.ne.s32.totalorder %s377, %s380
      %p389 = scmp.eq.s32.totalorder %s48, 5
      %p390 = por %p388, %p389
      %p391 = scmp.ne.s32.totalorder %s380, %s381
      %p392 = scmp.eq.s32.totalorder %s48, 0
      %p393 = por %p391, %p392
      %p394 = scmp.ne.s32.totalorder %s380, %s381
      %p395 = scmp.eq.s32.totalorder %s49, 5
      %p396 = por %p394, %p395
      %p398 = scmp.ne.s32.totalorder %s381, %s397
      %p399 = scmp.eq.s32.totalorder %s49, 0
      %p400 = por %p398, %p399
      %s401 = ssub.s32 %s50, %s62
      %p402 = scmp.eq.s32.totalorder %s401, 0
      %s404 = sadd.s32 %s403, 1
      %s405 = scalar_select %p402, %s403, %s404
      %p408 = pneg %p402
      %p409 = scmp.eq.s32.totalorder %s43, 5
      %p410 = por %p408, %p409
      %p411 = scmp.ne.s32.totalorder %s403, %s406
      %p412 = scmp.eq.s32.totalorder %s43, 0
      %p413 = por %p411, %p412
      %p414 = scmp.ne.s32.totalorder %s403, %s406
      %p415 = scmp.eq.s32.totalorder %s48, 5
      %p416 = por %p414, %p415
      %p417 = scmp.ne.s32.totalorder %s406, %s407
      %p418 = scmp.eq.s32.totalorder %s48, 0
      %p419 = por %p417, %p418
      %p420 = scmp.ne.s32.totalorder %s406, %s407
      %p421 = scmp.eq.s32.totalorder %s49, 5
      %p422 = por %p420, %p421
      %p424 = scmp.ne.s32.totalorder %s407, %s423
      %p425 = scmp.eq.s32.totalorder %s49, 0
      %p426 = por %p424, %p425
      %p427 = scmp.le.s32.totalorder 1, %s43
      %p428 = scmp.lt.s32.totalorder %s43, 7
      %p429 = pnand %p427, %p428
      %p430 = pneg %p429
      // Predicated region
      $region9: #{tpu_custom_call.1} parent=5 // pred_check
        _
      $region10: #{tpu_custom_call.1} parent=5 // pred_check_branch
        %432 = sbr.rel (%p429) target = $region12
      $region11: #{tpu_custom_call.1} parent=5 // pred_region
        %s433 = ssub.s32 %s43, 1
      $region12: #{tpu_custom_call.1} parent=5 // pred_fallthru
        _
      %p434 = scmp.lt.s32.totalorder %s43, 6
      // Predicated region
      $region13: #{tpu_custom_call.1} parent=5 // pred_check
        %p435 = pneg %p434
      $region14: #{tpu_custom_call.1} parent=5 // pred_check_branch
        %437 = sbr.rel (%p435) target = $region16
      $region15: #{tpu_custom_call.1} parent=5 // pred_region
        // Predicated region
        $region17: #{tpu_custom_call.1} parent=15 // pred_check
          %p438 = pneg %p75
        $region18: #{tpu_custom_call.1} parent=15 // pred_check_branch
          %440 = sbr.rel (%p438) target = $region20
        $region19: #{tpu_custom_call.1} parent=15 // pred_region
          %s441 = sand.u32 %s65, 1
          %s442 = scalar_lea.sflag [#allocation4], %s441
          %s443 = sand.u32 %s65, 1
          %s444 = smul.addr %s443, 8
          %s445 = scalar_lea.vmem [#allocation3], %s444
          %s447 = ssub.s32 128, 128
          %448 = vsyncadd %s442, %s447
          %s449 = smul.addr %s50, 128
          %s450 = scalar_lea.hbm %s0, %s449
          %s452 = sshll.u32 %s445, 4
          %s453 = int_to_ptr.vmem [resolvable:$true] %s452
          %455 = dma.hbm_to_vmem [thread:$0]  %s450, 128, %s453, %s442
        $region20: #{tpu_custom_call.1} parent=15 // pred_fallthru
          _
        // Predicated region
        $region21: #{tpu_custom_call.1} parent=15 // pred_check
          %p456 = pneg %p101
        $region22: #{tpu_custom_call.1} parent=15 // pred_check_branch
          %458 = sbr.rel (%p456) target = $region24
        $region23: #{tpu_custom_call.1} parent=15 // pred_region
          %s459 = sand.u32 %s43, 1
          %s460 = scalar_lea.sflag [#allocation7], %s459
          %s461 = sand.u32 %s91, 1
          %s462 = smul.addr %s461, 48
          %s463 = scalar_lea.vmem [#allocation6], %s462
          %s465 = ssub.s32 768, 768
          %466 = vsyncadd %s460, %s465
          %s467 = smul.addr %s51, 12
          %s468 = smul.addr %s467, 64
          %s469 = scalar_lea.hbm %s1, %s468
          %s470 = sshll.u32 %s463, 4
          %s471 = int_to_ptr.vmem [resolvable:$true] %s470
          %476 = dma.hbm_to_vmem [thread:$0]  %s469, 768, %s471, %s460, 128, 128, 8
        $region24: #{tpu_custom_call.1} parent=15 // pred_fallthru
          _
        // Predicated region
        $region25: #{tpu_custom_call.1} parent=15 // pred_check
          %p477 = pneg %p127
        $region26: #{tpu_custom_call.1} parent=15 // pred_check_branch
          %479 = sbr.rel (%p477) target = $region28
        $region27: #{tpu_custom_call.1} parent=15 // pred_region
          %s480 = sand.u32 %s43, 1
          %s481 = scalar_lea.sflag [#allocation7], %s480
          %s482 = sand.u32 %s117, 1
          %s483 = smul.addr %s482, 2
          %s484 = scalar_lea.vmem [#allocation8], %s483
          %s486 = ssub.s32 32, 32
          %487 = vsyncadd %s481, %s486
          %s488 = smul.addr %s51, 2
          %s489 = smul.addr %s488, 16
          %s490 = scalar_lea.hbm %s2, %s489
          %s492 = sshll.u32 %s484, 4
          %s493 = int_to_ptr.vmem [resolvable:$true] %s492
          %495 = dma.hbm_to_vmem [thread:$0]  %s490, 32, %s493, %s481
        $region28: #{tpu_custom_call.1} parent=15 // pred_fallthru
          _
        // Predicated region
        $region29: #{tpu_custom_call.1} parent=15 // pred_check
          %p496 = pneg %p153
        $region30: #{tpu_custom_call.1} parent=15 // pred_check_branch
          %498 = sbr.rel (%p496) target = $region32
        $region31: #{tpu_custom_call.1} parent=15 // pred_region
          %s499 = sand.u32 %s43, 1
          %s500 = scalar_lea.sflag [#allocation10], %s499
          %s501 = sand.u32 %s143, 1
          %s502 = smul.addr %s501, 24
          %s503 = scalar_lea.vmem [#allocation9], %s502
          %s505 = ssub.s32 384, 384
          %506 = vsyncadd %s500, %s505
          %s507 = smul.addr %s51, 6
          %s508 = smul.addr %s507, 64
          %s509 = scalar_lea.hbm %s3, %s508
          %s510 = sshll.u32 %s503, 4
          %s511 = int_to_ptr.vmem [resolvable:$true] %s510
          %516 = dma.hbm_to_vmem [thread:$0]  %s509, 384, %s511, %s500, 64, 64, 4
        $region32: #{tpu_custom_call.1} parent=15 // pred_fallthru
          _
        // Predicated region
        $region33: #{tpu_custom_call.1} parent=15 // pred_check
          %p517 = pneg %p179
        $region34: #{tpu_custom_call.1} parent=15 // pred_check_branch
          %519 = sbr.rel (%p517) target = $region36
        $region35: #{tpu_custom_call.1} parent=15 // pred_region
          %s520 = sand.u32 %s43, 1
          %s521 = scalar_lea.sflag [#allocation10], %s520
          %s522 = sand.u32 %s169, 1
          %s523 = scalar_lea.vmem [#allocation11], %s522
          %s525 = ssub.s32 16, 16
          %526 = vsyncadd %s521, %s525
          %s527 = smul.addr %s51, 16
          %s528 = scalar_lea.hbm %s4, %s527
          %s530 = sshll.u32 %s523, 4
          %s531 = int_to_ptr.vmem [resolvable:$true] %s530
          %533 = dma.hbm_to_vmem [thread:$0]  %s528, 16, %s531, %s521
        $region36: #{tpu_custom_call.1} parent=15 // pred_fallthru
          _
        // Predicated region
        $region37: #{tpu_custom_call.1} parent=15 // pred_check
          %p534 = pneg %p205
        $region38: #{tpu_custom_call.1} parent=15 // pred_check_branch
          %536 = sbr.rel (%p534) target = $region40
        $region39: #{tpu_custom_call.1} parent=15 // pred_region
          %s537 = sand.u32 %s43, 1
          %s538 = scalar_lea.sflag [#allocation13], %s537
          %s539 = sand.u32 %s195, 1
          %s540 = smul.addr %s539, 24
          %s541 = scalar_lea.vmem [#allocation12], %s540
          %s543 = ssub.s32 384, 384
          %544 = vsyncadd %s538, %s543
          %s545 = smul.addr %s51, 6
          %s546 = smul.addr %s545, 64
          %s547 = scalar_lea.hbm %s5, %s546
          %s548 = sshll.u32 %s541, 4
          %s549 = int_to_ptr.vmem [resolvable:$true] %s548
          %554 = dma.hbm_to_vmem [thread:$0]  %s547, 384, %s549, %s538, 64, 64, 4
        $region40: #{tpu_custom_call.1} parent=15 // pred_fallthru
          _
        // Predicated region
        $region41: #{tpu_custom_call.1} parent=15 // pred_check
          %p555 = pneg %p231
        $region42: #{tpu_custom_call.1} parent=15 // pred_check_branch
          %557 = sbr.rel (%p555) target = $region44
        $region43: #{tpu_custom_call.1} parent=15 // pred_region
          %s558 = sand.u32 %s43, 1
          %s559 = scalar_lea.sflag [#allocation13], %s558
          %s560 = sand.u32 %s221, 1
          %s561 = scalar_lea.vmem [#allocation14], %s560
          %s563 = ssub.s32 16, 16
          %564 = vsyncadd %s559, %s563
          %s565 = smul.addr %s51, 16
          %s566 = scalar_lea.hbm %s6, %s565
          %s568 = sshll.u32 %s561, 4
          %s569 = int_to_ptr.vmem [resolvable:$true] %s568
          %571 = dma.hbm_to_vmem [thread:$0]  %s566, 16, %s569, %s559
        $region44: #{tpu_custom_call.1} parent=15 // pred_fallthru
          _
        // Predicated region
        $region45: #{tpu_custom_call.1} parent=15 // pred_check
          %p572 = pneg %p257
        $region46: #{tpu_custom_call.1} parent=15 // pred_check_branch
          %574 = sbr.rel (%p572) target = $region48
        $region47: #{tpu_custom_call.1} parent=15 // pred_region
          %s575 = sand.u32 %s43, 1
          %s576 = scalar_lea.sflag [#allocation16], %s575
          %s577 = sand.u32 %s247, 1
          %s578 = smul.addr %s577, 48
          %s579 = scalar_lea.vmem [#allocation15], %s578
          %s581 = ssub.s32 768, 768
          %582 = vsyncadd %s576, %s581
          %s583 = smul.addr %s51, 12
          %s584 = smul.addr %s583, 64
          %s585 = scalar_lea.hbm %s7, %s584
          %s586 = sshll.u32 %s579, 4
          %s587 = int_to_ptr.vmem [resolvable:$true] %s586
          %592 = dma.hbm_to_vmem [thread:$0]  %s585, 768, %s587, %s576, 64, 64, 4
        $region48: #{tpu_custom_call.1} parent=15 // pred_fallthru
          _
        // Predicated region
        $region49: #{tpu_custom_call.1} parent=15 // pred_check
          %p593 = pneg %p283
        $region50: #{tpu_custom_call.1} parent=15 // pred_check_branch
          %595 = sbr.rel (%p593) target = $region52
        $region51: #{tpu_custom_call.1} parent=15 // pred_region
          %s596 = sand.u32 %s43, 1
          %s597 = scalar_lea.sflag [#allocation16], %s596
          %s598 = sand.u32 %s273, 1
          %s599 = scalar_lea.vmem [#allocation17], %s598
          %s601 = ssub.s32 16, 16
          %602 = vsyncadd %s597, %s601
          %s603 = smul.addr %s51, 16
          %s604 = scalar_lea.hbm %s8, %s603
          %s606 = sshll.u32 %s599, 4
          %s607 = int_to_ptr.vmem [resolvable:$true] %s606
          %609 = dma.hbm_to_vmem [thread:$0]  %s604, 16, %s607, %s597
        $region52: #{tpu_custom_call.1} parent=15 // pred_fallthru
          _
        // Predicated region
        $region53: #{tpu_custom_call.1} parent=15 // pred_check
          %p610 = pneg %p309
        $region54: #{tpu_custom_call.1} parent=15 // pred_check_branch
          %612 = sbr.rel (%p610) target = $region56
        $region55: #{tpu_custom_call.1} parent=15 // pred_region
          %s613 = sand.u32 %s43, 1
          %s614 = scalar_lea.sflag [#allocation19], %s613
          %s615 = sand.u32 %s299, 1
          %s616 = scalar_lea.vmem [#allocation18], %s615
          %s618 = ssub.s32 16, 16
          %619 = vsyncadd %s614, %s618
          %s620 = smul.addr %s51, 16
          %s621 = scalar_lea.hbm %s9, %s620
          %s623 = sshll.u32 %s616, 4
          %s624 = int_to_ptr.vmem [resolvable:$true] %s623
          %626 = dma.hbm_to_vmem [thread:$0]  %s621, 16, %s624, %s614
        $region56: #{tpu_custom_call.1} parent=15 // pred_fallthru
          _
        // Predicated region
        $region57: #{tpu_custom_call.1} parent=15 // pred_check
          %p627 = pneg %p335
        $region58: #{tpu_custom_call.1} parent=15 // pred_check_branch
          %629 = sbr.rel (%p627) target = $region60
        $region59: #{tpu_custom_call.1} parent=15 // pred_region
          %s630 = sand.u32 %s43, 1
          %s631 = scalar_lea.sflag [#allocation19], %s630
          %s632 = sand.u32 %s325, 1
          %s633 = scalar_lea.vmem [#allocation20], %s632
          %s635 = ssub.s32 16, 16
          %636 = vsyncadd %s631, %s635
          %s637 = smul.addr %s51, 16
          %s638 = scalar_lea.hbm %s10, %s637
          %s640 = sshll.u32 %s633, 4
          %s641 = int_to_ptr.vmem [resolvable:$true] %s640
          %643 = dma.hbm_to_vmem [thread:$0]  %s638, 16, %s641, %s631
        $region60: #{tpu_custom_call.1} parent=15 // pred_fallthru
          _
        // Predicated region
        $region61: #{tpu_custom_call.1} parent=15 // pred_check
          %p644 = pneg %p361
        $region62: #{tpu_custom_call.1} parent=15 // pred_check_branch
          %646 = sbr.rel (%p644) target = $region64
        $region63: #{tpu_custom_call.1} parent=15 // pred_region
          %s647 = sand.u32 %s43, 1
          %s648 = scalar_lea.sflag [#allocation22], %s647
          %s649 = sand.u32 %s351, 1
          %s650 = scalar_lea.vmem [#allocation21], %s649
          %s652 = ssub.s32 16, 16
          %653 = vsyncadd %s648, %s652
          %s654 = smul.addr %s51, 16
          %s655 = scalar_lea.hbm %s11, %s654
          %s657 = sshll.u32 %s650, 4
          %s658 = int_to_ptr.vmem [resolvable:$true] %s657
          %660 = dma.hbm_to_vmem [thread:$0]  %s655, 16, %s658, %s648
        $region64: #{tpu_custom_call.1} parent=15 // pred_fallthru
          _
        // Predicated region
        $region65: #{tpu_custom_call.1} parent=15 // pred_check
          %p661 = pneg %p387
        $region66: #{tpu_custom_call.1} parent=15 // pred_check_branch
          %663 = sbr.rel (%p661) target = $region68
        $region67: #{tpu_custom_call.1} parent=15 // pred_region
          %s664 = sand.u32 %s43, 1
          %s665 = scalar_lea.sflag [#allocation22], %s664
          %s666 = sand.u32 %s377, 1
          %s667 = scalar_lea.vmem [#allocation23], %s666
          %s669 = ssub.s32 16, 16
          %670 = vsyncadd %s665, %s669
          %s671 = smul.addr %s51, 16
          %s672 = scalar_lea.hbm %s12, %s671
          %s674 = sshll.u32 %s667, 4
          %s675 = int_to_ptr.vmem [resolvable:$true] %s674
          %677 = dma.hbm_to_vmem [thread:$0]  %s672, 16, %s675, %s665
        $region68: #{tpu_custom_call.1} parent=15 // pred_fallthru
          _
      $region16: #{tpu_custom_call.1} parent=5 // pred_fallthru
        _
      %p678 = scmp.le.s32.totalorder 1, %s43
      %p679 = scmp.lt.s32.totalorder %s43, 7
      %p680 = pnand %p678, %p679
      %p681 = pneg %p680
      // Predicated region
      $region69: #{tpu_custom_call.1} parent=5 // pred_check
        _
      $region70: #{tpu_custom_call.1} parent=5 // pred_check_branch
        %683 = sbr.rel (%p680) target = $region72
      $region71: #{tpu_custom_call.1} parent=5 // pred_region
        %s684 = ssub.s32 %s43, 1
        %s685 = sand.u32 %s68, 1
        %s686 = scalar_lea.sflag [#allocation4], %s685
        %s687 = sand.u32 %s68, 1
        %s688 = smul.addr %s687, 8
        %s689 = scalar_lea.vmem [#allocation3], %s688
        // Predicated region
        $region73: #{tpu_custom_call.1} parent=71 // pred_check
          %p690 = pneg %p81
        $region74: #{tpu_custom_call.1} parent=71 // pred_check_branch
          %692 = sbr.rel (%p690) target = $region76
        $region75: #{tpu_custom_call.1} parent=71 // pred_region
          %693 = dma.done %s686, 128
        $region76: #{tpu_custom_call.1} parent=71 // pred_fallthru
          _
        %s694 = sand.u32 %s48, 1
        %s695 = scalar_lea.sflag [#allocation7], %s694
        %s696 = sand.u32 %s94, 1
        %s697 = smul.addr %s696, 48
        %s698 = scalar_lea.vmem [#allocation6], %s697
        // Predicated region
        $region77: #{tpu_custom_call.1} parent=71 // pred_check
          %p699 = pneg %p107
        $region78: #{tpu_custom_call.1} parent=71 // pred_check_branch
          %701 = sbr.rel (%p699) target = $region80
        $region79: #{tpu_custom_call.1} parent=71 // pred_region
          %702 = dma.done %s695, 768
        $region80: #{tpu_custom_call.1} parent=71 // pred_fallthru
          _
        %s703 = sand.u32 %s48, 1
        %s704 = scalar_lea.sflag [#allocation7], %s703
        %s705 = sand.u32 %s120, 1
        %s706 = smul.addr %s705, 2
        %s707 = scalar_lea.vmem [#allocation8], %s706
        // Predicated region
        $region81: #{tpu_custom_call.1} parent=71 // pred_check
          %p708 = pneg %p133
        $region82: #{tpu_custom_call.1} parent=71 // pred_check_branch
          %710 = sbr.rel (%p708) target = $region84
        $region83: #{tpu_custom_call.1} parent=71 // pred_region
          %711 = dma.done %s704, 32
        $region84: #{tpu_custom_call.1} parent=71 // pred_fallthru
          _
        %s712 = sand.u32 %s48, 1
        %s713 = scalar_lea.sflag [#allocation10], %s712
        %s714 = sand.u32 %s146, 1
        %s715 = smul.addr %s714, 24
        %s716 = scalar_lea.vmem [#allocation9], %s715
        // Predicated region
        $region85: #{tpu_custom_call.1} parent=71 // pred_check
          %p717 = pneg %p159
        $region86: #{tpu_custom_call.1} parent=71 // pred_check_branch
          %719 = sbr.rel (%p717) target = $region88
        $region87: #{tpu_custom_call.1} parent=71 // pred_region
          %720 = dma.done %s713, 384
        $region88: #{tpu_custom_call.1} parent=71 // pred_fallthru
          _
        %s721 = sand.u32 %s48, 1
        %s722 = scalar_lea.sflag [#allocation10], %s721
        %s723 = sand.u32 %s172, 1
        %s724 = scalar_lea.vmem [#allocation11], %s723
        // Predicated region
        $region89: #{tpu_custom_call.1} parent=71 // pred_check
          %p725 = pneg %p185
        $region90: #{tpu_custom_call.1} parent=71 // pred_check_branch
          %727 = sbr.rel (%p725) target = $region92
        $region91: #{tpu_custom_call.1} parent=71 // pred_region
          %728 = dma.done %s722, 16
        $region92: #{tpu_custom_call.1} parent=71 // pred_fallthru
          _
        %s729 = sand.u32 %s48, 1
        %s730 = scalar_lea.sflag [#allocation13], %s729
        %s731 = sand.u32 %s198, 1
        %s732 = smul.addr %s731, 24
        %s733 = scalar_lea.vmem [#allocation12], %s732
        // Predicated region
        $region93: #{tpu_custom_call.1} parent=71 // pred_check
          %p734 = pneg %p211
        $region94: #{tpu_custom_call.1} parent=71 // pred_check_branch
          %736 = sbr.rel (%p734) target = $region96
        $region95: #{tpu_custom_call.1} parent=71 // pred_region
          %737 = dma.done %s730, 384
        $region96: #{tpu_custom_call.1} parent=71 // pred_fallthru
          _
        %s738 = sand.u32 %s48, 1
        %s739 = scalar_lea.sflag [#allocation13], %s738
        %s740 = sand.u32 %s224, 1
        %s741 = scalar_lea.vmem [#allocation14], %s740
        // Predicated region
        $region97: #{tpu_custom_call.1} parent=71 // pred_check
          %p742 = pneg %p237
        $region98: #{tpu_custom_call.1} parent=71 // pred_check_branch
          %744 = sbr.rel (%p742) target = $region100
        $region99: #{tpu_custom_call.1} parent=71 // pred_region
          %745 = dma.done %s739, 16
        $region100: #{tpu_custom_call.1} parent=71 // pred_fallthru
          _
        %s746 = sand.u32 %s48, 1
        %s747 = scalar_lea.sflag [#allocation16], %s746
        %s748 = sand.u32 %s250, 1
        %s749 = smul.addr %s748, 48
        %s750 = scalar_lea.vmem [#allocation15], %s749
        // Predicated region
        $region101: #{tpu_custom_call.1} parent=71 // pred_check
          %p751 = pneg %p263
        $region102: #{tpu_custom_call.1} parent=71 // pred_check_branch
          %753 = sbr.rel (%p751) target = $region104
        $region103: #{tpu_custom_call.1} parent=71 // pred_region
          %754 = dma.done %s747, 768
        $region104: #{tpu_custom_call.1} parent=71 // pred_fallthru
          _
        %s755 = sand.u32 %s48, 1
        %s756 = scalar_lea.sflag [#allocation16], %s755
        %s757 = sand.u32 %s276, 1
        %s758 = scalar_lea.vmem [#allocation17], %s757
        // Predicated region
        $region105: #{tpu_custom_call.1} parent=71 // pred_check
          %p759 = pneg %p289
        $region106: #{tpu_custom_call.1} parent=71 // pred_check_branch
          %761 = sbr.rel (%p759) target = $region108
        $region107: #{tpu_custom_call.1} parent=71 // pred_region
          %762 = dma.done %s756, 16
        $region108: #{tpu_custom_call.1} parent=71 // pred_fallthru
          _
        %s763 = sand.u32 %s48, 1
        %s764 = scalar_lea.sflag [#allocation19], %s763
        %s765 = sand.u32 %s302, 1
        %s766 = scalar_lea.vmem [#allocation18], %s765
        // Predicated region
        $region109: #{tpu_custom_call.1} parent=71 // pred_check
          %p767 = pneg %p315
        $region110: #{tpu_custom_call.1} parent=71 // pred_check_branch
          %769 = sbr.rel (%p767) target = $region112
        $region111: #{tpu_custom_call.1} parent=71 // pred_region
          %770 = dma.done %s764, 16
        $region112: #{tpu_custom_call.1} parent=71 // pred_fallthru
          _
        %s771 = sand.u32 %s48, 1
        %s772 = scalar_lea.sflag [#allocation19], %s771
        %s773 = sand.u32 %s328, 1
        %s774 = scalar_lea.vmem [#allocation20], %s773
        // Predicated region
        $region113: #{tpu_custom_call.1} parent=71 // pred_check
          %p775 = pneg %p341
        $region114: #{tpu_custom_call.1} parent=71 // pred_check_branch
          %777 = sbr.rel (%p775) target = $region116
        $region115: #{tpu_custom_call.1} parent=71 // pred_region
          %778 = dma.done %s772, 16
        $region116: #{tpu_custom_call.1} parent=71 // pred_fallthru
          _
        %s779 = sand.u32 %s48, 1
        %s780 = scalar_lea.sflag [#allocation22], %s779
        %s781 = sand.u32 %s354, 1
        %s782 = scalar_lea.vmem [#allocation21], %s781
        // Predicated region
        $region117: #{tpu_custom_call.1} parent=71 // pred_check
          %p783 = pneg %p367
        $region118: #{tpu_custom_call.1} parent=71 // pred_check_branch
          %785 = sbr.rel (%p783) target = $region120
        $region119: #{tpu_custom_call.1} parent=71 // pred_region
          %786 = dma.done %s780, 16
        $region120: #{tpu_custom_call.1} parent=71 // pred_fallthru
          _
        %s787 = sand.u32 %s48, 1
        %s788 = scalar_lea.sflag [#allocation22], %s787
        %s789 = sand.u32 %s380, 1
        %s790 = scalar_lea.vmem [#allocation23], %s789
        // Predicated region
        $region121: #{tpu_custom_call.1} parent=71 // pred_check
          %p791 = pneg %p393
        $region122: #{tpu_custom_call.1} parent=71 // pred_check_branch
          %793 = sbr.rel (%p791) target = $region124
        $region123: #{tpu_custom_call.1} parent=71 // pred_region
          %794 = dma.done %s788, 16
        $region124: #{tpu_custom_call.1} parent=71 // pred_fallthru
          _
        %s795 = sand.u32 %s68, 1
        %s796 = scalar_lea.sflag [#allocation4], %s795
        %s797 = sand.u32 %s68, 1
        %s798 = smul.addr %s797, 8
        %s799 = scalar_lea.vmem [#allocation3], %s798
        %p800 = pneg %p81
        %p801 = pneg %p78
        %s802 = sand.u32 %s48, 1
        %s803 = scalar_lea.sflag [#allocation7], %s802
        %s804 = sand.u32 %s94, 1
        %s805 = smul.addr %s804, 48
        %s806 = scalar_lea.vmem [#allocation6], %s805
        %p807 = pneg %p107
        %p808 = pneg %p104
        %s809 = sand.u32 %s48, 1
        %s810 = scalar_lea.sflag [#allocation7], %s809
        %s811 = sand.u32 %s120, 1
        %s812 = smul.addr %s811, 2
        %s813 = scalar_lea.vmem [#allocation8], %s812
        %p814 = pneg %p133
        %p815 = pneg %p130
        %s816 = sand.u32 %s48, 1
        %s817 = scalar_lea.sflag [#allocation10], %s816
        %s818 = sand.u32 %s146, 1
        %s819 = smul.addr %s818, 24
        %s820 = scalar_lea.vmem [#allocation9], %s819
        %p821 = pneg %p159
        %p822 = pneg %p156
        %s823 = sand.u32 %s48, 1
        %s824 = scalar_lea.sflag [#allocation10], %s823
        %s825 = sand.u32 %s172, 1
        %s826 = scalar_lea.vmem [#allocation11], %s825
        %p827 = pneg %p185
        %p828 = pneg %p182
        %s829 = sand.u32 %s48, 1
        %s830 = scalar_lea.sflag [#allocation13], %s829
        %s831 = sand.u32 %s198, 1
        %s832 = smul.addr %s831, 24
        %s833 = scalar_lea.vmem [#allocation12], %s832
        %p834 = pneg %p211
        %p835 = pneg %p208
        %s836 = sand.u32 %s48, 1
        %s837 = scalar_lea.sflag [#allocation13], %s836
        %s838 = sand.u32 %s224, 1
        %s839 = scalar_lea.vmem [#allocation14], %s838
        %p840 = pneg %p237
        %p841 = pneg %p234
        %s842 = sand.u32 %s48, 1
        %s843 = scalar_lea.sflag [#allocation16], %s842
        %s844 = sand.u32 %s250, 1
        %s845 = smul.addr %s844, 48
        %s846 = scalar_lea.vmem [#allocation15], %s845
        %p847 = pneg %p263
        %p848 = pneg %p260
        %s849 = sand.u32 %s48, 1
        %s850 = scalar_lea.sflag [#allocation16], %s849
        %s851 = sand.u32 %s276, 1
        %s852 = scalar_lea.vmem [#allocation17], %s851
        %p853 = pneg %p289
        %p854 = pneg %p286
        %s855 = sand.u32 %s48, 1
        %s856 = scalar_lea.sflag [#allocation19], %s855
        %s857 = sand.u32 %s302, 1
        %s858 = scalar_lea.vmem [#allocation18], %s857
        %p859 = pneg %p315
        %p860 = pneg %p312
        %s861 = sand.u32 %s48, 1
        %s862 = scalar_lea.sflag [#allocation19], %s861
        %s863 = sand.u32 %s328, 1
        %s864 = scalar_lea.vmem [#allocation20], %s863
        %p865 = pneg %p341
        %p866 = pneg %p338
        %s867 = sand.u32 %s48, 1
        %s868 = scalar_lea.sflag [#allocation22], %s867
        %s869 = sand.u32 %s354, 1
        %s870 = scalar_lea.vmem [#allocation21], %s869
        %p871 = pneg %p367
        %p872 = pneg %p364
        %s873 = sand.u32 %s48, 1
        %s874 = scalar_lea.sflag [#allocation22], %s873
        %s875 = sand.u32 %s380, 1
        %s876 = scalar_lea.vmem [#allocation23], %s875
        %p877 = pneg %p393
        %p878 = pneg %p390
        %p879 = pneg %p419
        %p880 = pneg %p416
        %s881 = sand.u32 %s406, 1
        %s882 = scalar_lea.sflag [#allocation5], %s881
        %s883 = sand.u32 %s406, 1
        %s884 = smul.addr %s883, 8
        %s885 = scalar_lea.vmem [#allocation24], %s884
        %p887 = scmp.eq.s32.totalorder %s53, 0
        // Predicated region
        $region125: #{tpu_custom_call.1} parent=71 // pred_check
          %p888 = pneg %p887
        $region126: #{tpu_custom_call.1} parent=71 // pred_check_branch
          %890 = sbr.rel (%p888) target = $region128
        $region127: #{tpu_custom_call.1} parent=71 // pred_region
          %v891 = vld [vmem:[%s689] sm:$0xff]
          %vm892 = vcmask 392192
          %893 = vst.msk [vmem:[#allocation2] sm:$0xff] %vm892, %v891
        $region128: #{tpu_custom_call.1} parent=71 // pred_fallthru
          _
        %v894 = vld [vmem:[#allocation2] sm:$0xff]
        %v895 = vpack.c.bf16 %v894, %v894
        %v896 = vld [vmem:[%s698] sm:$0xff]
        %v897 = vld [vmem:[%s698 + $0x8] sm:$0xff]
        %v898 = vld [vmem:[%s698 + $0x10] sm:$0xff]
        %v899 = vld [vmem:[%s698 + $0x18] sm:$0xff]
        %v900 = vld [vmem:[%s698 + $0x20] sm:$0xff]
        %v901 = vld [vmem:[%s698 + $0x28] sm:$0xff]
        %v902 = vld [vmem:[%s707] sm:$0x3]
        %v904 = vlaneseq
        %v905 = vshrl.u32 %v904, 7
        %v906 = vsub.s32 0, %v905
        %v907 = vrot.slane %v902, %v906
        %v908 = vlaneseq
        %v909 = vshrl.u32 %v908, 7
        %v910 = vsub.s32 1, %v909
        %v911 = vrot.slane %v902, %v910
        %v920 = vunpack.c.l.b16 %v896
        %v921 = vunpack.c.h.b16 %v896
        %v922 = vunpack.c.l.b16 %v897
        %v923 = vunpack.c.h.b16 %v897
        %v924 = vunpack.c.l.b16 %v898
        %v925 = vunpack.c.h.b16 %v898
        %v926 = vunpack.c.l.b16 %v899
        %v927 = vunpack.c.h.b16 %v899
        %v928 = vunpack.c.l.b16 %v900
        %v929 = vunpack.c.h.b16 %v900
        %v930 = vunpack.c.l.b16 %v901
        %v931 = vunpack.c.h.b16 %v901
        %v932 = vpack.c.b16 %v922, %v920
        %v933 = vpack.c.b16 %v923, %v921
        %v934 = vpack.c.b16 %v926, %v924
        %v935 = vpack.c.b16 %v927, %v925
        %v936 = vpack.c.b16 %v930, %v928
        %v937 = vpack.c.b16 %v931, %v929
        %vm944 = vcmask 392192
        %v946 = vsel %vm944, %v895, 0
        %948 = vmatprep.subr.bf16.mxu0 %v933
        %949 = vmatpush1.bf16.msra.mxu0 %v932
        %950 = vmatprep.subr.bf16.mxu0 %v935
        %951 = vmatpush1.bf16.msra.mxu0 %v934
        %952 = vmatprep.subr.bf16.mxu0 %v937
        %953 = vmatpush1.bf16.msra.mxu0 %v936
        %954 = vmatprep.subr.bf16.mxu0 0
        %955 = vmatpush1.bf16.msra.mxu0 0
        %956 = vmatprep.subr.bf16.mxu0 0
        %957 = vmatpush1.bf16.msra.mxu0 0
        %958 = vmatprep.subr.bf16.mxu0 0
        %959 = vmatpush1.bf16.msra.mxu0 0
        %960 = vmatprep.subr.bf16.mxu0 0
        %961 = vmatpush1.bf16.msra.mxu0 0
        %962 = vmatprep.subr.bf16.mxu0 0
        %963 = vmatpush1.bf16.msra.mxu0 0
        %964 = vmatprep.subr.bf16.mxu0 0
        %965 = vmatpush1.bf16.msra.mxu0 0
        %966 = vmatprep.subr.bf16.mxu0 0
        %967 = vmatpush1.bf16.msra.mxu0 0
        %968 = vmatprep.subr.bf16.mxu0 0
        %969 = vmatpush1.bf16.msra.mxu0 0
        %970 = vmatprep.subr.bf16.mxu0 0
        %971 = vmatpush1.bf16.msra.mxu0 0
        %972 = vmatprep.subr.bf16.mxu0 0
        %973 = vmatpush1.bf16.msra.mxu0 0
        %974 = vmatprep.subr.bf16.mxu0 0
        %975 = vmatpush1.bf16.msra.mxu0 0
        %976 = vmatprep.subr.bf16.mxu0 0
        %977 = vmatpush1.bf16.msra.mxu0 0
        %978 = vmatprep.subr.bf16.mxu0 0
        %979 = vmatpush1.bf16.msra.mxu0 0
        %980 = vmatprep.mubr.bf16.mxu0 0
        %981 = vmatmul.mubr.bf16.gmra.mrb[0].mxu0 %v946
        %v982 = vpop.f32.mrb[0].mxu0
        %v983 = vadd.f32 %v907, %v982
        %v984 = vpop.f32.mrb[0].mxu0
        %v985 = vadd.f32 %v911, %v984
        %v986 = vpop.f32.mrb[0].mxu0
        %v987 = vpop.f32.mrb[0].mxu0
        %988 = vdwg.mxu0
        %990 = vrot.lane.b32.xlu0 %v983, 120
        %v991 = vpop.permute.xlu0 %990
        %993 = vrot.lane.b32.xlu0 %v983, 112
        %v994 = vpop.permute.xlu0 %993
        %996 = vrot.lane.b32.xlu0 %v983, 104
        %v997 = vpop.permute.xlu0 %996
        %999 = vrot.lane.b32.xlu0 %v983, 96
        %v1000 = vpop.permute.xlu0 %999
        %1002 = vrot.lane.b32.xlu0 %v983, 88
        %v1003 = vpop.permute.xlu0 %1002
        %v1005 = vcombine.low %v983, %v994
        %v1006 = vcombine.high %v983, %v994
        %v1008 = vunpack.c.l.s4 1983009808
        %v1009 = vunpack.c.0.s8 %v1008
        %v1010 = vlaneseq
        %v1011 = vshrl.u32 %v1010, 7
        %v1012 = vsub.s32 %v1009, %v1011
        %v1013 = vrot.slane %v1005, %v1012
        %v1015 = vunpack.c.l.s4 1983009808
        %v1016 = vunpack.c.0.s8 %v1015
        %v1017 = vlaneseq
        %v1018 = vshrl.u32 %v1017, 7
        %v1019 = vsub.s32 %v1016, %v1018
        %v1020 = vrot.slane %v1006, %v1019
        %v1021 = vcombine.low %v991, %v997
        %v1022 = vcombine.high %v991, %v997
        %v1024 = vunpack.c.l.s4 1983009808
        %v1025 = vunpack.c.0.s8 %v1024
        %v1026 = vlaneseq
        %v1027 = vshrl.u32 %v1026, 7
        %v1028 = vsub.s32 %v1025, %v1027
        %v1029 = vrot.slane %v1021, %v1028
        %v1031 = vunpack.c.l.s4 1983009808
        %v1032 = vunpack.c.0.s8 %v1031
        %v1033 = vlaneseq
        %v1034 = vshrl.u32 %v1033, 7
        %v1035 = vsub.s32 %v1032, %v1034
        %v1036 = vrot.slane %v1022, %v1035
        %v1037 = vcombine.high %v1000, 0.0
        %v1039 = vunpack.c.l.s4 1983009808
        %v1040 = vunpack.c.0.s8 %v1039
        %v1041 = vlaneseq
        %v1042 = vshrl.u32 %v1041, 7
        %v1043 = vsub.s32 %v1040, %v1042
        %v1044 = vrot.slane %v1000, %v1043
        %v1046 = vunpack.c.l.s4 1983009808
        %v1047 = vunpack.c.0.s8 %v1046
        %v1048 = vlaneseq
        %v1049 = vshrl.u32 %v1048, 7
        %v1050 = vsub.s32 %v1047, %v1049
        %v1051 = vrot.slane %v1037, %v1050
        %v1052 = vcombine.high %v1003, 0.0
        %v1054 = vunpack.c.l.s4 1983009808
        %v1055 = vunpack.c.0.s8 %v1054
        %v1056 = vlaneseq
        %v1057 = vshrl.u32 %v1056, 7
        %v1058 = vsub.s32 %v1055, %v1057
        %v1059 = vrot.slane %v1003, %v1058
        %v1061 = vunpack.c.l.s4 1983009808
        %v1062 = vunpack.c.0.s8 %v1061
        %v1063 = vlaneseq
        %v1064 = vshrl.u32 %v1063, 7
        %v1065 = vsub.s32 %v1062, %v1064
        %v1066 = vrot.slane %v1052, %v1065
        %v1067 = vcombine.low %v1013, %v1029
        %v1068 = vcombine.high %v1013, %v1029
        %v1070 = vunpack.c.l.s4 1934713408
        %v1071 = vunpack.c.0.s8 %v1070
        %v1072 = vlaneseq
        %v1073 = vshrl.u32 %v1072, 7
        %v1074 = vsub.s32 %v1071, %v1073
        %v1075 = vrot.slane %v1067, %v1074
        %v1077 = vunpack.c.l.s4 1934713408
        %v1078 = vunpack.c.0.s8 %v1077
        %v1079 = vlaneseq
        %v1080 = vshrl.u32 %v1079, 7
        %v1081 = vsub.s32 %v1078, %v1080
        %v1082 = vrot.slane %v1068, %v1081
        %v1083 = vcombine.low %v1020, %v1036
        %v1084 = vcombine.high %v1020, %v1036
        %v1086 = vunpack.c.l.s4 1934713408
        %v1087 = vunpack.c.0.s8 %v1086
        %v1088 = vlaneseq
        %v1089 = vshrl.u32 %v1088, 7
        %v1090 = vsub.s32 %v1087, %v1089
        %v1091 = vrot.slane %v1083, %v1090
        %v1093 = vunpack.c.l.s4 1934713408
        %v1094 = vunpack.c.0.s8 %v1093
        %v1095 = vlaneseq
        %v1096 = vshrl.u32 %v1095, 7
        %v1097 = vsub.s32 %v1094, %v1096
        %v1098 = vrot.slane %v1084, %v1097
        %v1099 = vcombine.low %v1044, %v1059
        %v1100 = vcombine.high %v1044, %v1059
        %v1102 = vunpack.c.l.s4 1934713408
        %v1103 = vunpack.c.0.s8 %v1102
        %v1104 = vlaneseq
        %v1105 = vshrl.u32 %v1104, 7
        %v1106 = vsub.s32 %v1103, %v1105
        %v1107 = vrot.slane %v1099, %v1106
        %v1109 = vunpack.c.l.s4 1934713408
        %v1110 = vunpack.c.0.s8 %v1109
        %v1111 = vlaneseq
        %v1112 = vshrl.u32 %v1111, 7
        %v1113 = vsub.s32 %v1110, %v1112
        %v1114 = vrot.slane %v1100, %v1113
        %v1115 = vcombine.low %v1051, %v1066
        %v1116 = vcombine.high %v1051, %v1066
        %v1118 = vunpack.c.l.s4 1934713408
        %v1119 = vunpack.c.0.s8 %v1118
        %v1120 = vlaneseq
        %v1121 = vshrl.u32 %v1120, 7
        %v1122 = vsub.s32 %v1119, %v1121
        %v1123 = vrot.slane %v1115, %v1122
        %v1125 = vunpack.c.l.s4 1934713408
        %v1126 = vunpack.c.0.s8 %v1125
        %v1127 = vlaneseq
        %v1128 = vshrl.u32 %v1127, 7
        %v1129 = vsub.s32 %v1126, %v1128
        %v1130 = vrot.slane %v1116, %v1129
        %v1131 = vcombine.low %v1075, %v1107
        %v1132 = vcombine.high %v1075, %v1107
        %v1133 = vcombine.low %v1082, %v1114
        %v1134 = vcombine.high %v1082, %v1114
        %v1135 = vcombine.low %v1091, %v1123
        %v1136 = vcombine.high %v1091, %v1123
        %v1137 = vcombine.low %v1098, %v1130
        %v1138 = vcombine.high %v1098, %v1130
        %v1139 = vcombine.low %v1131, %v1133
        %v1140 = vcombine.high %v1131, %v1133
        %v1142 = vunpack.c.l.s4 1983009808
        %v1143 = vunpack.c.0.s8 %v1142
        %v1144 = vlaneseq
        %v1145 = vshrl.u32 %v1144, 7
        %v1146 = vsub.s32 %v1143, %v1145
        %v1147 = vrot.slane %v1139, %v1146
        %v1149 = vunpack.c.l.s4 1983009808
        %v1150 = vunpack.c.0.s8 %v1149
        %v1151 = vlaneseq
        %v1152 = vshrl.u32 %v1151, 7
        %v1153 = vsub.s32 %v1150, %v1152
        %v1154 = vrot.slane %v1140, %v1153
        %v1155 = vcombine.low %v1132, %v1134
        %v1156 = vcombine.high %v1132, %v1134
        %v1158 = vunpack.c.l.s4 1983009808
        %v1159 = vunpack.c.0.s8 %v1158
        %v1160 = vlaneseq
        %v1161 = vshrl.u32 %v1160, 7
        %v1162 = vsub.s32 %v1159, %v1161
        %v1163 = vrot.slane %v1155, %v1162
        %v1165 = vunpack.c.l.s4 1983009808
        %v1166 = vunpack.c.0.s8 %v1165
        %v1167 = vlaneseq
        %v1168 = vshrl.u32 %v1167, 7
        %v1169 = vsub.s32 %v1166, %v1168
        %v1170 = vrot.slane %v1156, %v1169
        %v1171 = vcombine.low %v1135, %v1137
        %v1172 = vcombine.high %v1135, %v1137
        %v1174 = vunpack.c.l.s4 1983009808
        %v1175 = vunpack.c.0.s8 %v1174
        %v1176 = vlaneseq
        %v1177 = vshrl.u32 %v1176, 7
        %v1178 = vsub.s32 %v1175, %v1177
        %v1179 = vrot.slane %v1171, %v1178
        %v1181 = vunpack.c.l.s4 1983009808
        %v1182 = vunpack.c.0.s8 %v1181
        %v1183 = vlaneseq
        %v1184 = vshrl.u32 %v1183, 7
        %v1185 = vsub.s32 %v1182, %v1184
        %v1186 = vrot.slane %v1172, %v1185
        %v1187 = vcombine.low %v1136, %v1138
        %v1188 = vcombine.high %v1136, %v1138
        %v1190 = vunpack.c.l.s4 1983009808
        %v1191 = vunpack.c.0.s8 %v1190
        %v1192 = vlaneseq
        %v1193 = vshrl.u32 %v1192, 7
        %v1194 = vsub.s32 %v1191, %v1193
        %v1195 = vrot.slane %v1187, %v1194
        %v1197 = vunpack.c.l.s4 1983009808
        %v1198 = vunpack.c.0.s8 %v1197
        %v1199 = vlaneseq
        %v1200 = vshrl.u32 %v1199, 7
        %v1201 = vsub.s32 %v1198, %v1200
        %v1202 = vrot.slane %v1188, %v1201
        %v1203 = vcombine.low %v1147, %v1163
        %v1204 = vcombine.high %v1147, %v1163
        %v1206 = vunpack.c.l.s4 1934713408
        %v1207 = vunpack.c.0.s8 %v1206
        %v1208 = vlaneseq
        %v1209 = vshrl.u32 %v1208, 7
        %v1210 = vsub.s32 %v1207, %v1209
        %v1211 = vrot.slane %v1203, %v1210
        %v1213 = vunpack.c.l.s4 1934713408
        %v1214 = vunpack.c.0.s8 %v1213
        %v1215 = vlaneseq
        %v1216 = vshrl.u32 %v1215, 7
        %v1217 = vsub.s32 %v1214, %v1216
        %v1218 = vrot.slane %v1204, %v1217
        %v1219 = vcombine.low %v1154, %v1170
        %v1221 = vunpack.c.l.s4 1934713408
        %v1222 = vunpack.c.0.s8 %v1221
        %v1223 = vlaneseq
        %v1224 = vshrl.u32 %v1223, 7
        %v1225 = vsub.s32 %v1222, %v1224
        %v1226 = vrot.slane %v1219, %v1225
        %v1227 = vcombine.low %v1179, %v1195
        %v1228 = vcombine.high %v1179, %v1195
        %v1230 = vunpack.c.l.s4 1934713408
        %v1231 = vunpack.c.0.s8 %v1230
        %v1232 = vlaneseq
        %v1233 = vshrl.u32 %v1232, 7
        %v1234 = vsub.s32 %v1231, %v1233
        %v1235 = vrot.slane %v1227, %v1234
        %v1237 = vunpack.c.l.s4 1934713408
        %v1238 = vunpack.c.0.s8 %v1237
        %v1239 = vlaneseq
        %v1240 = vshrl.u32 %v1239, 7
        %v1241 = vsub.s32 %v1238, %v1240
        %v1242 = vrot.slane %v1228, %v1241
        %v1243 = vcombine.low %v1186, %v1202
        %v1245 = vunpack.c.l.s4 1934713408
        %v1246 = vunpack.c.0.s8 %v1245
        %v1247 = vlaneseq
        %v1248 = vshrl.u32 %v1247, 7
        %v1249 = vsub.s32 %v1246, %v1248
        %v1250 = vrot.slane %v1243, %v1249
        %v1251 = vcombine.low %v1211, %v1235
        %v1252 = vcombine.high %v1211, %v1235
        %v1253 = vcombine.low %v1218, %v1242
        %v1254 = vcombine.high %v1218, %v1242
        %v1255 = vcombine.low %v1226, %v1250
        %v1256 = vcombine.high %v1226, %v1250
        %1257 = vrot.lane.b32.xlu0 %v983, 80
        %v1258 = vpop.permute.xlu0 %1257
        %1259 = vrot.lane.b32.xlu0 %v991, 80
        %v1260 = vpop.permute.xlu0 %1259
        %1261 = vrot.lane.b32.xlu0 %v994, 80
        %v1262 = vpop.permute.xlu0 %1261
        %1263 = vrot.lane.b32.xlu0 %v997, 80
        %v1264 = vpop.permute.xlu0 %1263
        %1265 = vrot.lane.b32.xlu0 %v1000, 80
        %v1266 = vpop.permute.xlu0 %1265
        %1267 = vrot.lane.b32.xlu0 %v1003, 80
        %v1268 = vpop.permute.xlu0 %1267
        %v1275 = vcombine.low %v1258, %v1262
        %v1276 = vcombine.high %v1258, %v1262
        %v1278 = vunpack.c.l.s4 1983009808
        %v1279 = vunpack.c.0.s8 %v1278
        %v1280 = vlaneseq
        %v1281 = vshrl.u32 %v1280, 7
        %v1282 = vsub.s32 %v1279, %v1281
        %v1283 = vrot.slane %v1275, %v1282
        %v1285 = vunpack.c.l.s4 1983009808
        %v1286 = vunpack.c.0.s8 %v1285
        %v1287 = vlaneseq
        %v1288 = vshrl.u32 %v1287, 7
        %v1289 = vsub.s32 %v1286, %v1288
        %v1290 = vrot.slane %v1276, %v1289
        %v1291 = vcombine.low %v1260, %v1264
        %v1292 = vcombine.high %v1260, %v1264
        %v1294 = vunpack.c.l.s4 1983009808
        %v1295 = vunpack.c.0.s8 %v1294
        %v1296 = vlaneseq
        %v1297 = vshrl.u32 %v1296, 7
        %v1298 = vsub.s32 %v1295, %v1297
        %v1299 = vrot.slane %v1291, %v1298
        %v1301 = vunpack.c.l.s4 1983009808
        %v1302 = vunpack.c.0.s8 %v1301
        %v1303 = vlaneseq
        %v1304 = vshrl.u32 %v1303, 7
        %v1305 = vsub.s32 %v1302, %v1304
        %v1306 = vrot.slane %v1292, %v1305
        %v1307 = vcombine.high %v1266, 0.0
        %v1309 = vunpack.c.l.s4 1983009808
        %v1310 = vunpack.c.0.s8 %v1309
        %v1311 = vlaneseq
        %v1312 = vshrl.u32 %v1311, 7
        %v1313 = vsub.s32 %v1310, %v1312
        %v1314 = vrot.slane %v1266, %v1313
        %v1316 = vunpack.c.l.s4 1983009808
        %v1317 = vunpack.c.0.s8 %v1316
        %v1318 = vlaneseq
        %v1319 = vshrl.u32 %v1318, 7
        %v1320 = vsub.s32 %v1317, %v1319
        %v1321 = vrot.slane %v1307, %v1320
        %v1322 = vcombine.high %v1268, 0.0
        %v1324 = vunpack.c.l.s4 1983009808
        %v1325 = vunpack.c.0.s8 %v1324
        %v1326 = vlaneseq
        %v1327 = vshrl.u32 %v1326, 7
        %v1328 = vsub.s32 %v1325, %v1327
        %v1329 = vrot.slane %v1268, %v1328
        %v1331 = vunpack.c.l.s4 1983009808
        %v1332 = vunpack.c.0.s8 %v1331
        %v1333 = vlaneseq
        %v1334 = vshrl.u32 %v1333, 7
        %v1335 = vsub.s32 %v1332, %v1334
        %v1336 = vrot.slane %v1322, %v1335
        %v1337 = vcombine.low %v1283, %v1299
        %v1338 = vcombine.high %v1283, %v1299
        %v1340 = vunpack.c.l.s4 1934713408
        %v1341 = vunpack.c.0.s8 %v1340
        %v1342 = vlaneseq
        %v1343 = vshrl.u32 %v1342, 7
        %v1344 = vsub.s32 %v1341, %v1343
        %v1345 = vrot.slane %v1337, %v1344
        %v1347 = vunpack.c.l.s4 1934713408
        %v1348 = vunpack.c.0.s8 %v1347
        %v1349 = vlaneseq
        %v1350 = vshrl.u32 %v1349, 7
        %v1351 = vsub.s32 %v1348, %v1350
        %v1352 = vrot.slane %v1338, %v1351
        %v1353 = vcombine.low %v1290, %v1306
        %v1354 = vcombine.high %v1290, %v1306
        %v1356 = vunpack.c.l.s4 1934713408
        %v1357 = vunpack.c.0.s8 %v1356
        %v1358 = vlaneseq
        %v1359 = vshrl.u32 %v1358, 7
        %v1360 = vsub.s32 %v1357, %v1359
        %v1361 = vrot.slane %v1353, %v1360
        %v1363 = vunpack.c.l.s4 1934713408
        %v1364 = vunpack.c.0.s8 %v1363
        %v1365 = vlaneseq
        %v1366 = vshrl.u32 %v1365, 7
        %v1367 = vsub.s32 %v1364, %v1366
        %v1368 = vrot.slane %v1354, %v1367
        %v1369 = vcombine.low %v1314, %v1329
        %v1370 = vcombine.high %v1314, %v1329
        %v1372 = vunpack.c.l.s4 1934713408
        %v1373 = vunpack.c.0.s8 %v1372
        %v1374 = vlaneseq
        %v1375 = vshrl.u32 %v1374, 7
        %v1376 = vsub.s32 %v1373, %v1375
        %v1377 = vrot.slane %v1369, %v1376
        %v1379 = vunpack.c.l.s4 1934713408
        %v1380 = vunpack.c.0.s8 %v1379
        %v1381 = vlaneseq
        %v1382 = vshrl.u32 %v1381, 7
        %v1383 = vsub.s32 %v1380, %v1382
        %v1384 = vrot.slane %v1370, %v1383
        %v1385 = vcombine.low %v1321, %v1336
        %v1386 = vcombine.high %v1321, %v1336
        %v1388 = vunpack.c.l.s4 1934713408
        %v1389 = vunpack.c.0.s8 %v1388
        %v1390 = vlaneseq
        %v1391 = vshrl.u32 %v1390, 7
        %v1392 = vsub.s32 %v1389, %v1391
        %v1393 = vrot.slane %v1385, %v1392
        %v1395 = vunpack.c.l.s4 1934713408
        %v1396 = vunpack.c.0.s8 %v1395
        %v1397 = vlaneseq
        %v1398 = vshrl.u32 %v1397, 7
        %v1399 = vsub.s32 %v1396, %v1398
        %v1400 = vrot.slane %v1386, %v1399
        %v1401 = vcombine.low %v1345, %v1377
        %v1402 = vcombine.high %v1345, %v1377
        %v1403 = vcombine.low %v1352, %v1384
        %v1404 = vcombine.high %v1352, %v1384
        %v1405 = vcombine.low %v1361, %v1393
        %v1406 = vcombine.high %v1361, %v1393
        %v1407 = vcombine.low %v1368, %v1400
        %v1408 = vcombine.high %v1368, %v1400
        %v1409 = vcombine.low %v1401, %v1403
        %v1410 = vcombine.high %v1401, %v1403
        %v1412 = vunpack.c.l.s4 1983009808
        %v1413 = vunpack.c.0.s8 %v1412
        %v1414 = vlaneseq
        %v1415 = vshrl.u32 %v1414, 7
        %v1416 = vsub.s32 %v1413, %v1415
        %v1417 = vrot.slane %v1409, %v1416
        %v1419 = vunpack.c.l.s4 1983009808
        %v1420 = vunpack.c.0.s8 %v1419
        %v1421 = vlaneseq
        %v1422 = vshrl.u32 %v1421, 7
        %v1423 = vsub.s32 %v1420, %v1422
        %v1424 = vrot.slane %v1410, %v1423
        %v1425 = vcombine.low %v1402, %v1404
        %v1426 = vcombine.high %v1402, %v1404
        %v1428 = vunpack.c.l.s4 1983009808
        %v1429 = vunpack.c.0.s8 %v1428
        %v1430 = vlaneseq
        %v1431 = vshrl.u32 %v1430, 7
        %v1432 = vsub.s32 %v1429, %v1431
        %v1433 = vrot.slane %v1425, %v1432
        %v1435 = vunpack.c.l.s4 1983009808
        %v1436 = vunpack.c.0.s8 %v1435
        %v1437 = vlaneseq
        %v1438 = vshrl.u32 %v1437, 7
        %v1439 = vsub.s32 %v1436, %v1438
        %v1440 = vrot.slane %v1426, %v1439
        %v1441 = vcombine.low %v1405, %v1407
        %v1442 = vcombine.high %v1405, %v1407
        %v1444 = vunpack.c.l.s4 1983009808
        %v1445 = vunpack.c.0.s8 %v1444
        %v1446 = vlaneseq
        %v1447 = vshrl.u32 %v1446, 7
        %v1448 = vsub.s32 %v1445, %v1447
        %v1449 = vrot.slane %v1441, %v1448
        %v1451 = vunpack.c.l.s4 1983009808
        %v1452 = vunpack.c.0.s8 %v1451
        %v1453 = vlaneseq
        %v1454 = vshrl.u32 %v1453, 7
        %v1455 = vsub.s32 %v1452, %v1454
        %v1456 = vrot.slane %v1442, %v1455
        %v1457 = vcombine.low %v1406, %v1408
        %v1458 = vcombine.high %v1406, %v1408
        %v1460 = vunpack.c.l.s4 1983009808
        %v1461 = vunpack.c.0.s8 %v1460
        %v1462 = vlaneseq
        %v1463 = vshrl.u32 %v1462, 7
        %v1464 = vsub.s32 %v1461, %v1463
        %v1465 = vrot.slane %v1457, %v1464
        %v1467 = vunpack.c.l.s4 1983009808
        %v1468 = vunpack.c.0.s8 %v1467
        %v1469 = vlaneseq
        %v1470 = vshrl.u32 %v1469, 7
        %v1471 = vsub.s32 %v1468, %v1470
        %v1472 = vrot.slane %v1458, %v1471
        %v1473 = vcombine.low %v1417, %v1433
        %v1474 = vcombine.high %v1417, %v1433
        %v1476 = vunpack.c.l.s4 1934713408
        %v1477 = vunpack.c.0.s8 %v1476
        %v1478 = vlaneseq
        %v1479 = vshrl.u32 %v1478, 7
        %v1480 = vsub.s32 %v1477, %v1479
        %v1481 = vrot.slane %v1473, %v1480
        %v1483 = vunpack.c.l.s4 1934713408
        %v1484 = vunpack.c.0.s8 %v1483
        %v1485 = vlaneseq
        %v1486 = vshrl.u32 %v1485, 7
        %v1487 = vsub.s32 %v1484, %v1486
        %v1488 = vrot.slane %v1474, %v1487
        %v1489 = vcombine.low %v1424, %v1440
        %v1491 = vunpack.c.l.s4 1934713408
        %v1492 = vunpack.c.0.s8 %v1491
        %v1493 = vlaneseq
        %v1494 = vshrl.u32 %v1493, 7
        %v1495 = vsub.s32 %v1492, %v1494
        %v1496 = vrot.slane %v1489, %v1495
        %v1497 = vcombine.low %v1449, %v1465
        %v1498 = vcombine.high %v1449, %v1465
        %v1500 = vunpack.c.l.s4 1934713408
        %v1501 = vunpack.c.0.s8 %v1500
        %v1502 = vlaneseq
        %v1503 = vshrl.u32 %v1502, 7
        %v1504 = vsub.s32 %v1501, %v1503
        %v1505 = vrot.slane %v1497, %v1504
        %v1507 = vunpack.c.l.s4 1934713408
        %v1508 = vunpack.c.0.s8 %v1507
        %v1509 = vlaneseq
        %v1510 = vshrl.u32 %v1509, 7
        %v1511 = vsub.s32 %v1508, %v1510
        %v1512 = vrot.slane %v1498, %v1511
        %v1513 = vcombine.low %v1456, %v1472
        %v1515 = vunpack.c.l.s4 1934713408
        %v1516 = vunpack.c.0.s8 %v1515
        %v1517 = vlaneseq
        %v1518 = vshrl.u32 %v1517, 7
        %v1519 = vsub.s32 %v1516, %v1518
        %v1520 = vrot.slane %v1513, %v1519
        %v1521 = vcombine.low %v1481, %v1505
        %v1522 = vcombine.high %v1481, %v1505
        %v1523 = vcombine.low %v1488, %v1512
        %v1524 = vcombine.high %v1488, %v1512
        %v1525 = vcombine.low %v1496, %v1520
        %v1526 = vcombine.high %v1496, %v1520
        %1528 = vrot.lane.b32.xlu0 %v985, 96
        %v1529 = vpop.permute.xlu0 %1528
        %1530 = vrot.lane.b32.xlu0 %v985, 88
        %v1531 = vpop.permute.xlu0 %1530
        %1532 = vrot.lane.b32.xlu0 %v983, 32
        %v1533 = vpop.permute.xlu0 %1532
        %1534 = vrot.lane.b32.xlu0 %v991, 32
        %v1535 = vpop.permute.xlu0 %1534
        %1536 = vrot.lane.b32.xlu0 %v994, 32
        %v1537 = vpop.permute.xlu0 %1536
        %1538 = vrot.lane.b32.xlu0 %v997, 32
        %v1539 = vpop.permute.xlu0 %1538
        %1540 = vrot.lane.b32.xlu0 %v1529, 32
        %v1541 = vpop.permute.xlu0 %1540
        %1542 = vrot.lane.b32.xlu0 %v1531, 32
        %v1543 = vpop.permute.xlu0 %1542
        %v1550 = vcombine.low %v1533, %v1537
        %v1551 = vcombine.high %v1533, %v1537
        %v1553 = vunpack.c.l.s4 1983009808
        %v1554 = vunpack.c.0.s8 %v1553
        %v1555 = vlaneseq
        %v1556 = vshrl.u32 %v1555, 7
        %v1557 = vsub.s32 %v1554, %v1556
        %v1558 = vrot.slane %v1550, %v1557
        %v1560 = vunpack.c.l.s4 1983009808
        %v1561 = vunpack.c.0.s8 %v1560
        %v1562 = vlaneseq
        %v1563 = vshrl.u32 %v1562, 7
        %v1564 = vsub.s32 %v1561, %v1563
        %v1565 = vrot.slane %v1551, %v1564
        %v1566 = vcombine.low %v1535, %v1539
        %v1567 = vcombine.high %v1535, %v1539
        %v1569 = vunpack.c.l.s4 1983009808
        %v1570 = vunpack.c.0.s8 %v1569
        %v1571 = vlaneseq
        %v1572 = vshrl.u32 %v1571, 7
        %v1573 = vsub.s32 %v1570, %v1572
        %v1574 = vrot.slane %v1566, %v1573
        %v1576 = vunpack.c.l.s4 1983009808
        %v1577 = vunpack.c.0.s8 %v1576
        %v1578 = vlaneseq
        %v1579 = vshrl.u32 %v1578, 7
        %v1580 = vsub.s32 %v1577, %v1579
        %v1581 = vrot.slane %v1567, %v1580
        %v1582 = vcombine.high %v1541, 0.0
        %v1584 = vunpack.c.l.s4 1983009808
        %v1585 = vunpack.c.0.s8 %v1584
        %v1586 = vlaneseq
        %v1587 = vshrl.u32 %v1586, 7
        %v1588 = vsub.s32 %v1585, %v1587
        %v1589 = vrot.slane %v1541, %v1588
        %v1591 = vunpack.c.l.s4 1983009808
        %v1592 = vunpack.c.0.s8 %v1591
        %v1593 = vlaneseq
        %v1594 = vshrl.u32 %v1593, 7
        %v1595 = vsub.s32 %v1592, %v1594
        %v1596 = vrot.slane %v1582, %v1595
        %v1597 = vcombine.high %v1543, 0.0
        %v1599 = vunpack.c.l.s4 1983009808
        %v1600 = vunpack.c.0.s8 %v1599
        %v1601 = vlaneseq
        %v1602 = vshrl.u32 %v1601, 7
        %v1603 = vsub.s32 %v1600, %v1602
        %v1604 = vrot.slane %v1543, %v1603
        %v1606 = vunpack.c.l.s4 1983009808
        %v1607 = vunpack.c.0.s8 %v1606
        %v1608 = vlaneseq
        %v1609 = vshrl.u32 %v1608, 7
        %v1610 = vsub.s32 %v1607, %v1609
        %v1611 = vrot.slane %v1597, %v1610
        %v1612 = vcombine.low %v1558, %v1574
        %v1613 = vcombine.high %v1558, %v1574
        %v1615 = vunpack.c.l.s4 1934713408
        %v1616 = vunpack.c.0.s8 %v1615
        %v1617 = vlaneseq
        %v1618 = vshrl.u32 %v1617, 7
        %v1619 = vsub.s32 %v1616, %v1618
        %v1620 = vrot.slane %v1612, %v1619
        %v1622 = vunpack.c.l.s4 1934713408
        %v1623 = vunpack.c.0.s8 %v1622
        %v1624 = vlaneseq
        %v1625 = vshrl.u32 %v1624, 7
        %v1626 = vsub.s32 %v1623, %v1625
        %v1627 = vrot.slane %v1613, %v1626
        %v1628 = vcombine.low %v1565, %v1581
        %v1629 = vcombine.high %v1565, %v1581
        %v1631 = vunpack.c.l.s4 1934713408
        %v1632 = vunpack.c.0.s8 %v1631
        %v1633 = vlaneseq
        %v1634 = vshrl.u32 %v1633, 7
        %v1635 = vsub.s32 %v1632, %v1634
        %v1636 = vrot.slane %v1628, %v1635
        %v1638 = vunpack.c.l.s4 1934713408
        %v1639 = vunpack.c.0.s8 %v1638
        %v1640 = vlaneseq
        %v1641 = vshrl.u32 %v1640, 7
        %v1642 = vsub.s32 %v1639, %v1641
        %v1643 = vrot.slane %v1629, %v1642
        %v1644 = vcombine.low %v1589, %v1604
        %v1645 = vcombine.high %v1589, %v1604
        %v1647 = vunpack.c.l.s4 1934713408
        %v1648 = vunpack.c.0.s8 %v1647
        %v1649 = vlaneseq
        %v1650 = vshrl.u32 %v1649, 7
        %v1651 = vsub.s32 %v1648, %v1650
        %v1652 = vrot.slane %v1644, %v1651
        %v1654 = vunpack.c.l.s4 1934713408
        %v1655 = vunpack.c.0.s8 %v1654
        %v1656 = vlaneseq
        %v1657 = vshrl.u32 %v1656, 7
        %v1658 = vsub.s32 %v1655, %v1657
        %v1659 = vrot.slane %v1645, %v1658
        %v1660 = vcombine.low %v1596, %v1611
        %v1661 = vcombine.high %v1596, %v1611
        %v1663 = vunpack.c.l.s4 1934713408
        %v1664 = vunpack.c.0.s8 %v1663
        %v1665 = vlaneseq
        %v1666 = vshrl.u32 %v1665, 7
        %v1667 = vsub.s32 %v1664, %v1666
        %v1668 = vrot.slane %v1660, %v1667
        %v1670 = vunpack.c.l.s4 1934713408
        %v1671 = vunpack.c.0.s8 %v1670
        %v1672 = vlaneseq
        %v1673 = vshrl.u32 %v1672, 7
        %v1674 = vsub.s32 %v1671, %v1673
        %v1675 = vrot.slane %v1661, %v1674
        %v1676 = vcombine.low %v1620, %v1652
        %v1677 = vcombine.high %v1620, %v1652
        %v1678 = vcombine.low %v1627, %v1659
        %v1679 = vcombine.high %v1627, %v1659
        %v1680 = vcombine.low %v1636, %v1668
        %v1681 = vcombine.high %v1636, %v1668
        %v1682 = vcombine.low %v1643, %v1675
        %v1683 = vcombine.high %v1643, %v1675
        %v1684 = vcombine.low %v1676, %v1678
        %v1685 = vcombine.high %v1676, %v1678
        %v1687 = vunpack.c.l.s4 1983009808
        %v1688 = vunpack.c.0.s8 %v1687
        %v1689 = vlaneseq
        %v1690 = vshrl.u32 %v1689, 7
        %v1691 = vsub.s32 %v1688, %v1690
        %v1692 = vrot.slane %v1684, %v1691
        %v1694 = vunpack.c.l.s4 1983009808
        %v1695 = vunpack.c.0.s8 %v1694
        %v1696 = vlaneseq
        %v1697 = vshrl.u32 %v1696, 7
        %v1698 = vsub.s32 %v1695, %v1697
        %v1699 = vrot.slane %v1685, %v1698
        %v1700 = vcombine.low %v1677, %v1679
        %v1701 = vcombine.high %v1677, %v1679
        %v1703 = vunpack.c.l.s4 1983009808
        %v1704 = vunpack.c.0.s8 %v1703
        %v1705 = vlaneseq
        %v1706 = vshrl.u32 %v1705, 7
        %v1707 = vsub.s32 %v1704, %v1706
        %v1708 = vrot.slane %v1700, %v1707
        %v1710 = vunpack.c.l.s4 1983009808
        %v1711 = vunpack.c.0.s8 %v1710
        %v1712 = vlaneseq
        %v1713 = vshrl.u32 %v1712, 7
        %v1714 = vsub.s32 %v1711, %v1713
        %v1715 = vrot.slane %v1701, %v1714
        %v1716 = vcombine.low %v1680, %v1682
        %v1717 = vcombine.high %v1680, %v1682
        %v1719 = vunpack.c.l.s4 1983009808
        %v1720 = vunpack.c.0.s8 %v1719
        %v1721 = vlaneseq
        %v1722 = vshrl.u32 %v1721, 7
        %v1723 = vsub.s32 %v1720, %v1722
        %v1724 = vrot.slane %v1716, %v1723
        %v1726 = vunpack.c.l.s4 1983009808
        %v1727 = vunpack.c.0.s8 %v1726
        %v1728 = vlaneseq
        %v1729 = vshrl.u32 %v1728, 7
        %v1730 = vsub.s32 %v1727, %v1729
        %v1731 = vrot.slane %v1717, %v1730
        %v1732 = vcombine.low %v1681, %v1683
        %v1733 = vcombine.high %v1681, %v1683
        %v1735 = vunpack.c.l.s4 1983009808
        %v1736 = vunpack.c.0.s8 %v1735
        %v1737 = vlaneseq
        %v1738 = vshrl.u32 %v1737, 7
        %v1739 = vsub.s32 %v1736, %v1738
        %v1740 = vrot.slane %v1732, %v1739
        %v1742 = vunpack.c.l.s4 1983009808
        %v1743 = vunpack.c.0.s8 %v1742
        %v1744 = vlaneseq
        %v1745 = vshrl.u32 %v1744, 7
        %v1746 = vsub.s32 %v1743, %v1745
        %v1747 = vrot.slane %v1733, %v1746
        %v1748 = vcombine.low %v1692, %v1708
        %v1749 = vcombine.high %v1692, %v1708
        %v1751 = vunpack.c.l.s4 1934713408
        %v1752 = vunpack.c.0.s8 %v1751
        %v1753 = vlaneseq
        %v1754 = vshrl.u32 %v1753, 7
        %v1755 = vsub.s32 %v1752, %v1754
        %v1756 = vrot.slane %v1748, %v1755
        %v1758 = vunpack.c.l.s4 1934713408
        %v1759 = vunpack.c.0.s8 %v1758
        %v1760 = vlaneseq
        %v1761 = vshrl.u32 %v1760, 7
        %v1762 = vsub.s32 %v1759, %v1761
        %v1763 = vrot.slane %v1749, %v1762
        %v1764 = vcombine.low %v1699, %v1715
        %v1766 = vunpack.c.l.s4 1934713408
        %v1767 = vunpack.c.0.s8 %v1766
        %v1768 = vlaneseq
        %v1769 = vshrl.u32 %v1768, 7
        %v1770 = vsub.s32 %v1767, %v1769
        %v1771 = vrot.slane %v1764, %v1770
        %v1772 = vcombine.low %v1724, %v1740
        %v1773 = vcombine.high %v1724, %v1740
        %v1775 = vunpack.c.l.s4 1934713408
        %v1776 = vunpack.c.0.s8 %v1775
        %v1777 = vlaneseq
        %v1778 = vshrl.u32 %v1777, 7
        %v1779 = vsub.s32 %v1776, %v1778
        %v1780 = vrot.slane %v1772, %v1779
        %v1782 = vunpack.c.l.s4 1934713408
        %v1783 = vunpack.c.0.s8 %v1782
        %v1784 = vlaneseq
        %v1785 = vshrl.u32 %v1784, 7
        %v1786 = vsub.s32 %v1783, %v1785
        %v1787 = vrot.slane %v1773, %v1786
        %v1788 = vcombine.low %v1731, %v1747
        %v1790 = vunpack.c.l.s4 1934713408
        %v1791 = vunpack.c.0.s8 %v1790
        %v1792 = vlaneseq
        %v1793 = vshrl.u32 %v1792, 7
        %v1794 = vsub.s32 %v1791, %v1793
        %v1795 = vrot.slane %v1788, %v1794
        %v1796 = vcombine.low %v1756, %v1780
        %v1797 = vcombine.high %v1756, %v1780
        %v1798 = vcombine.low %v1763, %v1787
        %v1799 = vcombine.high %v1763, %v1787
        %v1800 = vcombine.low %v1771, %v1795
        %v1801 = vcombine.high %v1771, %v1795
        %v1802 = vpack.c.bf16 %v1251, %v1251
        %v1803 = vpack.c.bf16 %v1252, %v1252
        %v1804 = vpack.c.bf16 %v1253, %v1253
        %v1805 = vpack.c.bf16 %v1254, %v1254
        %v1806 = vpack.c.bf16 %v1255, %v1255
        %v1807 = vpack.c.bf16 %v1256, %v1256
        %v1808 = vpack.c.bf16 %v1521, %v1521
        %v1809 = vpack.c.bf16 %v1522, %v1522
        %v1810 = vpack.c.bf16 %v1523, %v1523
        %v1811 = vpack.c.bf16 %v1524, %v1524
        %v1812 = vpack.c.bf16 %v1525, %v1525
        %v1813 = vpack.c.bf16 %v1526, %v1526
        %vm1814 = vcmask 64512
        %v1816 = vsel %vm1814, %v1802, 0
        %v1819 = vsel %vm1814, %v1808, 0
        %1821 = vmatprep.subr.bf16.mxu0 0
        %1822 = vmatpush1.bf16.xpose.msra.mxu0 %v1819
        %1823 = vmatprep.subr.bf16.mxu0 0
        %1824 = vmatpush1.bf16.xpose.msra.mxu0 0
        %1825 = vmatprep.subr.bf16.mxu0 0
        %1826 = vmatpush1.bf16.xpose.msra.mxu0 0
        %1827 = vmatprep.subr.bf16.mxu0 0
        %1828 = vmatpush1.bf16.xpose.msra.mxu0 0
        %1829 = vmatprep.subr.bf16.mxu0 0
        %1830 = vmatpush1.bf16.xpose.msra.mxu0 0
        %1831 = vmatprep.subr.bf16.mxu0 0
        %1832 = vmatpush1.bf16.xpose.msra.mxu0 0
        %1833 = vmatprep.subr.bf16.mxu0 0
        %1834 = vmatpush1.bf16.xpose.msra.mxu0 0
        %1835 = vmatprep.subr.bf16.mxu0 0
        %1836 = vmatpush1.bf16.xpose.msra.mxu0 0
        %1837 = vmatprep.subr.bf16.mxu0 0
        %1838 = vmatpush1.bf16.xpose.msra.mxu0 0
        %1839 = vmatprep.subr.bf16.mxu0 0
        %1840 = vmatpush1.bf16.xpose.msra.mxu0 0
        %1841 = vmatprep.subr.bf16.mxu0 0
        %1842 = vmatpush1.bf16.xpose.msra.mxu0 0
        %1843 = vmatprep.subr.bf16.mxu0 0
        %1844 = vmatpush1.bf16.xpose.msra.mxu0 0
        %1845 = vmatprep.subr.bf16.mxu0 0
        %1846 = vmatpush1.bf16.xpose.msra.mxu0 0
        %1847 = vmatprep.subr.bf16.mxu0 0
        %1848 = vmatpush1.bf16.xpose.msra.mxu0 0
        %1849 = vmatprep.subr.bf16.mxu0 0
        %1850 = vmatpush1.bf16.xpose.msra.mxu0 0
        %1851 = vmatprep.subr.bf16.mxu0 0
        %1852 = vmatpush1.bf16.xpose.msra.mxu0 0
        %1853 = vmatprep.mubr.bf16.mxu0 0
        %1854 = vmatmul.mubr.bf16.gmra.mrb[0].mxu0 %v1816
        %v1855 = vpop.f32.mrb[0].mxu0
        %v1856 = vadd.f32 0.0, %v1855
        %v1857 = vpop.f32.mrb[0].mxu0
        %v1858 = vpop.f32.mrb[0].mxu0
        %v1859 = vpop.f32.mrb[0].mxu0
        %1860 = vdwg.mxu0
        %v1862 = vsel %vm1814, %v1803, 0
        %v1865 = vsel %vm1814, %v1809, 0
        %1867 = vmatprep.subr.bf16.mxu0 0
        %1868 = vmatpush1.bf16.xpose.msra.mxu0 %v1865
        %1869 = vmatprep.subr.bf16.mxu0 0
        %1870 = vmatpush1.bf16.xpose.msra.mxu0 0
        %1871 = vmatprep.subr.bf16.mxu0 0
        %1872 = vmatpush1.bf16.xpose.msra.mxu0 0
        %1873 = vmatprep.subr.bf16.mxu0 0
        %1874 = vmatpush1.bf16.xpose.msra.mxu0 0
        %1875 = vmatprep.subr.bf16.mxu0 0
        %1876 = vmatpush1.bf16.xpose.msra.mxu0 0
        %1877 = vmatprep.subr.bf16.mxu0 0
        %1878 = vmatpush1.bf16.xpose.msra.mxu0 0
        %1879 = vmatprep.subr.bf16.mxu0 0
        %1880 = vmatpush1.bf16.xpose.msra.mxu0 0
        %1881 = vmatprep.subr.bf16.mxu0 0
        %1882 = vmatpush1.bf16.xpose.msra.mxu0 0
        %1883 = vmatprep.subr.bf16.mxu0 0
        %1884 = vmatpush1.bf16.xpose.msra.mxu0 0
        %1885 = vmatprep.subr.bf16.mxu0 0
        %1886 = vmatpush1.bf16.xpose.msra.mxu0 0
        %1887 = vmatprep.subr.bf16.mxu0 0
        %1888 = vmatpush1.bf16.xpose.msra.mxu0 0
        %1889 = vmatprep.subr.bf16.mxu0 0
        %1890 = vmatpush1.bf16.xpose.msra.mxu0 0
        %1891 = vmatprep.subr.bf16.mxu0 0
        %1892 = vmatpush1.bf16.xpose.msra.mxu0 0
        %1893 = vmatprep.subr.bf16.mxu0 0
        %1894 = vmatpush1.bf16.xpose.msra.mxu0 0
        %1895 = vmatprep.subr.bf16.mxu0 0
        %1896 = vmatpush1.bf16.xpose.msra.mxu0 0
        %1897 = vmatprep.subr.bf16.mxu0 0
        %1898 = vmatpush1.bf16.xpose.msra.mxu0 0
        %1899 = vmatprep.mubr.bf16.mxu0 0
        %1900 = vmatmul.mubr.bf16.gmra.mrb[0].mxu0 %v1862
        %v1901 = vpop.f32.mrb[0].mxu0
        %v1902 = vadd.f32 0.0, %v1901
        %v1903 = vpop.f32.mrb[0].mxu0
        %v1904 = vpop.f32.mrb[0].mxu0
        %v1905 = vpop.f32.mrb[0].mxu0
        %1906 = vdwg.mxu0
        %v1908 = vsel %vm1814, %v1804, 0
        %v1911 = vsel %vm1814, %v1810, 0
        %1913 = vmatprep.subr.bf16.mxu0 0
        %1914 = vmatpush1.bf16.xpose.msra.mxu0 %v1911
        %1915 = vmatprep.subr.bf16.mxu0 0
        %1916 = vmatpush1.bf16.xpose.msra.mxu0 0
        %1917 = vmatprep.subr.bf16.mxu0 0
        %1918 = vmatpush1.bf16.xpose.msra.mxu0 0
        %1919 = vmatprep.subr.bf16.mxu0 0
        %1920 = vmatpush1.bf16.xpose.msra.mxu0 0
        %1921 = vmatprep.subr.bf16.mxu0 0
        %1922 = vmatpush1.bf16.xpose.msra.mxu0 0
        %1923 = vmatprep.subr.bf16.mxu0 0
        %1924 = vmatpush1.bf16.xpose.msra.mxu0 0
        %1925 = vmatprep.subr.bf16.mxu0 0
        %1926 = vmatpush1.bf16.xpose.msra.mxu0 0
        %1927 = vmatprep.subr.bf16.mxu0 0
        %1928 = vmatpush1.bf16.xpose.msra.mxu0 0
        %1929 = vmatprep.subr.bf16.mxu0 0
        %1930 = vmatpush1.bf16.xpose.msra.mxu0 0
        %1931 = vmatprep.subr.bf16.mxu0 0
        %1932 = vmatpush1.bf16.xpose.msra.mxu0 0
        %1933 = vmatprep.subr.bf16.mxu0 0
        %1934 = vmatpush1.bf16.xpose.msra.mxu0 0
        %1935 = vmatprep.subr.bf16.mxu0 0
        %1936 = vmatpush1.bf16.xpose.msra.mxu0 0
        %1937 = vmatprep.subr.bf16.mxu0 0
        %1938 = vmatpush1.bf16.xpose.msra.mxu0 0
        %1939 = vmatprep.subr.bf16.mxu0 0
        %1940 = vmatpush1.bf16.xpose.msra.mxu0 0
        %1941 = vmatprep.subr.bf16.mxu0 0
        %1942 = vmatpush1.bf16.xpose.msra.mxu0 0
        %1943 = vmatprep.subr.bf16.mxu0 0
        %1944 = vmatpush1.bf16.xpose.msra.mxu0 0
        %1945 = vmatprep.mubr.bf16.mxu0 0
        %1946 = vmatmul.mubr.bf16.gmra.mrb[0].mxu0 %v1908
        %v1947 = vpop.f32.mrb[0].mxu0
        %v1948 = vadd.f32 0.0, %v1947
        %v1949 = vpop.f32.mrb[0].mxu0
        %v1950 = vpop.f32.mrb[0].mxu0
        %v1951 = vpop.f32.mrb[0].mxu0
        %1952 = vdwg.mxu0
        %v1954 = vsel %vm1814, %v1805, 0
        %v1957 = vsel %vm1814, %v1811, 0
        %1959 = vmatprep.subr.bf16.mxu0 0
        %1960 = vmatpush1.bf16.xpose.msra.mxu0 %v1957
        %1961 = vmatprep.subr.bf16.mxu0 0
        %1962 = vmatpush1.bf16.xpose.msra.mxu0 0
        %1963 = vmatprep.subr.bf16.mxu0 0
        %1964 = vmatpush1.bf16.xpose.msra.mxu0 0
        %1965 = vmatprep.subr.bf16.mxu0 0
        %1966 = vmatpush1.bf16.xpose.msra.mxu0 0
        %1967 = vmatprep.subr.bf16.mxu0 0
        %1968 = vmatpush1.bf16.xpose.msra.mxu0 0
        %1969 = vmatprep.subr.bf16.mxu0 0
        %1970 = vmatpush1.bf16.xpose.msra.mxu0 0
        %1971 = vmatprep.subr.bf16.mxu0 0
        %1972 = vmatpush1.bf16.xpose.msra.mxu0 0
        %1973 = vmatprep.subr.bf16.mxu0 0
        %1974 = vmatpush1.bf16.xpose.msra.mxu0 0
        %1975 = vmatprep.subr.bf16.mxu0 0
        %1976 = vmatpush1.bf16.xpose.msra.mxu0 0
        %1977 = vmatprep.subr.bf16.mxu0 0
        %1978 = vmatpush1.bf16.xpose.msra.mxu0 0
        %1979 = vmatprep.subr.bf16.mxu0 0
        %1980 = vmatpush1.bf16.xpose.msra.mxu0 0
        %1981 = vmatprep.subr.bf16.mxu0 0
        %1982 = vmatpush1.bf16.xpose.msra.mxu0 0
        %1983 = vmatprep.subr.bf16.mxu0 0
        %1984 = vmatpush1.bf16.xpose.msra.mxu0 0
        %1985 = vmatprep.subr.bf16.mxu0 0
        %1986 = vmatpush1.bf16.xpose.msra.mxu0 0
        %1987 = vmatprep.subr.bf16.mxu0 0
        %1988 = vmatpush1.bf16.xpose.msra.mxu0 0
        %1989 = vmatprep.subr.bf16.mxu0 0
        %1990 = vmatpush1.bf16.xpose.msra.mxu0 0
        %1991 = vmatprep.mubr.bf16.mxu0 0
        %1992 = vmatmul.mubr.bf16.gmra.mrb[0].mxu0 %v1954
        %v1993 = vpop.f32.mrb[0].mxu0
        %v1994 = vadd.f32 0.0, %v1993
        %v1995 = vpop.f32.mrb[0].mxu0
        %v1996 = vpop.f32.mrb[0].mxu0
        %v1997 = vpop.f32.mrb[0].mxu0
        %1998 = vdwg.mxu0
        %v2000 = vsel %vm1814, %v1806, 0
        %v2003 = vsel %vm1814, %v1812, 0
        %2005 = vmatprep.subr.bf16.mxu0 0
        %2006 = vmatpush1.bf16.xpose.msra.mxu0 %v2003
        %2007 = vmatprep.subr.bf16.mxu0 0
        %2008 = vmatpush1.bf16.xpose.msra.mxu0 0
        %2009 = vmatprep.subr.bf16.mxu0 0
        %2010 = vmatpush1.bf16.xpose.msra.mxu0 0
        %2011 = vmatprep.subr.bf16.mxu0 0
        %2012 = vmatpush1.bf16.xpose.msra.mxu0 0
        %2013 = vmatprep.subr.bf16.mxu0 0
        %2014 = vmatpush1.bf16.xpose.msra.mxu0 0
        %2015 = vmatprep.subr.bf16.mxu0 0
        %2016 = vmatpush1.bf16.xpose.msra.mxu0 0
        %2017 = vmatprep.subr.bf16.mxu0 0
        %2018 = vmatpush1.bf16.xpose.msra.mxu0 0
        %2019 = vmatprep.subr.bf16.mxu0 0
        %2020 = vmatpush1.bf16.xpose.msra.mxu0 0
        %2021 = vmatprep.subr.bf16.mxu0 0
        %2022 = vmatpush1.bf16.xpose.msra.mxu0 0
        %2023 = vmatprep.subr.bf16.mxu0 0
        %2024 = vmatpush1.bf16.xpose.msra.mxu0 0
        %2025 = vmatprep.subr.bf16.mxu0 0
        %2026 = vmatpush1.bf16.xpose.msra.mxu0 0
        %2027 = vmatprep.subr.bf16.mxu0 0
        %2028 = vmatpush1.bf16.xpose.msra.mxu0 0
        %2029 = vmatprep.subr.bf16.mxu0 0
        %2030 = vmatpush1.bf16.xpose.msra.mxu0 0
        %2031 = vmatprep.subr.bf16.mxu0 0
        %2032 = vmatpush1.bf16.xpose.msra.mxu0 0
        %2033 = vmatprep.subr.bf16.mxu0 0
        %2034 = vmatpush1.bf16.xpose.msra.mxu0 0
        %2035 = vmatprep.subr.bf16.mxu0 0
        %2036 = vmatpush1.bf16.xpose.msra.mxu0 0
        %2037 = vmatprep.mubr.bf16.mxu0 0
        %2038 = vmatmul.mubr.bf16.gmra.mrb[0].mxu0 %v2000
        %v2039 = vpop.f32.mrb[0].mxu0
        %v2040 = vadd.f32 0.0, %v2039
        %v2041 = vpop.f32.mrb[0].mxu0
        %v2042 = vpop.f32.mrb[0].mxu0
        %v2043 = vpop.f32.mrb[0].mxu0
        %2044 = vdwg.mxu0
        %v2046 = vsel %vm1814, %v1807, 0
        %v2049 = vsel %vm1814, %v1813, 0
        %2051 = vmatprep.subr.bf16.mxu0 0
        %2052 = vmatpush1.bf16.xpose.msra.mxu0 %v2049
        %2053 = vmatprep.subr.bf16.mxu0 0
        %2054 = vmatpush1.bf16.xpose.msra.mxu0 0
        %2055 = vmatprep.subr.bf16.mxu0 0
        %2056 = vmatpush1.bf16.xpose.msra.mxu0 0
        %2057 = vmatprep.subr.bf16.mxu0 0
        %2058 = vmatpush1.bf16.xpose.msra.mxu0 0
        %2059 = vmatprep.subr.bf16.mxu0 0
        %2060 = vmatpush1.bf16.xpose.msra.mxu0 0
        %2061 = vmatprep.subr.bf16.mxu0 0
        %2062 = vmatpush1.bf16.xpose.msra.mxu0 0
        %2063 = vmatprep.subr.bf16.mxu0 0
        %2064 = vmatpush1.bf16.xpose.msra.mxu0 0
        %2065 = vmatprep.subr.bf16.mxu0 0
        %2066 = vmatpush1.bf16.xpose.msra.mxu0 0
        %2067 = vmatprep.subr.bf16.mxu0 0
        %2068 = vmatpush1.bf16.xpose.msra.mxu0 0
        %2069 = vmatprep.subr.bf16.mxu0 0
        %2070 = vmatpush1.bf16.xpose.msra.mxu0 0
        %2071 = vmatprep.subr.bf16.mxu0 0
        %2072 = vmatpush1.bf16.xpose.msra.mxu0 0
        %2073 = vmatprep.subr.bf16.mxu0 0
        %2074 = vmatpush1.bf16.xpose.msra.mxu0 0
        %2075 = vmatprep.subr.bf16.mxu0 0
        %2076 = vmatpush1.bf16.xpose.msra.mxu0 0
        %2077 = vmatprep.subr.bf16.mxu0 0
        %2078 = vmatpush1.bf16.xpose.msra.mxu0 0
        %2079 = vmatprep.subr.bf16.mxu0 0
        %2080 = vmatpush1.bf16.xpose.msra.mxu0 0
        %2081 = vmatprep.subr.bf16.mxu0 0
        %2082 = vmatpush1.bf16.xpose.msra.mxu0 0
        %2083 = vmatprep.mubr.bf16.mxu0 0
        %2084 = vmatmul.mubr.bf16.gmra.mrb[0].mxu0 %v2046
        %v2085 = vpop.f32.mrb[0].mxu0
        %v2086 = vadd.f32 0.0, %v2085
        %v2087 = vpop.f32.mrb[0].mxu0
        %v2088 = vpop.f32.mrb[0].mxu0
        %v2089 = vpop.f32.mrb[0].mxu0
        %2090 = vdwg.mxu0
        %v2091 = vmul.f32 %v1856, 0.35355338
        %v2092 = vmul.f32 %v1902, 0.35355338
        %v2093 = vmul.f32 %v1948, 0.35355338
        %v2094 = vmul.f32 %v1994, 0.35355338
        %v2095 = vmul.f32 %v2040, 0.35355338
        %v2096 = vmul.f32 %v2086, 0.35355338
        %v2097 = vsel %vm1814, %v2091, -inf
        %2098 = vmax.xlane.f32.xlu0 %v2097
        %v2099 = vpop.xlane.xlu0 %2098
        %v2100 = vsel %vm1814, %v2092, -inf
        %2101 = vmax.xlane.f32.xlu0 %v2100
        %v2102 = vpop.xlane.xlu0 %2101
        %v2103 = vsel %vm1814, %v2093, -inf
        %2104 = vmax.xlane.f32.xlu0 %v2103
        %v2105 = vpop.xlane.xlu0 %2104
        %v2106 = vsel %vm1814, %v2094, -inf
        %2107 = vmax.xlane.f32.xlu0 %v2106
        %v2108 = vpop.xlane.xlu0 %2107
        %v2109 = vsel %vm1814, %v2095, -inf
        %2110 = vmax.xlane.f32.xlu0 %v2109
        %v2111 = vpop.xlane.xlu0 %2110
        %v2112 = vsel %vm1814, %v2096, -inf
        %2113 = vmax.xlane.f32.xlu0 %v2112
        %v2114 = vpop.xlane.xlu0 %2113
        %v2115 = vsub.f32 %v2091, %v2099
        %v2116 = vsub.f32 %v2092, %v2102
        %v2117 = vsub.f32 %v2093, %v2105
        %v2118 = vsub.f32 %v2094, %v2108
        %v2119 = vsub.f32 %v2095, %v2111
        %v2120 = vsub.f32 %v2096, %v2114
        %v2121 = vmul.f32 %v2115, 1.442695
        %v2122 = vpow.pop %v2121
        %v2123 = vmul.f32 %v2116, 1.442695
        %v2124 = vpow.pop %v2123
        %v2125 = vmul.f32 %v2117, 1.442695
        %v2126 = vpow.pop %v2125
        %v2127 = vmul.f32 %v2118, 1.442695
        %v2128 = vpow.pop %v2127
        %v2129 = vmul.f32 %v2119, 1.442695
        %v2130 = vpow.pop %v2129
        %v2131 = vmul.f32 %v2120, 1.442695
        %v2132 = vpow.pop %v2131
        %v2133 = vsel %vm1814, %v2122, 0.0
        %2134 = vadd.xlane.f32.xlu0 %v2133
        %v2135 = vpop.xlane.xlu0 %2134
        %v2136 = vsel %vm1814, %v2124, 0.0
        %2137 = vadd.xlane.f32.xlu0 %v2136
        %v2138 = vpop.xlane.xlu0 %2137
        %v2139 = vsel %vm1814, %v2126, 0.0
        %2140 = vadd.xlane.f32.xlu0 %v2139
        %v2141 = vpop.xlane.xlu0 %2140
        %v2142 = vsel %vm1814, %v2128, 0.0
        %2143 = vadd.xlane.f32.xlu0 %v2142
        %v2144 = vpop.xlane.xlu0 %2143
        %v2145 = vsel %vm1814, %v2130, 0.0
        %2146 = vadd.xlane.f32.xlu0 %v2145
        %v2147 = vpop.xlane.xlu0 %2146
        %v2148 = vsel %vm1814, %v2132, 0.0
        %2149 = vadd.xlane.f32.xlu0 %v2148
        %v2150 = vpop.xlane.xlu0 %2149
        %v2151 = vrcp.pop %v2135
        %v2152 = vrcp.pop %v2138
        %v2153 = vrcp.pop %v2141
        %v2154 = vrcp.pop %v2144
        %v2155 = vrcp.pop %v2147
        %v2156 = vrcp.pop %v2150
        %v2157 = vmul.f32 %v2122, %v2151
        %v2158 = vmul.f32 %v2124, %v2152
        %v2159 = vmul.f32 %v2126, %v2153
        %v2160 = vmul.f32 %v2128, %v2154
        %v2161 = vmul.f32 %v2130, %v2155
        %v2162 = vmul.f32 %v2132, %v2156
        %v2163 = vpack.c.bf16 %v2157, %v2157
        %v2164 = vpack.c.bf16 %v2158, %v2158
        %v2165 = vpack.c.bf16 %v2159, %v2159
        %v2166 = vpack.c.bf16 %v2160, %v2160
        %v2167 = vpack.c.bf16 %v2161, %v2161
        %v2168 = vpack.c.bf16 %v2162, %v2162
        %v2169 = vpack.c.bf16 %v1796, %v1796
        %v2170 = vpack.c.bf16 %v1797, %v1797
        %v2171 = vpack.c.bf16 %v1798, %v1798
        %v2172 = vpack.c.bf16 %v1799, %v1799
        %v2173 = vpack.c.bf16 %v1800, %v1800
        %v2174 = vpack.c.bf16 %v1801, %v1801
        %v2176 = vsel %vm1814, %v2163, 0
        %vm2178 = vcmask 1043456
        %v2180 = vsel %vm2178, %v2169, 0
        %2182 = vmatprep.subr.bf16.mxu0 0
        %2183 = vmatpush1.bf16.msra.mxu0 %v2180
        %2184 = vmatprep.subr.bf16.mxu0 0
        %2185 = vmatpush1.bf16.msra.mxu0 0
        %2186 = vmatprep.subr.bf16.mxu0 0
        %2187 = vmatpush1.bf16.msra.mxu0 0
        %2188 = vmatprep.subr.bf16.mxu0 0
        %2189 = vmatpush1.bf16.msra.mxu0 0
        %2190 = vmatprep.subr.bf16.mxu0 0
        %2191 = vmatpush1.bf16.msra.mxu0 0
        %2192 = vmatprep.subr.bf16.mxu0 0
        %2193 = vmatpush1.bf16.msra.mxu0 0
        %2194 = vmatprep.subr.bf16.mxu0 0
        %2195 = vmatpush1.bf16.msra.mxu0 0
        %2196 = vmatprep.subr.bf16.mxu0 0
        %2197 = vmatpush1.bf16.msra.mxu0 0
        %2198 = vmatprep.subr.bf16.mxu0 0
        %2199 = vmatpush1.bf16.msra.mxu0 0
        %2200 = vmatprep.subr.bf16.mxu0 0
        %2201 = vmatpush1.bf16.msra.mxu0 0
        %2202 = vmatprep.subr.bf16.mxu0 0
        %2203 = vmatpush1.bf16.msra.mxu0 0
        %2204 = vmatprep.subr.bf16.mxu0 0
        %2205 = vmatpush1.bf16.msra.mxu0 0
        %2206 = vmatprep.subr.bf16.mxu0 0
        %2207 = vmatpush1.bf16.msra.mxu0 0
        %2208 = vmatprep.subr.bf16.mxu0 0
        %2209 = vmatpush1.bf16.msra.mxu0 0
        %2210 = vmatprep.subr.bf16.mxu0 0
        %2211 = vmatpush1.bf16.msra.mxu0 0
        %2212 = vmatprep.subr.bf16.mxu0 0
        %2213 = vmatpush1.bf16.msra.mxu0 0
        %2214 = vmatprep.mubr.bf16.mxu0 0
        %2215 = vmatmul.mubr.bf16.gmra.mrb[0].mxu0 %v2176
        %v2216 = vpop.f32.mrb[0].mxu0
        %v2217 = vadd.f32 0.0, %v2216
        %v2218 = vpop.f32.mrb[0].mxu0
        %v2219 = vpop.f32.mrb[0].mxu0
        %v2220 = vpop.f32.mrb[0].mxu0
        %2221 = vdwg.mxu0
        %v2223 = vsel %vm1814, %v2164, 0
        %v2226 = vsel %vm2178, %v2170, 0
        %2228 = vmatprep.subr.bf16.mxu0 0
        %2229 = vmatpush1.bf16.msra.mxu0 %v2226
        %2230 = vmatprep.subr.bf16.mxu0 0
        %2231 = vmatpush1.bf16.msra.mxu0 0
        %2232 = vmatprep.subr.bf16.mxu0 0
        %2233 = vmatpush1.bf16.msra.mxu0 0
        %2234 = vmatprep.subr.bf16.mxu0 0
        %2235 = vmatpush1.bf16.msra.mxu0 0
        %2236 = vmatprep.subr.bf16.mxu0 0
        %2237 = vmatpush1.bf16.msra.mxu0 0
        %2238 = vmatprep.subr.bf16.mxu0 0
        %2239 = vmatpush1.bf16.msra.mxu0 0
        %2240 = vmatprep.subr.bf16.mxu0 0
        %2241 = vmatpush1.bf16.msra.mxu0 0
        %2242 = vmatprep.subr.bf16.mxu0 0
        %2243 = vmatpush1.bf16.msra.mxu0 0
        %2244 = vmatprep.subr.bf16.mxu0 0
        %2245 = vmatpush1.bf16.msra.mxu0 0
        %2246 = vmatprep.subr.bf16.mxu0 0
        %2247 = vmatpush1.bf16.msra.mxu0 0
        %2248 = vmatprep.subr.bf16.mxu0 0
        %2249 = vmatpush1.bf16.msra.mxu0 0
        %2250 = vmatprep.subr.bf16.mxu0 0
        %2251 = vmatpush1.bf16.msra.mxu0 0
        %2252 = vmatprep.subr.bf16.mxu0 0
        %2253 = vmatpush1.bf16.msra.mxu0 0
        %2254 = vmatprep.subr.bf16.mxu0 0
        %2255 = vmatpush1.bf16.msra.mxu0 0
        %2256 = vmatprep.subr.bf16.mxu0 0
        %2257 = vmatpush1.bf16.msra.mxu0 0
        %2258 = vmatprep.subr.bf16.mxu0 0
        %2259 = vmatpush1.bf16.msra.mxu0 0
        %2260 = vmatprep.mubr.bf16.mxu0 0
        %2261 = vmatmul.mubr.bf16.gmra.mrb[0].mxu0 %v2223
        %v2262 = vpop.f32.mrb[0].mxu0
        %v2263 = vadd.f32 0.0, %v2262
        %v2264 = vpop.f32.mrb[0].mxu0
        %v2265 = vpop.f32.mrb[0].mxu0
        %v2266 = vpop.f32.mrb[0].mxu0
        %2267 = vdwg.mxu0
        %v2269 = vsel %vm1814, %v2165, 0
        %v2272 = vsel %vm2178, %v2171, 0
        %2274 = vmatprep.subr.bf16.mxu0 0
        %2275 = vmatpush1.bf16.msra.mxu0 %v2272
        %2276 = vmatprep.subr.bf16.mxu0 0
        %2277 = vmatpush1.bf16.msra.mxu0 0
        %2278 = vmatprep.subr.bf16.mxu0 0
        %2279 = vmatpush1.bf16.msra.mxu0 0
        %2280 = vmatprep.subr.bf16.mxu0 0
        %2281 = vmatpush1.bf16.msra.mxu0 0
        %2282 = vmatprep.subr.bf16.mxu0 0
        %2283 = vmatpush1.bf16.msra.mxu0 0
        %2284 = vmatprep.subr.bf16.mxu0 0
        %2285 = vmatpush1.bf16.msra.mxu0 0
        %2286 = vmatprep.subr.bf16.mxu0 0
        %2287 = vmatpush1.bf16.msra.mxu0 0
        %2288 = vmatprep.subr.bf16.mxu0 0
        %2289 = vmatpush1.bf16.msra.mxu0 0
        %2290 = vmatprep.subr.bf16.mxu0 0
        %2291 = vmatpush1.bf16.msra.mxu0 0
        %2292 = vmatprep.subr.bf16.mxu0 0
        %2293 = vmatpush1.bf16.msra.mxu0 0
        %2294 = vmatprep.subr.bf16.mxu0 0
        %2295 = vmatpush1.bf16.msra.mxu0 0
        %2296 = vmatprep.subr.bf16.mxu0 0
        %2297 = vmatpush1.bf16.msra.mxu0 0
        %2298 = vmatprep.subr.bf16.mxu0 0
        %2299 = vmatpush1.bf16.msra.mxu0 0
        %2300 = vmatprep.subr.bf16.mxu0 0
        %2301 = vmatpush1.bf16.msra.mxu0 0
        %2302 = vmatprep.subr.bf16.mxu0 0
        %2303 = vmatpush1.bf16.msra.mxu0 0
        %2304 = vmatprep.subr.bf16.mxu0 0
        %2305 = vmatpush1.bf16.msra.mxu0 0
        %2306 = vmatprep.mubr.bf16.mxu0 0
        %2307 = vmatmul.mubr.bf16.gmra.mrb[0].mxu0 %v2269
        %v2308 = vpop.f32.mrb[0].mxu0
        %v2309 = vadd.f32 0.0, %v2308
        %v2310 = vpop.f32.mrb[0].mxu0
        %v2311 = vpop.f32.mrb[0].mxu0
        %v2312 = vpop.f32.mrb[0].mxu0
        %2313 = vdwg.mxu0
        %v2315 = vsel %vm1814, %v2166, 0
        %v2318 = vsel %vm2178, %v2172, 0
        %2320 = vmatprep.subr.bf16.mxu0 0
        %2321 = vmatpush1.bf16.msra.mxu0 %v2318
        %2322 = vmatprep.subr.bf16.mxu0 0
        %2323 = vmatpush1.bf16.msra.mxu0 0
        %2324 = vmatprep.subr.bf16.mxu0 0
        %2325 = vmatpush1.bf16.msra.mxu0 0
        %2326 = vmatprep.subr.bf16.mxu0 0
        %2327 = vmatpush1.bf16.msra.mxu0 0
        %2328 = vmatprep.subr.bf16.mxu0 0
        %2329 = vmatpush1.bf16.msra.mxu0 0
        %2330 = vmatprep.subr.bf16.mxu0 0
        %2331 = vmatpush1.bf16.msra.mxu0 0
        %2332 = vmatprep.subr.bf16.mxu0 0
        %2333 = vmatpush1.bf16.msra.mxu0 0
        %2334 = vmatprep.subr.bf16.mxu0 0
        %2335 = vmatpush1.bf16.msra.mxu0 0
        %2336 = vmatprep.subr.bf16.mxu0 0
        %2337 = vmatpush1.bf16.msra.mxu0 0
        %2338 = vmatprep.subr.bf16.mxu0 0
        %2339 = vmatpush1.bf16.msra.mxu0 0
        %2340 = vmatprep.subr.bf16.mxu0 0
        %2341 = vmatpush1.bf16.msra.mxu0 0
        %2342 = vmatprep.subr.bf16.mxu0 0
        %2343 = vmatpush1.bf16.msra.mxu0 0
        %2344 = vmatprep.subr.bf16.mxu0 0
        %2345 = vmatpush1.bf16.msra.mxu0 0
        %2346 = vmatprep.subr.bf16.mxu0 0
        %2347 = vmatpush1.bf16.msra.mxu0 0
        %2348 = vmatprep.subr.bf16.mxu0 0
        %2349 = vmatpush1.bf16.msra.mxu0 0
        %2350 = vmatprep.subr.bf16.mxu0 0
        %2351 = vmatpush1.bf16.msra.mxu0 0
        %2352 = vmatprep.mubr.bf16.mxu0 0
        %2353 = vmatmul.mubr.bf16.gmra.mrb[0].mxu0 %v2315
        %v2354 = vpop.f32.mrb[0].mxu0
        %v2355 = vadd.f32 0.0, %v2354
        %v2356 = vpop.f32.mrb[0].mxu0
        %v2357 = vpop.f32.mrb[0].mxu0
        %v2358 = vpop.f32.mrb[0].mxu0
        %2359 = vdwg.mxu0
        %v2361 = vsel %vm1814, %v2167, 0
        %v2364 = vsel %vm2178, %v2173, 0
        %2366 = vmatprep.subr.bf16.mxu0 0
        %2367 = vmatpush1.bf16.msra.mxu0 %v2364
        %2368 = vmatprep.subr.bf16.mxu0 0
        %2369 = vmatpush1.bf16.msra.mxu0 0
        %2370 = vmatprep.subr.bf16.mxu0 0
        %2371 = vmatpush1.bf16.msra.mxu0 0
        %2372 = vmatprep.subr.bf16.mxu0 0
        %2373 = vmatpush1.bf16.msra.mxu0 0
        %2374 = vmatprep.subr.bf16.mxu0 0
        %2375 = vmatpush1.bf16.msra.mxu0 0
        %2376 = vmatprep.subr.bf16.mxu0 0
        %2377 = vmatpush1.bf16.msra.mxu0 0
        %2378 = vmatprep.subr.bf16.mxu0 0
        %2379 = vmatpush1.bf16.msra.mxu0 0
        %2380 = vmatprep.subr.bf16.mxu0 0
        %2381 = vmatpush1.bf16.msra.mxu0 0
        %2382 = vmatprep.subr.bf16.mxu0 0
        %2383 = vmatpush1.bf16.msra.mxu0 0
        %2384 = vmatprep.subr.bf16.mxu0 0
        %2385 = vmatpush1.bf16.msra.mxu0 0
        %2386 = vmatprep.subr.bf16.mxu0 0
        %2387 = vmatpush1.bf16.msra.mxu0 0
        %2388 = vmatprep.subr.bf16.mxu0 0
        %2389 = vmatpush1.bf16.msra.mxu0 0
        %2390 = vmatprep.subr.bf16.mxu0 0
        %2391 = vmatpush1.bf16.msra.mxu0 0
        %2392 = vmatprep.subr.bf16.mxu0 0
        %2393 = vmatpush1.bf16.msra.mxu0 0
        %2394 = vmatprep.subr.bf16.mxu0 0
        %2395 = vmatpush1.bf16.msra.mxu0 0
        %2396 = vmatprep.subr.bf16.mxu0 0
        %2397 = vmatpush1.bf16.msra.mxu0 0
        %2398 = vmatprep.mubr.bf16.mxu0 0
        %2399 = vmatmul.mubr.bf16.gmra.mrb[0].mxu0 %v2361
        %v2400 = vpop.f32.mrb[0].mxu0
        %v2401 = vadd.f32 0.0, %v2400
        %v2402 = vpop.f32.mrb[0].mxu0
        %v2403 = vpop.f32.mrb[0].mxu0
        %v2404 = vpop.f32.mrb[0].mxu0
        %2405 = vdwg.mxu0
        %v2407 = vsel %vm1814, %v2168, 0
        %v2410 = vsel %vm2178, %v2174, 0
        %2412 = vmatprep.subr.bf16.mxu0 0
        %2413 = vmatpush1.bf16.msra.mxu0 %v2410
        %2414 = vmatprep.subr.bf16.mxu0 0
        %2415 = vmatpush1.bf16.msra.mxu0 0
        %2416 = vmatprep.subr.bf16.mxu0 0
        %2417 = vmatpush1.bf16.msra.mxu0 0
        %2418 = vmatprep.subr.bf16.mxu0 0
        %2419 = vmatpush1.bf16.msra.mxu0 0
        %2420 = vmatprep.subr.bf16.mxu0 0
        %2421 = vmatpush1.bf16.msra.mxu0 0
        %2422 = vmatprep.subr.bf16.mxu0 0
        %2423 = vmatpush1.bf16.msra.mxu0 0
        %2424 = vmatprep.subr.bf16.mxu0 0
        %2425 = vmatpush1.bf16.msra.mxu0 0
        %2426 = vmatprep.subr.bf16.mxu0 0
        %2427 = vmatpush1.bf16.msra.mxu0 0
        %2428 = vmatprep.subr.bf16.mxu0 0
        %2429 = vmatpush1.bf16.msra.mxu0 0
        %2430 = vmatprep.subr.bf16.mxu0 0
        %2431 = vmatpush1.bf16.msra.mxu0 0
        %2432 = vmatprep.subr.bf16.mxu0 0
        %2433 = vmatpush1.bf16.msra.mxu0 0
        %2434 = vmatprep.subr.bf16.mxu0 0
        %2435 = vmatpush1.bf16.msra.mxu0 0
        %2436 = vmatprep.subr.bf16.mxu0 0
        %2437 = vmatpush1.bf16.msra.mxu0 0
        %2438 = vmatprep.subr.bf16.mxu0 0
        %2439 = vmatpush1.bf16.msra.mxu0 0
        %2440 = vmatprep.subr.bf16.mxu0 0
        %2441 = vmatpush1.bf16.msra.mxu0 0
        %2442 = vmatprep.subr.bf16.mxu0 0
        %2443 = vmatpush1.bf16.msra.mxu0 0
        %2444 = vmatprep.mubr.bf16.mxu0 0
        %2445 = vmatmul.mubr.bf16.gmra.mrb[0].mxu0 %v2407
        %v2446 = vpop.f32.mrb[0].mxu0
        %v2447 = vadd.f32 0.0, %v2446
        %v2448 = vpop.f32.mrb[0].mxu0
        %v2449 = vpop.f32.mrb[0].mxu0
        %v2450 = vpop.f32.mrb[0].mxu0
        %2451 = vdwg.mxu0
        %v2452 = vcombine.low %v2217, %v2309
        %v2453 = vcombine.high %v2217, %v2309
        %v2455 = vunpack.c.l.s4 1983009808
        %v2456 = vunpack.c.0.s8 %v2455
        %v2457 = vlaneseq
        %v2458 = vshrl.u32 %v2457, 7
        %v2459 = vsub.s32 %v2456, %v2458
        %v2460 = vrot.slane %v2452, %v2459
        %v2462 = vunpack.c.l.s4 1983009808
        %v2463 = vunpack.c.0.s8 %v2462
        %v2464 = vlaneseq
        %v2465 = vshrl.u32 %v2464, 7
        %v2466 = vsub.s32 %v2463, %v2465
        %v2467 = vrot.slane %v2453, %v2466
        %v2468 = vcombine.low %v2263, %v2355
        %v2469 = vcombine.high %v2263, %v2355
        %v2471 = vunpack.c.l.s4 1983009808
        %v2472 = vunpack.c.0.s8 %v2471
        %v2473 = vlaneseq
        %v2474 = vshrl.u32 %v2473, 7
        %v2475 = vsub.s32 %v2472, %v2474
        %v2476 = vrot.slane %v2468, %v2475
        %v2478 = vunpack.c.l.s4 1983009808
        %v2479 = vunpack.c.0.s8 %v2478
        %v2480 = vlaneseq
        %v2481 = vshrl.u32 %v2480, 7
        %v2482 = vsub.s32 %v2479, %v2481
        %v2483 = vrot.slane %v2469, %v2482
        %v2484 = vcombine.high %v2401, 0.0
        %v2486 = vunpack.c.l.s4 1983009808
        %v2487 = vunpack.c.0.s8 %v2486
        %v2488 = vlaneseq
        %v2489 = vshrl.u32 %v2488, 7
        %v2490 = vsub.s32 %v2487, %v2489
        %v2491 = vrot.slane %v2401, %v2490
        %v2493 = vunpack.c.l.s4 1983009808
        %v2494 = vunpack.c.0.s8 %v2493
        %v2495 = vlaneseq
        %v2496 = vshrl.u32 %v2495, 7
        %v2497 = vsub.s32 %v2494, %v2496
        %v2498 = vrot.slane %v2484, %v2497
        %v2499 = vcombine.high %v2447, 0.0
        %v2501 = vunpack.c.l.s4 1983009808
        %v2502 = vunpack.c.0.s8 %v2501
        %v2503 = vlaneseq
        %v2504 = vshrl.u32 %v2503, 7
        %v2505 = vsub.s32 %v2502, %v2504
        %v2506 = vrot.slane %v2447, %v2505
        %v2508 = vunpack.c.l.s4 1983009808
        %v2509 = vunpack.c.0.s8 %v2508
        %v2510 = vlaneseq
        %v2511 = vshrl.u32 %v2510, 7
        %v2512 = vsub.s32 %v2509, %v2511
        %v2513 = vrot.slane %v2499, %v2512
        %v2514 = vcombine.low %v2460, %v2476
        %v2515 = vcombine.high %v2460, %v2476
        %v2517 = vunpack.c.l.s4 1934713408
        %v2518 = vunpack.c.0.s8 %v2517
        %v2519 = vlaneseq
        %v2520 = vshrl.u32 %v2519, 7
        %v2521 = vsub.s32 %v2518, %v2520
        %v2522 = vrot.slane %v2514, %v2521
        %v2524 = vunpack.c.l.s4 1934713408
        %v2525 = vunpack.c.0.s8 %v2524
        %v2526 = vlaneseq
        %v2527 = vshrl.u32 %v2526, 7
        %v2528 = vsub.s32 %v2525, %v2527
        %v2529 = vrot.slane %v2515, %v2528
        %v2530 = vcombine.low %v2467, %v2483
        %v2531 = vcombine.high %v2467, %v2483
        %v2533 = vunpack.c.l.s4 1934713408
        %v2534 = vunpack.c.0.s8 %v2533
        %v2535 = vlaneseq
        %v2536 = vshrl.u32 %v2535, 7
        %v2537 = vsub.s32 %v2534, %v2536
        %v2538 = vrot.slane %v2530, %v2537
        %v2540 = vunpack.c.l.s4 1934713408
        %v2541 = vunpack.c.0.s8 %v2540
        %v2542 = vlaneseq
        %v2543 = vshrl.u32 %v2542, 7
        %v2544 = vsub.s32 %v2541, %v2543
        %v2545 = vrot.slane %v2531, %v2544
        %v2546 = vcombine.low %v2491, %v2506
        %v2547 = vcombine.high %v2491, %v2506
        %v2549 = vunpack.c.l.s4 1934713408
        %v2550 = vunpack.c.0.s8 %v2549
        %v2551 = vlaneseq
        %v2552 = vshrl.u32 %v2551, 7
        %v2553 = vsub.s32 %v2550, %v2552
        %v2554 = vrot.slane %v2546, %v2553
        %v2556 = vunpack.c.l.s4 1934713408
        %v2557 = vunpack.c.0.s8 %v2556
        %v2558 = vlaneseq
        %v2559 = vshrl.u32 %v2558, 7
        %v2560 = vsub.s32 %v2557, %v2559
        %v2561 = vrot.slane %v2547, %v2560
        %v2562 = vcombine.low %v2498, %v2513
        %v2563 = vcombine.high %v2498, %v2513
        %v2565 = vunpack.c.l.s4 1934713408
        %v2566 = vunpack.c.0.s8 %v2565
        %v2567 = vlaneseq
        %v2568 = vshrl.u32 %v2567, 7
        %v2569 = vsub.s32 %v2566, %v2568
        %v2570 = vrot.slane %v2562, %v2569
        %v2572 = vunpack.c.l.s4 1934713408
        %v2573 = vunpack.c.0.s8 %v2572
        %v2574 = vlaneseq
        %v2575 = vshrl.u32 %v2574, 7
        %v2576 = vsub.s32 %v2573, %v2575
        %v2577 = vrot.slane %v2563, %v2576
        %v2578 = vcombine.low %v2522, %v2554
        %v2579 = vcombine.high %v2522, %v2554
        %v2580 = vcombine.low %v2529, %v2561
        %v2581 = vcombine.high %v2529, %v2561
        %v2582 = vcombine.low %v2538, %v2570
        %v2583 = vcombine.high %v2538, %v2570
        %v2584 = vcombine.low %v2545, %v2577
        %v2585 = vcombine.high %v2545, %v2577
        %v2586 = vcombine.low %v2578, %v2580
        %v2587 = vcombine.high %v2578, %v2580
        %v2589 = vunpack.c.l.s4 1983009808
        %v2590 = vunpack.c.0.s8 %v2589
        %v2591 = vlaneseq
        %v2592 = vshrl.u32 %v2591, 7
        %v2593 = vsub.s32 %v2590, %v2592
        %v2594 = vrot.slane %v2586, %v2593
        %v2596 = vunpack.c.l.s4 1983009808
        %v2597 = vunpack.c.0.s8 %v2596
        %v2598 = vlaneseq
        %v2599 = vshrl.u32 %v2598, 7
        %v2600 = vsub.s32 %v2597, %v2599
        %v2601 = vrot.slane %v2587, %v2600
        %v2602 = vcombine.low %v2579, %v2581
        %v2603 = vcombine.high %v2579, %v2581
        %v2605 = vunpack.c.l.s4 1983009808
        %v2606 = vunpack.c.0.s8 %v2605
        %v2607 = vlaneseq
        %v2608 = vshrl.u32 %v2607, 7
        %v2609 = vsub.s32 %v2606, %v2608
        %v2610 = vrot.slane %v2602, %v2609
        %v2612 = vunpack.c.l.s4 1983009808
        %v2613 = vunpack.c.0.s8 %v2612
        %v2614 = vlaneseq
        %v2615 = vshrl.u32 %v2614, 7
        %v2616 = vsub.s32 %v2613, %v2615
        %v2617 = vrot.slane %v2603, %v2616
        %v2618 = vcombine.low %v2582, %v2584
        %v2619 = vcombine.high %v2582, %v2584
        %v2621 = vunpack.c.l.s4 1983009808
        %v2622 = vunpack.c.0.s8 %v2621
        %v2623 = vlaneseq
        %v2624 = vshrl.u32 %v2623, 7
        %v2625 = vsub.s32 %v2622, %v2624
        %v2626 = vrot.slane %v2618, %v2625
        %v2628 = vunpack.c.l.s4 1983009808
        %v2629 = vunpack.c.0.s8 %v2628
        %v2630 = vlaneseq
        %v2631 = vshrl.u32 %v2630, 7
        %v2632 = vsub.s32 %v2629, %v2631
        %v2633 = vrot.slane %v2619, %v2632
        %v2634 = vcombine.low %v2583, %v2585
        %v2635 = vcombine.high %v2583, %v2585
        %v2637 = vunpack.c.l.s4 1983009808
        %v2638 = vunpack.c.0.s8 %v2637
        %v2639 = vlaneseq
        %v2640 = vshrl.u32 %v2639, 7
        %v2641 = vsub.s32 %v2638, %v2640
        %v2642 = vrot.slane %v2634, %v2641
        %v2644 = vunpack.c.l.s4 1983009808
        %v2645 = vunpack.c.0.s8 %v2644
        %v2646 = vlaneseq
        %v2647 = vshrl.u32 %v2646, 7
        %v2648 = vsub.s32 %v2645, %v2647
        %v2649 = vrot.slane %v2635, %v2648
        %v2650 = vcombine.low %v2594, %v2610
        %v2651 = vcombine.high %v2594, %v2610
        %v2653 = vunpack.c.l.s4 1934713408
        %v2654 = vunpack.c.0.s8 %v2653
        %v2655 = vlaneseq
        %v2656 = vshrl.u32 %v2655, 7
        %v2657 = vsub.s32 %v2654, %v2656
        %v2658 = vrot.slane %v2650, %v2657
        %v2660 = vunpack.c.l.s4 1934713408
        %v2661 = vunpack.c.0.s8 %v2660
        %v2662 = vlaneseq
        %v2663 = vshrl.u32 %v2662, 7
        %v2664 = vsub.s32 %v2661, %v2663
        %v2665 = vrot.slane %v2651, %v2664
        %v2666 = vcombine.low %v2601, %v2617
        %v2668 = vunpack.c.l.s4 1934713408
        %v2669 = vunpack.c.0.s8 %v2668
        %v2670 = vlaneseq
        %v2671 = vshrl.u32 %v2670, 7
        %v2672 = vsub.s32 %v2669, %v2671
        %v2673 = vrot.slane %v2666, %v2672
        %v2674 = vcombine.low %v2626, %v2642
        %v2675 = vcombine.high %v2626, %v2642
        %v2677 = vunpack.c.l.s4 1934713408
        %v2678 = vunpack.c.0.s8 %v2677
        %v2679 = vlaneseq
        %v2680 = vshrl.u32 %v2679, 7
        %v2681 = vsub.s32 %v2678, %v2680
        %v2682 = vrot.slane %v2674, %v2681
        %v2684 = vunpack.c.l.s4 1934713408
        %v2685 = vunpack.c.0.s8 %v2684
        %v2686 = vlaneseq
        %v2687 = vshrl.u32 %v2686, 7
        %v2688 = vsub.s32 %v2685, %v2687
        %v2689 = vrot.slane %v2675, %v2688
        %v2690 = vcombine.low %v2633, %v2649
        %v2692 = vunpack.c.l.s4 1934713408
        %v2693 = vunpack.c.0.s8 %v2692
        %v2694 = vlaneseq
        %v2695 = vshrl.u32 %v2694, 7
        %v2696 = vsub.s32 %v2693, %v2695
        %v2697 = vrot.slane %v2690, %v2696
        %v2698 = vcombine.low %v2658, %v2682
        %v2699 = vcombine.high %v2658, %v2682
        %v2700 = vcombine.low %v2665, %v2689
        %v2701 = vcombine.high %v2665, %v2689
        %v2702 = vcombine.low %v2673, %v2697
        %v2703 = vcombine.high %v2673, %v2697
        %2705 = vrot.lane.b32.xlu0 %v2699, 8
        %v2706 = vpop.permute.xlu0 %2705
        %2709 = vrot.lane.b32.xlu0 %v2700, 16
        %v2710 = vpop.permute.xlu0 %2709
        %2713 = vrot.lane.b32.xlu0 %v2701, 24
        %v2714 = vpop.permute.xlu0 %2713
        %2717 = vrot.lane.b32.xlu0 %v2702, 32
        %v2718 = vpop.permute.xlu0 %2717
        %2721 = vrot.lane.b32.xlu0 %v2703, 40
        %v2722 = vpop.permute.xlu0 %2721
        %v2724 = vsel %vm1814, %v2698, %v2706
        %vm2725 = vcmask 130048
        %v2726 = vsel %vm2725, %v2724, %v2710
        %vm2727 = vcmask 195584
        %v2728 = vsel %vm2727, %v2726, %v2714
        %vm2729 = vcmask 261120
        %v2730 = vsel %vm2729, %v2728, %v2718
        %vm2731 = vcmask 326656
        %v2732 = vsel %vm2731, %v2730, %v2722
        %v2733 = vpack.c.bf16 %v2732, %v2732
        %v2734 = vld [vmem:[%s716] sm:$0xf]
        %v2735 = vld [vmem:[%s716 + $0x4] sm:$0xf]
        %v2736 = vld [vmem:[%s716 + $0x8] sm:$0xf]
        %v2737 = vld [vmem:[%s716 + $0xc] sm:$0xf]
        %v2738 = vld [vmem:[%s716 + $0x10] sm:$0xf]
        %v2739 = vld [vmem:[%s716 + $0x14] sm:$0xf]
        %v2740 = vld [vmem:[%s724] sm:$0x1]
        %v2742 = vlaneseq
        %v2743 = vshrl.u32 %v2742, 7
        %v2744 = vsub.s32 0, %v2743
        %v2745 = vrot.slane %v2740, %v2744
        %v2753 = vunpack.c.l.b16 %v2734
        %v2754 = vunpack.c.l.b16 %v2735
        %v2755 = vunpack.c.l.b16 %v2736
        %v2756 = vunpack.c.l.b16 %v2737
        %v2757 = vunpack.c.l.b16 %v2738
        %v2758 = vunpack.c.l.b16 %v2739
        %v2759 = vpack.c.b16 %v2754, %v2753
        %v2760 = vpack.c.b16 %v2756, %v2755
        %v2761 = vpack.c.b16 %v2758, %v2757
        %v2766 = vsel %vm944, %v2733, 0
        %2768 = vmatprep.subr.bf16.mxu0 0
        %2769 = vmatpush1.bf16.msra.mxu0 %v2759
        %2770 = vmatprep.subr.bf16.mxu0 0
        %2771 = vmatpush1.bf16.msra.mxu0 %v2760
        %2772 = vmatprep.subr.bf16.mxu0 0
        %2773 = vmatpush1.bf16.msra.mxu0 %v2761
        %2774 = vmatprep.subr.bf16.mxu0 0
        %2775 = vmatpush1.bf16.msra.mxu0 0
        %2776 = vmatprep.subr.bf16.mxu0 0
        %2777 = vmatpush1.bf16.msra.mxu0 0
        %2778 = vmatprep.subr.bf16.mxu0 0
        %2779 = vmatpush1.bf16.msra.mxu0 0
        %2780 = vmatprep.subr.bf16.mxu0 0
        %2781 = vmatpush1.bf16.msra.mxu0 0
        %2782 = vmatprep.subr.bf16.mxu0 0
        %2783 = vmatpush1.bf16.msra.mxu0 0
        %2784 = vmatprep.subr.bf16.mxu0 0
        %2785 = vmatpush1.bf16.msra.mxu0 0
        %2786 = vmatprep.subr.bf16.mxu0 0
        %2787 = vmatpush1.bf16.msra.mxu0 0
        %2788 = vmatprep.subr.bf16.mxu0 0
        %2789 = vmatpush1.bf16.msra.mxu0 0
        %2790 = vmatprep.subr.bf16.mxu0 0
        %2791 = vmatpush1.bf16.msra.mxu0 0
        %2792 = vmatprep.subr.bf16.mxu0 0
        %2793 = vmatpush1.bf16.msra.mxu0 0
        %2794 = vmatprep.subr.bf16.mxu0 0
        %2795 = vmatpush1.bf16.msra.mxu0 0
        %2796 = vmatprep.subr.bf16.mxu0 0
        %2797 = vmatpush1.bf16.msra.mxu0 0
        %2798 = vmatprep.subr.bf16.mxu0 0
        %2799 = vmatpush1.bf16.msra.mxu0 0
        %2800 = vmatprep.mubr.bf16.mxu0 0
        %2801 = vmatmul.mubr.bf16.gmra.mrb[0].mxu0 %v2766
        %v2802 = vpop.f32.mrb[0].mxu0
        %v2803 = vadd.f32 %v2745, %v2802
        %v2804 = vpop.f32.mrb[0].mxu0
        %v2805 = vpop.f32.mrb[0].mxu0
        %v2806 = vpop.f32.mrb[0].mxu0
        %2807 = vdwg.mxu0
        %v2808 = vadd.f32 %v894, %v2803
        %v2809 = vld [vmem:[%s766] sm:$0x1]
        %v2810 = vld [vmem:[%s774] sm:$0x1]
        %v2811 = vsel %vm944, %v2808, 0.0
        %2812 = vadd.xlane.f32.xlu0 %v2811
        %v2813 = vpop.xlane.xlu0 %2812
        %v2814 = vrcp.pop 48.0
        %v2815 = vmul.f32 %v2813, %v2814
        %v2816 = vsub.f32 %v2808, %v2815
        %v2817 = vmul.f32 %v2816, %v2816
        %v2818 = vsel %vm944, %v2817, 0.0
        %2819 = vadd.xlane.f32.xlu0 %v2818
        %v2820 = vpop.xlane.xlu0 %2819
        %v2821 = vmul.f32 %v2820, %v2814
        %v2822 = vadd.f32 %v2821, 1e-05
        %v2823 = vrsqrt.pop %v2822
        %v2824 = vmul.f32 %v2816, %v2823
        %v2826 = vlaneseq
        %v2827 = vshrl.u32 %v2826, 7
        %v2828 = vsub.s32 0, %v2827
        %v2829 = vrot.slane %v2809, %v2828
        %v2831 = vmul.f32 %v2824, %v2829
        %v2833 = vlaneseq
        %v2834 = vshrl.u32 %v2833, 7
        %v2835 = vsub.s32 0, %v2834
        %v2836 = vrot.slane %v2810, %v2835
        %v2838 = vadd.f32 %v2831, %v2836
        %v2839 = vpack.c.bf16 %v2838, %v2838
        %v2840 = vld [vmem:[%s733] sm:$0xf]
        %v2841 = vld [vmem:[%s733 + $0x4] sm:$0xf]
        %v2842 = vld [vmem:[%s733 + $0x8] sm:$0xf]
        %v2843 = vld [vmem:[%s733 + $0xc] sm:$0xf]
        %v2844 = vld [vmem:[%s733 + $0x10] sm:$0xf]
        %v2845 = vld [vmem:[%s733 + $0x14] sm:$0xf]
        %v2846 = vld [vmem:[%s741] sm:$0x1]
        %v2848 = vlaneseq
        %v2849 = vshrl.u32 %v2848, 7
        %v2850 = vsub.s32 0, %v2849
        %v2851 = vrot.slane %v2846, %v2850
        %v2859 = vunpack.c.l.b16 %v2840
        %v2860 = vunpack.c.l.b16 %v2841
        %v2861 = vunpack.c.l.b16 %v2842
        %v2862 = vunpack.c.l.b16 %v2843
        %v2863 = vunpack.c.l.b16 %v2844
        %v2864 = vunpack.c.l.b16 %v2845
        %v2865 = vpack.c.b16 %v2860, %v2859
        %v2866 = vpack.c.b16 %v2862, %v2861
        %v2867 = vpack.c.b16 %v2864, %v2863
        %v2872 = vsel %vm944, %v2839, 0
        %2874 = vmatprep.subr.bf16.mxu0 0
        %2875 = vmatpush1.bf16.msra.mxu0 %v2865
        %2876 = vmatprep.subr.bf16.mxu0 0
        %2877 = vmatpush1.bf16.msra.mxu0 %v2866
        %2878 = vmatprep.subr.bf16.mxu0 0
        %2879 = vmatpush1.bf16.msra.mxu0 %v2867
        %2880 = vmatprep.subr.bf16.mxu0 0
        %2881 = vmatpush1.bf16.msra.mxu0 0
        %2882 = vmatprep.subr.bf16.mxu0 0
        %2883 = vmatpush1.bf16.msra.mxu0 0
        %2884 = vmatprep.subr.bf16.mxu0 0
        %2885 = vmatpush1.bf16.msra.mxu0 0
        %2886 = vmatprep.subr.bf16.mxu0 0
        %2887 = vmatpush1.bf16.msra.mxu0 0
        %2888 = vmatprep.subr.bf16.mxu0 0
        %2889 = vmatpush1.bf16.msra.mxu0 0
        %2890 = vmatprep.subr.bf16.mxu0 0
        %2891 = vmatpush1.bf16.msra.mxu0 0
        %2892 = vmatprep.subr.bf16.mxu0 0
        %2893 = vmatpush1.bf16.msra.mxu0 0
        %2894 = vmatprep.subr.bf16.mxu0 0
        %2895 = vmatpush1.bf16.msra.mxu0 0
        %2896 = vmatprep.subr.bf16.mxu0 0
        %2897 = vmatpush1.bf16.msra.mxu0 0
        %2898 = vmatprep.subr.bf16.mxu0 0
        %2899 = vmatpush1.bf16.msra.mxu0 0
        %2900 = vmatprep.subr.bf16.mxu0 0
        %2901 = vmatpush1.bf16.msra.mxu0 0
        %2902 = vmatprep.subr.bf16.mxu0 0
        %2903 = vmatpush1.bf16.msra.mxu0 0
        %2904 = vmatprep.subr.bf16.mxu0 0
        %2905 = vmatpush1.bf16.msra.mxu0 0
        %2906 = vmatprep.mubr.bf16.mxu0 0
        %2907 = vmatmul.mubr.bf16.gmra.mrb[0].mxu0 %v2872
        %v2908 = vpop.f32.mrb[0].mxu0
        %v2909 = vadd.f32 %v2851, %v2908
        %v2910 = vpop.f32.mrb[0].mxu0
        %v2911 = vpop.f32.mrb[0].mxu0
        %v2912 = vpop.f32.mrb[0].mxu0
        %2913 = vdwg.mxu0
        %v2914 = vmax.f32 %v2909, 0.0
        %v2915 = vpack.c.bf16 %v2914, %v2914
        %v2916 = vld [vmem:[%s750] sm:$0xf]
        %v2917 = vld [vmem:[%s750 + $0x4] sm:$0xf]
        %v2918 = vld [vmem:[%s750 + $0x8] sm:$0xf]
        %v2919 = vld [vmem:[%s750 + $0xc] sm:$0xf]
        %v2920 = vld [vmem:[%s750 + $0x10] sm:$0xf]
        %v2921 = vld [vmem:[%s750 + $0x14] sm:$0xf]
        %v2922 = vld [vmem:[%s750 + $0x18] sm:$0xf]
        %v2923 = vld [vmem:[%s750 + $0x1c] sm:$0xf]
        %v2924 = vld [vmem:[%s750 + $0x20] sm:$0xf]
        %v2925 = vld [vmem:[%s750 + $0x24] sm:$0xf]
        %v2926 = vld [vmem:[%s750 + $0x28] sm:$0xf]
        %v2927 = vld [vmem:[%s750 + $0x2c] sm:$0xf]
        %v2928 = vld [vmem:[%s758] sm:$0x1]
        %v2930 = vlaneseq
        %v2931 = vshrl.u32 %v2930, 7
        %v2932 = vsub.s32 0, %v2931
        %v2933 = vrot.slane %v2928, %v2932
        %v2947 = vunpack.c.l.b16 %v2916
        %v2948 = vunpack.c.l.b16 %v2917
        %v2949 = vunpack.c.l.b16 %v2918
        %v2950 = vunpack.c.l.b16 %v2919
        %v2951 = vunpack.c.l.b16 %v2920
        %v2952 = vunpack.c.l.b16 %v2921
        %v2953 = vunpack.c.l.b16 %v2922
        %v2954 = vunpack.c.l.b16 %v2923
        %v2955 = vunpack.c.l.b16 %v2924
        %v2956 = vunpack.c.l.b16 %v2925
        %v2957 = vunpack.c.l.b16 %v2926
        %v2958 = vunpack.c.l.b16 %v2927
        %v2959 = vpack.c.b16 %v2948, %v2947
        %v2960 = vpack.c.b16 %v2950, %v2949
        %v2961 = vpack.c.b16 %v2952, %v2951
        %v2962 = vpack.c.b16 %v2954, %v2953
        %v2963 = vpack.c.b16 %v2956, %v2955
        %v2964 = vpack.c.b16 %v2958, %v2957
        %vm2971 = vcmask 785408
        %v2973 = vsel %vm2971, %v2915, 0
        %2975 = vmatprep.subr.bf16.mxu0 0
        %2976 = vmatpush1.bf16.msra.mxu0 %v2959
        %2977 = vmatprep.subr.bf16.mxu0 0
        %2978 = vmatpush1.bf16.msra.mxu0 %v2960
        %2979 = vmatprep.subr.bf16.mxu0 0
        %2980 = vmatpush1.bf16.msra.mxu0 %v2961
        %2981 = vmatprep.subr.bf16.mxu0 0
        %2982 = vmatpush1.bf16.msra.mxu0 %v2962
        %2983 = vmatprep.subr.bf16.mxu0 0
        %2984 = vmatpush1.bf16.msra.mxu0 %v2963
        %2985 = vmatprep.subr.bf16.mxu0 0
        %2986 = vmatpush1.bf16.msra.mxu0 %v2964
        %2987 = vmatprep.subr.bf16.mxu0 0
        %2988 = vmatpush1.bf16.msra.mxu0 0
        %2989 = vmatprep.subr.bf16.mxu0 0
        %2990 = vmatpush1.bf16.msra.mxu0 0
        %2991 = vmatprep.subr.bf16.mxu0 0
        %2992 = vmatpush1.bf16.msra.mxu0 0
        %2993 = vmatprep.subr.bf16.mxu0 0
        %2994 = vmatpush1.bf16.msra.mxu0 0
        %2995 = vmatprep.subr.bf16.mxu0 0
        %2996 = vmatpush1.bf16.msra.mxu0 0
        %2997 = vmatprep.subr.bf16.mxu0 0
        %2998 = vmatpush1.bf16.msra.mxu0 0
        %2999 = vmatprep.subr.bf16.mxu0 0
        %3000 = vmatpush1.bf16.msra.mxu0 0
        %3001 = vmatprep.subr.bf16.mxu0 0
        %3002 = vmatpush1.bf16.msra.mxu0 0
        %3003 = vmatprep.subr.bf16.mxu0 0
        %3004 = vmatpush1.bf16.msra.mxu0 0
        %3005 = vmatprep.subr.bf16.mxu0 0
        %3006 = vmatpush1.bf16.msra.mxu0 0
        %3007 = vmatprep.mubr.bf16.mxu0 0
        %3008 = vmatmul.mubr.bf16.gmra.mrb[0].mxu0 %v2973
        %v3009 = vpop.f32.mrb[0].mxu0
        %v3010 = vadd.f32 %v2933, %v3009
        %v3011 = vpop.f32.mrb[0].mxu0
        %v3012 = vpop.f32.mrb[0].mxu0
        %v3013 = vpop.f32.mrb[0].mxu0
        %3014 = vdwg.mxu0
        %v3015 = vadd.f32 %v2838, %v3010
        %v3016 = vld [vmem:[%s782] sm:$0x1]
        %v3017 = vld [vmem:[%s790] sm:$0x1]
        %v3018 = vsel %vm944, %v3015, 0.0
        %3019 = vadd.xlane.f32.xlu0 %v3018
        %v3020 = vpop.xlane.xlu0 %3019
        %v3021 = vmul.f32 %v3020, %v2814
        %v3022 = vsub.f32 %v3015, %v3021
        %v3023 = vmul.f32 %v3022, %v3022
        %v3024 = vsel %vm944, %v3023, 0.0
        %3025 = vadd.xlane.f32.xlu0 %v3024
        %v3026 = vpop.xlane.xlu0 %3025
        %v3027 = vmul.f32 %v3026, %v2814
        %v3028 = vadd.f32 %v3027, 1e-05
        %v3029 = vrsqrt.pop %v3028
        %v3030 = vmul.f32 %v3022, %v3029
        %v3032 = vlaneseq
        %v3033 = vshrl.u32 %v3032, 7
        %v3034 = vsub.s32 0, %v3033
        %v3035 = vrot.slane %v3016, %v3034
        %v3037 = vmul.f32 %v3030, %v3035
        %v3039 = vlaneseq
        %v3040 = vshrl.u32 %v3039, 7
        %v3041 = vsub.s32 0, %v3040
        %v3042 = vrot.slane %v3017, %v3041
        %v3044 = vadd.f32 %v3037, %v3042
        %3045 = vst.msk [vmem:[#allocation2] sm:$0xff] %vm944, %v3044
        %p3046 = scmp.eq.s32.totalorder %s53, 2
        // Predicated region
        $region129: #{tpu_custom_call.1} parent=71 // pred_check
          %p3047 = pneg %p3046
        $region130: #{tpu_custom_call.1} parent=71 // pred_check_branch
          %3049 = sbr.rel (%p3047) target = $region132
        $region131: #{tpu_custom_call.1} parent=71 // pred_region
          %3050 = vst.msk [vmem:[%s885] sm:$0xff] %vm944, %v3044
        $region132: #{tpu_custom_call.1} parent=71 // pred_fallthru
          _
        %s3051 = sand.u32 %s406, 1
        %s3052 = scalar_lea.sflag [#allocation5], %s3051
        %s3053 = sand.u32 %s406, 1
        %s3054 = smul.addr %s3053, 8
        %s3055 = scalar_lea.vmem [#allocation24], %s3054
        // Predicated region
        $region133: #{tpu_custom_call.1} parent=71 // pred_check
          %p3056 = pneg %p416
        $region134: #{tpu_custom_call.1} parent=71 // pred_check_branch
          %3058 = sbr.rel (%p3056) target = $region136
        $region135: #{tpu_custom_call.1} parent=71 // pred_region
          %s3060 = ssub.s32 128, 128
          %3061 = vsyncadd %s3052, %s3060
          %s3062 = smul.addr %s52, 128
          %s3063 = scalar_lea.hbm %s13, %s3062
          %s3065 = sshll.u32 %s3055, 4
          %s3066 = int_to_ptr.vmem [resolvable:$true] %s3065
          %3068 = dma.vmem_to_hbm [thread:$0]  %s3066, 128, %s3063, %s3052
        $region136: #{tpu_custom_call.1} parent=71 // pred_fallthru
          _
      $region72: #{tpu_custom_call.1} parent=5 // pred_fallthru
        _
      %p3069 = scmp.le.s32.totalorder 2, %s43
      // Predicated region
      $region137: #{tpu_custom_call.1} parent=5 // pred_check
        %p3070 = pneg %p3069
      $region138: #{tpu_custom_call.1} parent=5 // pred_check_branch
        %3072 = sbr.rel (%p3070) target = $region140
      $region139: #{tpu_custom_call.1} parent=5 // pred_region
        %s3073 = ssub.s32 %s43, 2
        // Predicated region
        $region141: #{tpu_custom_call.1} parent=139 // pred_check
          %p3074 = pneg %p422
        $region142: #{tpu_custom_call.1} parent=139 // pred_check_branch
          %3076 = sbr.rel (%p3074) target = $region144
        $region143: #{tpu_custom_call.1} parent=139 // pred_region
          %s3077 = sand.u32 %s407, 1
          %s3078 = scalar_lea.sflag [#allocation5], %s3077
          %s3079 = sand.u32 %s407, 1
          %s3080 = smul.addr %s3079, 8
          %s3081 = scalar_lea.vmem [#allocation24], %s3080
          %3082 = dma.done %s3078, 128
        $region144: #{tpu_custom_call.1} parent=139 // pred_fallthru
          _
      $region140: #{tpu_custom_call.1} parent=5 // pred_fallthru
        _
    $region6: #{tpu_custom_call.1} parent=1 // loop_footer
      %s47 = sadd.s32 1, %s43
    $region7: #{tpu_custom_call.1} parent=1 // loop_footer_branch
      %42 = sbr.rel target = $region3
    $region8: #{tpu_custom_call.1} parent=1 // loop_exit
      _
    %3083 = vsyncpa [#allocation4], 1
    %s3084 = scalar_lea.sflag [#allocation4], 1
    %3085 = vsyncpa %s3084, 1
    %3086 = vsyncpa [#allocation7], 1
    %s3087 = scalar_lea.sflag [#allocation7], 1
    %3088 = vsyncpa %s3087, 1
    %3089 = vsyncpa [#allocation10], 1
    %s3090 = scalar_lea.sflag [#allocation10], 1
    %3091 = vsyncpa %s3090, 1
    %3092 = vsyncpa [#allocation13], 1
    %s3093 = scalar_lea.sflag [#allocation13], 1
    %3094 = vsyncpa %s3093, 1
    %3095 = vsyncpa [#allocation16], 1
    %s3096 = scalar_lea.sflag [#allocation16], 1
    %3097 = vsyncpa %s3096, 1
    %3098 = vsyncpa [#allocation19], 1
    %s3099 = scalar_lea.sflag [#allocation19], 1
    %3100 = vsyncpa %s3099, 1
    %3101 = vsyncpa [#allocation22], 1
    %s3102 = scalar_lea.sflag [#allocation22], 1
    %3103 = vsyncpa %s3102, 1
    %3104 = vsyncpa [#allocation5], 1
    %s3105 = scalar_lea.sflag [#allocation5], 1
    %3106 = vsyncpa %s3105, 1

</llo_original>
